<compile_context>
chip_gen: v7x
topology: tpu7x:2x2x1
jax: 0.10.0
libtpu: 0.0.40
codegen_flags: <defaults>
</compile_context>

<pallas_src>
import functools

import jax
import jax.numpy as jnp
from jax.experimental import pallas as pl
from jax.experimental.pallas import tpu as pltpu


def cross_attn_kernel(x_ref, q_ref, wk_ref, wv_ref, wp_ref, bp_ref, o_ref,
                      *, num_heads, head_dim):
    # x_ref:  (Bt, N, C)  input dtype (f32)  block of batch elements
    # q_ref:  (L, C)      bf16   pre-projected, pre-scaled queries (shared over batch)
    # wk_ref: (C, C)      bf16   key   projection weight, stored (in, out)
    # wv_ref: (C, C)      bf16   value projection weight, stored (in, out)
    # wp_ref: (C, C)      bf16   output projection weight, stored (in, out)
    # bp_ref: (1, C)      f32    output projection bias
    # o_ref:  (Bt, L, C)         output block
    Bt, N, C = x_ref.shape
    L = q_ref.shape[0]
    H, Dh = num_heads, head_dim

    # Cast x to bf16 on the VPU inside the kernel (x is DMA'd in its original dtype).
    x2 = x_ref[...].astype(jnp.bfloat16).reshape(Bt * N, C)

    # K / V projections: two separate full-K MXU matmuls with f32 accumulation,
    # each cast to bf16 immediately (no f32 (Bt*N, 2C) kv value ever live).
    k16 = jnp.dot(x2, wk_ref[...],
                  preferred_element_type=jnp.float32).astype(jnp.bfloat16)
    k16 = k16.reshape(Bt, N, C)
    v16 = jnp.dot(x2, wv_ref[...],
                  preferred_element_type=jnp.float32).astype(jnp.bfloat16)
    v16 = v16.reshape(Bt, N, C)

    # Queries shared across the batch block; softmax scale already folded in.
    qb = jnp.broadcast_to(q_ref[...][None], (Bt, L, C))            # bf16

    # f32 output-projection accumulator initialised with the bias.  Lives in
    # registers; no VMEM scratch and no masked 32-lane partial stores.
    out = jnp.broadcast_to(bp_ref[...], (Bt * L, C)).astype(jnp.float32)

    for h in range(H):                         # static unroll over heads
        lo = h * Dh
        qh = qb[:, :, lo:lo + Dh]              # (Bt, L, Dh) bf16
        kh = k16[:, :, lo:lo + Dh]             # (Bt, N, Dh) bf16
        vh = v16[:, :, lo:lo + Dh]             # (Bt, N, Dh) bf16

        s = jnp.einsum('bld,bnd->bln', qh, kh,
                       preferred_element_type=jnp.float32)         # (Bt, L, N) f32
        m = jnp.max(s, axis=-1, keepdims=True)
        e = jnp.exp(s - m)                                         # f32 softmax
        r = pl.reciprocal(jnp.sum(e, axis=-1, keepdims=True), approx=True)  # EUP
        oh = jnp.einsum('bln,bnd->bld', e.astype(jnp.bfloat16), vh,
                        preferred_element_type=jnp.float32)        # (Bt, L, Dh) f32
        oh = oh * r                            # normalise the small head output

        # Fold this head straight into the output projection (Dh-deep slice of Wp).
        out = out + jnp.dot(oh.astype(jnp.bfloat16).reshape(Bt * L, Dh),
                            wp_ref[lo:lo + Dh, :],
                            preferred_element_type=jnp.float32)

    o_ref[...] = out.reshape(Bt, L, C).astype(o_ref.dtype)          # lane-dense store


def _step_vmem_bytes(block_b, N, C, L):
    """Rough per-grid-step VMEM footprint (bytes), used to size block_b."""
    xf32 = block_b * N * C * 4              # x tile (assume f32 input)
    outb = block_b * L * C * 4              # output tile
    wts = (3 * C * C + L * C) * 2 + 4 * C   # bf16 weights + f32 bias
    x16 = block_b * N * C * 2               # in-kernel bf16 copy of x
    kv16 = 2 * block_b * N * C * 2          # k16 + v16
    ktmp = block_b * N * C * 4              # one f32 projection result live pre-cast
    scores = 2 * block_b * L * N * 4        # s / e for one head (f32)
    accum = block_b * L * C * 4             # f32 output-projection accumulator
    # x / out / weights are (double-)buffered by the BlockSpec pipeline.
    return 2 * (xf32 + outb + wts) + x16 + kv16 + ktmp + scores + accum


def cross_attention(x, template, wq, wkv, wp, bp, *, num_heads,
                    block_b=None, min_grid=1):
    """CrossAttention forward (query=None / template path, eval mode).

    Linear weights are stored (in_features, out_features), i.e. PyTorch weight.T.
    min_grid=1 is best on single-TC v5e/v6e; pass min_grid=2 on v7x so the
    "parallel" batch axis can be sharded over its two TensorCores.
    """
    B, N, C = x.shape
    L = template.shape[0]
    head_dim = C // num_heads
    scale = head_dim ** (-0.5)

    # Largest batch block whose per-step footprint fits the VMEM budget (grid=1 ok).
    if block_b is None:
        budget = 24 << 20
        block_b = 1
        for cand in range(B, 0, -1):
            if (B % cand == 0 and (B // cand) >= min_grid
                    and _step_vmem_bytes(cand, N, C, L) <= budget):
                block_b = cand
                break
    assert B % block_b == 0, "B must be divisible by block_b"

    # One-time, batch-independent query projection with the softmax scale folded in.
    q_scaled = ((template.astype(jnp.float32) @ wq.astype(jnp.float32)) * scale
                ).astype(jnp.bfloat16)

    # Weights as bf16 MXU operands; kv weight split so K and V are separate dots.
    wk16 = wkv[:, :C].astype(jnp.bfloat16)
    wv16 = wkv[:, C:].astype(jnp.bfloat16)
    wp16 = wp.astype(jnp.bfloat16)
    bp32 = bp.astype(jnp.float32).reshape(1, C)

    kernel = functools.partial(cross_attn_kernel,
                               num_heads=num_heads, head_dim=head_dim)

    # Single-buffer constant-index operands only when they are big enough for the
    # wasted second pipeline buffer to matter (large C; v7x's 64 MiB VMEM).
    const_bytes = (3 * C * C + L * C) * 2 + 4 * C
    single_buffer_consts = const_bytes >= (2 << 20)

    def const_spec(shape):
        idx = lambda i, _nd=len(shape): (0,) * _nd
        if single_buffer_consts:
            return pl.BlockSpec(shape, idx, pipeline_mode=pl.Buffered(1))
        return pl.BlockSpec(shape, idx)

    est = _step_vmem_bytes(block_b, N, C, L)
    vmem_limit = int(min(max(3 * est // 2, 32 << 20), 48 << 20))

    flops = (2 * B * N * C * C * 2        # K and V projections
             + 2 * B * L * N * C * 2      # q @ k^T and attn @ v (all heads)
             + 2 * B * L * C * C)         # output projection
    transcendentals = B * num_heads * L * N
    bytes_accessed = (x.size * x.dtype.itemsize
                      + q_scaled.size * 2 + wk16.size * 2 + wv16.size * 2
                      + wp16.size * 2 + bp32.size * 4
                      + B * L * C * x.dtype.itemsize)

    return pl.pallas_call(
        kernel,
        out_shape=jax.ShapeDtypeStruct((B, L, C), x.dtype),
        grid_spec=pltpu.PrefetchScalarGridSpec(
            num_scalar_prefetch=0,
            grid=(B // block_b,),
            in_specs=[
                pl.BlockSpec((block_b, N, C), lambda i: (i, 0, 0)),   # x (f32 tile)
                const_spec((L, C)),          # pre-projected, pre-scaled q
                const_spec((C, C)),          # Wk
                const_spec((C, C)),          # Wv
                const_spec((C, C)),          # Wproj
                const_spec((1, C)),          # bproj
            ],
            out_specs=pl.BlockSpec((block_b, L, C), lambda i: (i, 0, 0)),
        ),
        compiler_params=pltpu.CompilerParams(
            dimension_semantics=("parallel",),
            vmem_limit_bytes=vmem_limit),
        cost_estimate=pl.CostEstimate(flops=flops,
                                      transcendentals=transcendentals,
                                      bytes_accessed=bytes_accessed),
    )(x, q_scaled, wk16, wv16, wp16, bp32)


def cross_attention_ref(x, template, wq, wkv, wp, bp, *, num_heads):
    """Pure-JAX f32 reference mirroring the PyTorch forward (query=None, eval)."""
    B, N, C = x.shape
    L = template.shape[0]
    Dh = C // num_heads
    scale = Dh ** (-0.5)

    q = template @ wq
    q = q.reshape(1, L, num_heads, Dh).transpose(0, 2, 1, 3)
    q = jnp.broadcast_to(q, (B, num_heads, L, Dh))

    kv = x @ wkv
    kv = kv.reshape(B, N, 2, num_heads, Dh).transpose(2, 0, 3, 1, 4)
    k, v = kv[0], kv[1]

    s = jnp.einsum('bhld,bhnd->bhln', q, k) * scale
    p = jax.nn.softmax(s, axis=-1)
    o = jnp.einsum('bhln,bhnd->bhld', p, v)
    o = o.transpose(0, 2, 1, 3).reshape(B, L, C)
    return o @ wp + bp


if __name__ == "__main__":
    # Small lane-dense config: C = N = 128, num_heads=4 (head_dim=32), B=4,
    # var_num (L) = 8.  block_b resolves to 4 -> grid=(1,) on single-TC chips.
    B, N, C = 4, 128, 128
    num_heads = 4
    var_num = 8  # L

    key = jax.random.PRNGKey(0)
    kx, kt, kq, kkv, kp, kb = jax.random.split(key, 6)

    x = jax.random.normal(kx, (B, N, C), dtype=jnp.float32)
    # Trained-magnitude parameters (weights ~ 1/sqrt(C)) so the softmax is
    # non-trivial and the comparison against the reference is discriminative.
    template = jax.random.normal(kt, (var_num, C), dtype=jnp.float32)
    wq = 0.1 * jax.random.normal(kq, (C, C), dtype=jnp.float32)        # (in, out) = W.T
    wkv = 0.1 * jax.random.normal(kkv, (C, 2 * C), dtype=jnp.float32)
    wp = 0.1 * jax.random.normal(kp, (C, C), dtype=jnp.float32)
    bp = 0.1 * jax.random.normal(kb, (1, C), dtype=jnp.float32)

    out = cross_attention(x, template, wq, wkv, wp, bp, num_heads=num_heads)
    out = jax.block_until_ready(out)

    ref = cross_attention_ref(x, template, wq, wkv, wp, bp, num_heads=num_heads)
    assert out.shape == (B, var_num, C)
    # bf16 MXU operands + approximate reciprocal -> loosened tolerance vs f32 ref.
    assert jnp.allclose(out, ref, atol=5e-2, rtol=5e-2), "mismatch vs reference"

    print("KERNEL_OK")
</pallas_src>

<mosaic_0001>
module attributes {stable_mosaic.version = 11 : i64} {
  func.func @cross_attn_kernel(%arg0: i32, %arg1: memref<4x128x128xf32, #tpu.memory_space<vmem>>, %arg2: memref<8x128xbf16, #tpu.memory_space<vmem>>, %arg3: memref<128x128xbf16, #tpu.memory_space<vmem>>, %arg4: memref<128x128xbf16, #tpu.memory_space<vmem>>, %arg5: memref<128x128xbf16, #tpu.memory_space<vmem>>, %arg6: memref<1x128xf32, #tpu.memory_space<vmem>>, %arg7: memref<4x8x128xf32, #tpu.memory_space<vmem>>) attributes {dimension_semantics = [#tpu.dimension_semantics<parallel>], iteration_bounds = array<i64: 1>, scalar_prefetch = 0 : i64, scratch_operands = 0 : i64, tpu.core_type = #tpu.core_type<tc>, window_params = [{transform_indices = @transform_0, window_bounds = array<i64: 4, 128, 128>}, {pipeline_mode = #tpu.pipeline_mode<synchronous>, transform_indices = @transform_1, window_bounds = array<i64: 8, 128>}, {pipeline_mode = #tpu.pipeline_mode<synchronous>, transform_indices = @transform_2, window_bounds = array<i64: 128, 128>}, {pipeline_mode = #tpu.pipeline_mode<synchronous>, transform_indices = @transform_3, window_bounds = array<i64: 128, 128>}, {pipeline_mode = #tpu.pipeline_mode<synchronous>, transform_indices = @transform_4, window_bounds = array<i64: 128, 128>}, {pipeline_mode = #tpu.pipeline_mode<synchronous>, transform_indices = @transform_5, window_bounds = array<i64: 1, 128>}, {transform_indices = @transform_6, window_bounds = array<i64: 4, 8, 128>}]} {
    %c0 = arith.constant 0 : index
    %c0_0 = arith.constant 0 : index
    %c0_1 = arith.constant 0 : index
    %0 = vector.load %arg1[%c0, %c0_0, %c0_1] : memref<4x128x128xf32, #tpu.memory_space<vmem>>, vector<4x128x128xf32>
    %1 = arith.truncf %0 : vector<4x128x128xf32> to vector<4x128x128xbf16>
    %2 = vector.shape_cast %1 : vector<4x128x128xbf16> to vector<512x128xbf16>
    %c0_2 = arith.constant 0 : index
    %c0_3 = arith.constant 0 : index
    %3 = vector.load %arg3[%c0_2, %c0_3] : memref<128x128xbf16, #tpu.memory_space<vmem>>, vector<128x128xbf16>
    %cst = arith.constant dense<0.000000e+00> : vector<512x128xf32>
    %4 = tpu.matmul %2, %3, %cst {dimension_numbers = #tpu.dot_dimension_numbers<[1], [0], [0], [1], [0, 0, 1, 1], [], []>} : vector<512x128xbf16>, vector<128x128xbf16>, vector<512x128xf32> -> vector<512x128xf32>
    %5 = arith.truncf %4 : vector<512x128xf32> to vector<512x128xbf16>
    %6 = vector.shape_cast %5 : vector<512x128xbf16> to vector<4x128x128xbf16>
    %c0_4 = arith.constant 0 : index
    %c0_5 = arith.constant 0 : index
    %7 = vector.load %arg4[%c0_4, %c0_5] : memref<128x128xbf16, #tpu.memory_space<vmem>>, vector<128x128xbf16>
    %cst_6 = arith.constant dense<0.000000e+00> : vector<512x128xf32>
    %8 = tpu.matmul %2, %7, %cst_6 {dimension_numbers = #tpu.dot_dimension_numbers<[1], [0], [0], [1], [0, 0, 1, 1], [], []>} : vector<512x128xbf16>, vector<128x128xbf16>, vector<512x128xf32> -> vector<512x128xf32>
    %9 = arith.truncf %8 : vector<512x128xf32> to vector<512x128xbf16>
    %10 = vector.shape_cast %9 : vector<512x128xbf16> to vector<4x128x128xbf16>
    %c0_7 = arith.constant 0 : index
    %c0_8 = arith.constant 0 : index
    %11 = vector.load %arg2[%c0_7, %c0_8] : memref<8x128xbf16, #tpu.memory_space<vmem>>, vector<8x128xbf16>
    %12 = vector.shape_cast %11 : vector<8x128xbf16> to vector<1x8x128xbf16>
    %13 = vector.shape_cast %12 : vector<1x8x128xbf16> to vector<1x8x128xbf16>
    %14 = vector.broadcast %13 : vector<1x8x128xbf16> to vector<4x8x128xbf16>
    %c0_9 = arith.constant 0 : index
    %c0_10 = arith.constant 0 : index
    %15 = vector.load %arg6[%c0_9, %c0_10] : memref<1x128xf32, #tpu.memory_space<vmem>>, vector<1x128xf32>
    %16 = vector.shape_cast %15 : vector<1x128xf32> to vector<1x128xf32>
    %17 = vector.broadcast %16 : vector<1x128xf32> to vector<32x128xf32>
    %18 = vector.extract_strided_slice %14 {offsets = [0, 0, 0], sizes = [4, 8, 32], strides = [1, 1, 1]} : vector<4x8x128xbf16> to vector<4x8x32xbf16>
    %19 = vector.extract_strided_slice %6 {offsets = [0, 0, 0], sizes = [4, 128, 32], strides = [1, 1, 1]} : vector<4x128x128xbf16> to vector<4x128x32xbf16>
    %20 = vector.extract_strided_slice %10 {offsets = [0, 0, 0], sizes = [4, 128, 32], strides = [1, 1, 1]} : vector<4x128x128xbf16> to vector<4x128x32xbf16>
    "tpu.trace_start"() <{level = 10 : i32, message = "bld,bnd->bln"}> : () -> ()
    %cst_11 = arith.constant dense<0.000000e+00> : vector<4x8x128xf32>
    %21 = tpu.matmul %18, %19, %cst_11 {dimension_numbers = #tpu.dot_dimension_numbers<[2], [2], [1], [1], [0, 0, 0, 1, 1, 1], [0], [0]>} : vector<4x8x32xbf16>, vector<4x128x32xbf16>, vector<4x8x128xf32> -> vector<4x8x128xf32>
    "tpu.trace_stop"() : () -> ()
    %cst_12 = arith.constant dense<0xFF800000> : vector<4x8xf32>
    %22 = vector.multi_reduction <maximumf>, %21, %cst_12 [2] : vector<4x8x128xf32> to vector<4x8xf32>
    %23 = vector.shape_cast %22 : vector<4x8xf32> to vector<4x8x1xf32>
    %24 = vector.broadcast %23 : vector<4x8x1xf32> to vector<4x8x128xf32>
    %25 = arith.subf %21, %24 : vector<4x8x128xf32>
    %26 = math.exp %25 : vector<4x8x128xf32>
    %cst_13 = arith.constant dense<0.000000e+00> : vector<4x8xf32>
    %27 = vector.multi_reduction <add>, %26, %cst_13 [2] : vector<4x8x128xf32> to vector<4x8xf32>
    %28 = vector.shape_cast %27 : vector<4x8xf32> to vector<4x8x1xf32>
    %29 = tpu.reciprocal %28 {approx = true} : vector<4x8x1xf32> -> vector<4x8x1xf32>
    %30 = arith.truncf %26 : vector<4x8x128xf32> to vector<4x8x128xbf16>
    "tpu.trace_start"() <{level = 10 : i32, message = "bln,bnd->bld"}> : () -> ()
    %cst_14 = arith.constant dense<0.000000e+00> : vector<4x8x32xf32>
    %31 = tpu.matmul %30, %20, %cst_14 {dimension_numbers = #tpu.dot_dimension_numbers<[2], [1], [1], [2], [0, 0, 0, 1, 1, 2], [0], [0]>} : vector<4x8x128xbf16>, vector<4x128x32xbf16>, vector<4x8x32xf32> -> vector<4x8x32xf32>
    "tpu.trace_stop"() : () -> ()
    %32 = vector.broadcast %29 : vector<4x8x1xf32> to vector<4x8x32xf32>
    %33 = arith.mulf %31, %32 : vector<4x8x32xf32>
    %34 = arith.truncf %33 : vector<4x8x32xf32> to vector<4x8x32xbf16>
    %35 = vector.shape_cast %34 : vector<4x8x32xbf16> to vector<32x32xbf16>
    %c0_15 = arith.constant 0 : index
    %c0_16 = arith.constant 0 : index
    %36 = vector.load %arg5[%c0_15, %c0_16] : memref<128x128xbf16, #tpu.memory_space<vmem>>, vector<32x128xbf16>
    %cst_17 = arith.constant dense<0.000000e+00> : vector<32x128xf32>
    %37 = tpu.matmul %35, %36, %cst_17 {dimension_numbers = #tpu.dot_dimension_numbers<[1], [0], [0], [1], [0, 0, 1, 1], [], []>} : vector<32x32xbf16>, vector<32x128xbf16>, vector<32x128xf32> -> vector<32x128xf32>
    %38 = arith.addf %17, %37 : vector<32x128xf32>
    %39 = vector.extract_strided_slice %14 {offsets = [0, 0, 32], sizes = [4, 8, 32], strides = [1, 1, 1]} : vector<4x8x128xbf16> to vector<4x8x32xbf16>
    %40 = vector.extract_strided_slice %6 {offsets = [0, 0, 32], sizes = [4, 128, 32], strides = [1, 1, 1]} : vector<4x128x128xbf16> to vector<4x128x32xbf16>
    %41 = vector.extract_strided_slice %10 {offsets = [0, 0, 32], sizes = [4, 128, 32], strides = [1, 1, 1]} : vector<4x128x128xbf16> to vector<4x128x32xbf16>
    "tpu.trace_start"() <{level = 10 : i32, message = "bld,bnd->bln"}> : () -> ()
    %cst_18 = arith.constant dense<0.000000e+00> : vector<4x8x128xf32>
    %42 = tpu.matmul %39, %40, %cst_18 {dimension_numbers = #tpu.dot_dimension_numbers<[2], [2], [1], [1], [0, 0, 0, 1, 1, 1], [0], [0]>} : vector<4x8x32xbf16>, vector<4x128x32xbf16>, vector<4x8x128xf32> -> vector<4x8x128xf32>
    "tpu.trace_stop"() : () -> ()
    %cst_19 = arith.constant dense<0xFF800000> : vector<4x8xf32>
    %43 = vector.multi_reduction <maximumf>, %42, %cst_19 [2] : vector<4x8x128xf32> to vector<4x8xf32>
    %44 = vector.shape_cast %43 : vector<4x8xf32> to vector<4x8x1xf32>
    %45 = vector.broadcast %44 : vector<4x8x1xf32> to vector<4x8x128xf32>
    %46 = arith.subf %42, %45 : vector<4x8x128xf32>
    %47 = math.exp %46 : vector<4x8x128xf32>
    %cst_20 = arith.constant dense<0.000000e+00> : vector<4x8xf32>
    %48 = vector.multi_reduction <add>, %47, %cst_20 [2] : vector<4x8x128xf32> to vector<4x8xf32>
    %49 = vector.shape_cast %48 : vector<4x8xf32> to vector<4x8x1xf32>
    %50 = tpu.reciprocal %49 {approx = true} : vector<4x8x1xf32> -> vector<4x8x1xf32>
    %51 = arith.truncf %47 : vector<4x8x128xf32> to vector<4x8x128xbf16>
    "tpu.trace_start"() <{level = 10 : i32, message = "bln,bnd->bld"}> : () -> ()
    %cst_21 = arith.constant dense<0.000000e+00> : vector<4x8x32xf32>
    %52 = tpu.matmul %51, %41, %cst_21 {dimension_numbers = #tpu.dot_dimension_numbers<[2], [1], [1], [2], [0, 0, 0, 1, 1, 2], [0], [0]>} : vector<4x8x128xbf16>, vector<4x128x32xbf16>, vector<4x8x32xf32> -> vector<4x8x32xf32>
    "tpu.trace_stop"() : () -> ()
    %53 = vector.broadcast %50 : vector<4x8x1xf32> to vector<4x8x32xf32>
    %54 = arith.mulf %52, %53 : vector<4x8x32xf32>
    %55 = arith.truncf %54 : vector<4x8x32xf32> to vector<4x8x32xbf16>
    %56 = vector.shape_cast %55 : vector<4x8x32xbf16> to vector<32x32xbf16>
    %c32 = arith.constant 32 : index
    %c0_22 = arith.constant 0 : index
    %57 = vector.load %arg5[%c32, %c0_22] : memref<128x128xbf16, #tpu.memory_space<vmem>>, vector<32x128xbf16>
    %cst_23 = arith.constant dense<0.000000e+00> : vector<32x128xf32>
    %58 = tpu.matmul %56, %57, %cst_23 {dimension_numbers = #tpu.dot_dimension_numbers<[1], [0], [0], [1], [0, 0, 1, 1], [], []>} : vector<32x32xbf16>, vector<32x128xbf16>, vector<32x128xf32> -> vector<32x128xf32>
    %59 = arith.addf %38, %58 : vector<32x128xf32>
    %60 = vector.extract_strided_slice %14 {offsets = [0, 0, 64], sizes = [4, 8, 32], strides = [1, 1, 1]} : vector<4x8x128xbf16> to vector<4x8x32xbf16>
    %61 = vector.extract_strided_slice %6 {offsets = [0, 0, 64], sizes = [4, 128, 32], strides = [1, 1, 1]} : vector<4x128x128xbf16> to vector<4x128x32xbf16>
    %62 = vector.extract_strided_slice %10 {offsets = [0, 0, 64], sizes = [4, 128, 32], strides = [1, 1, 1]} : vector<4x128x128xbf16> to vector<4x128x32xbf16>
    "tpu.trace_start"() <{level = 10 : i32, message = "bld,bnd->bln"}> : () -> ()
    %cst_24 = arith.constant dense<0.000000e+00> : vector<4x8x128xf32>
    %63 = tpu.matmul %60, %61, %cst_24 {dimension_numbers = #tpu.dot_dimension_numbers<[2], [2], [1], [1], [0, 0, 0, 1, 1, 1], [0], [0]>} : vector<4x8x32xbf16>, vector<4x128x32xbf16>, vector<4x8x128xf32> -> vector<4x8x128xf32>
    "tpu.trace_stop"() : () -> ()
    %cst_25 = arith.constant dense<0xFF800000> : vector<4x8xf32>
    %64 = vector.multi_reduction <maximumf>, %63, %cst_25 [2] : vector<4x8x128xf32> to vector<4x8xf32>
    %65 = vector.shape_cast %64 : vector<4x8xf32> to vector<4x8x1xf32>
    %66 = vector.broadcast %65 : vector<4x8x1xf32> to vector<4x8x128xf32>
    %67 = arith.subf %63, %66 : vector<4x8x128xf32>
    %68 = math.exp %67 : vector<4x8x128xf32>
    %cst_26 = arith.constant dense<0.000000e+00> : vector<4x8xf32>
    %69 = vector.multi_reduction <add>, %68, %cst_26 [2] : vector<4x8x128xf32> to vector<4x8xf32>
    %70 = vector.shape_cast %69 : vector<4x8xf32> to vector<4x8x1xf32>
    %71 = tpu.reciprocal %70 {approx = true} : vector<4x8x1xf32> -> vector<4x8x1xf32>
    %72 = arith.truncf %68 : vector<4x8x128xf32> to vector<4x8x128xbf16>
    "tpu.trace_start"() <{level = 10 : i32, message = "bln,bnd->bld"}> : () -> ()
    %cst_27 = arith.constant dense<0.000000e+00> : vector<4x8x32xf32>
    %73 = tpu.matmul %72, %62, %cst_27 {dimension_numbers = #tpu.dot_dimension_numbers<[2], [1], [1], [2], [0, 0, 0, 1, 1, 2], [0], [0]>} : vector<4x8x128xbf16>, vector<4x128x32xbf16>, vector<4x8x32xf32> -> vector<4x8x32xf32>
    "tpu.trace_stop"() : () -> ()
    %74 = vector.broadcast %71 : vector<4x8x1xf32> to vector<4x8x32xf32>
    %75 = arith.mulf %73, %74 : vector<4x8x32xf32>
    %76 = arith.truncf %75 : vector<4x8x32xf32> to vector<4x8x32xbf16>
    %77 = vector.shape_cast %76 : vector<4x8x32xbf16> to vector<32x32xbf16>
    %c64 = arith.constant 64 : index
    %c0_28 = arith.constant 0 : index
    %78 = vector.load %arg5[%c64, %c0_28] : memref<128x128xbf16, #tpu.memory_space<vmem>>, vector<32x128xbf16>
    %cst_29 = arith.constant dense<0.000000e+00> : vector<32x128xf32>
    %79 = tpu.matmul %77, %78, %cst_29 {dimension_numbers = #tpu.dot_dimension_numbers<[1], [0], [0], [1], [0, 0, 1, 1], [], []>} : vector<32x32xbf16>, vector<32x128xbf16>, vector<32x128xf32> -> vector<32x128xf32>
    %80 = arith.addf %59, %79 : vector<32x128xf32>
    %81 = vector.extract_strided_slice %14 {offsets = [0, 0, 96], sizes = [4, 8, 32], strides = [1, 1, 1]} : vector<4x8x128xbf16> to vector<4x8x32xbf16>
    %82 = vector.extract_strided_slice %6 {offsets = [0, 0, 96], sizes = [4, 128, 32], strides = [1, 1, 1]} : vector<4x128x128xbf16> to vector<4x128x32xbf16>
    %83 = vector.extract_strided_slice %10 {offsets = [0, 0, 96], sizes = [4, 128, 32], strides = [1, 1, 1]} : vector<4x128x128xbf16> to vector<4x128x32xbf16>
    "tpu.trace_start"() <{level = 10 : i32, message = "bld,bnd->bln"}> : () -> ()
    %cst_30 = arith.constant dense<0.000000e+00> : vector<4x8x128xf32>
    %84 = tpu.matmul %81, %82, %cst_30 {dimension_numbers = #tpu.dot_dimension_numbers<[2], [2], [1], [1], [0, 0, 0, 1, 1, 1], [0], [0]>} : vector<4x8x32xbf16>, vector<4x128x32xbf16>, vector<4x8x128xf32> -> vector<4x8x128xf32>
    "tpu.trace_stop"() : () -> ()
    %cst_31 = arith.constant dense<0xFF800000> : vector<4x8xf32>
    %85 = vector.multi_reduction <maximumf>, %84, %cst_31 [2] : vector<4x8x128xf32> to vector<4x8xf32>
    %86 = vector.shape_cast %85 : vector<4x8xf32> to vector<4x8x1xf32>
    %87 = vector.broadcast %86 : vector<4x8x1xf32> to vector<4x8x128xf32>
    %88 = arith.subf %84, %87 : vector<4x8x128xf32>
    %89 = math.exp %88 : vector<4x8x128xf32>
    %cst_32 = arith.constant dense<0.000000e+00> : vector<4x8xf32>
    %90 = vector.multi_reduction <add>, %89, %cst_32 [2] : vector<4x8x128xf32> to vector<4x8xf32>
    %91 = vector.shape_cast %90 : vector<4x8xf32> to vector<4x8x1xf32>
    %92 = tpu.reciprocal %91 {approx = true} : vector<4x8x1xf32> -> vector<4x8x1xf32>
    %93 = arith.truncf %89 : vector<4x8x128xf32> to vector<4x8x128xbf16>
    "tpu.trace_start"() <{level = 10 : i32, message = "bln,bnd->bld"}> : () -> ()
    %cst_33 = arith.constant dense<0.000000e+00> : vector<4x8x32xf32>
    %94 = tpu.matmul %93, %83, %cst_33 {dimension_numbers = #tpu.dot_dimension_numbers<[2], [1], [1], [2], [0, 0, 0, 1, 1, 2], [0], [0]>} : vector<4x8x128xbf16>, vector<4x128x32xbf16>, vector<4x8x32xf32> -> vector<4x8x32xf32>
    "tpu.trace_stop"() : () -> ()
    %95 = vector.broadcast %92 : vector<4x8x1xf32> to vector<4x8x32xf32>
    %96 = arith.mulf %94, %95 : vector<4x8x32xf32>
    %97 = arith.truncf %96 : vector<4x8x32xf32> to vector<4x8x32xbf16>
    %98 = vector.shape_cast %97 : vector<4x8x32xbf16> to vector<32x32xbf16>
    %c96 = arith.constant 96 : index
    %c0_34 = arith.constant 0 : index
    %99 = vector.load %arg5[%c96, %c0_34] : memref<128x128xbf16, #tpu.memory_space<vmem>>, vector<32x128xbf16>
    %cst_35 = arith.constant dense<0.000000e+00> : vector<32x128xf32>
    %100 = tpu.matmul %98, %99, %cst_35 {dimension_numbers = #tpu.dot_dimension_numbers<[1], [0], [0], [1], [0, 0, 1, 1], [], []>} : vector<32x32xbf16>, vector<32x128xbf16>, vector<32x128xf32> -> vector<32x128xf32>
    %101 = arith.addf %80, %100 : vector<32x128xf32>
    %102 = vector.shape_cast %101 : vector<32x128xf32> to vector<4x8x128xf32>
    %c0_36 = arith.constant 0 : index
    %c0_37 = arith.constant 0 : index
    %c0_38 = arith.constant 0 : index
    %103 = vector.load %arg7[%c0_36, %c0_37, %c0_38] : memref<4x8x128xf32, #tpu.memory_space<vmem>>, vector<4x8x128xf32>
    tpu.vector_store %arg7[%c0_36, %c0_37, %c0_38], %102 {strides = array<i32>} : memref<4x8x128xf32, #tpu.memory_space<vmem>>, vector<4x8x128xf32>,
    return
  }
  func.func @transform_0(%arg0: i32) -> (i32, i32, i32) {
    %c0_i32 = arith.constant 0 : i32
    %c0_i32_0 = arith.constant 0 : i32
    %c0_i32_1 = arith.constant 0 : i32
    return %arg0, %c0_i32, %c0_i32_0 : i32, i32, i32
  }
  func.func @transform_1(%arg0: i32) -> (i32, i32) {
    %c0_i32 = arith.constant 0 : i32
    %c0_i32_0 = arith.constant 0 : i32
    %c0_i32_1 = arith.constant 0 : i32
    return %c0_i32, %c0_i32_0 : i32, i32
  }
  func.func @transform_2(%arg0: i32) -> (i32, i32) {
    %c0_i32 = arith.constant 0 : i32
    %c0_i32_0 = arith.constant 0 : i32
    %c0_i32_1 = arith.constant 0 : i32
    return %c0_i32, %c0_i32_0 : i32, i32
  }
  func.func @transform_3(%arg0: i32) -> (i32, i32) {
    %c0_i32 = arith.constant 0 : i32
    %c0_i32_0 = arith.constant 0 : i32
    %c0_i32_1 = arith.constant 0 : i32
    return %c0_i32, %c0_i32_0 : i32, i32
  }
  func.func @transform_4(%arg0: i32) -> (i32, i32) {
    %c0_i32 = arith.constant 0 : i32
    %c0_i32_0 = arith.constant 0 : i32
    %c0_i32_1 = arith.constant 0 : i32
    return %c0_i32, %c0_i32_0 : i32, i32
  }
  func.func @transform_5(%arg0: i32) -> (i32, i32) {
    %c0_i32 = arith.constant 0 : i32
    %c0_i32_0 = arith.constant 0 : i32
    %c0_i32_1 = arith.constant 0 : i32
    return %c0_i32, %c0_i32_0 : i32, i32
  }
  func.func @transform_6(%arg0: i32) -> (i32, i32, i32) {
    %c0_i32 = arith.constant 0 : i32
    %c0_i32_0 = arith.constant 0 : i32
    %c0_i32_1 = arith.constant 0 : i32
    return %arg0, %c0_i32, %c0_i32_0 : i32, i32, i32
  }
}

</mosaic_0001>

<llo_original>
// kernel: tpu_custom_call.1
$region0: #{tpu_custom_call.1}
  #allocation0 [shape = 'u32[]', space=smem, size = 0x4, offset = 0x4, fixed_abs, tag = 'smem constant byte address 0x4 - core index']
  #allocation1 [shape = 'u32[144,128]{1,0:T(1,128)}', space=vmem, size = 0x12000, scoped, tag = 'internal scratch']
  %s0 = inlined_call_operand.hbm [shape: f32[4,128,128], index: 0, kind: input, shape index: {}]
  %s1 = inlined_call_operand.hbm [shape: bf16[8,128], index: 1, kind: input, shape index: {}]
  %s2 = inlined_call_operand.hbm [shape: bf16[128,128], index: 2, kind: input, shape index: {}]
  %s3 = inlined_call_operand.hbm [shape: bf16[128,128], index: 3, kind: input, shape index: {}]
  %s4 = inlined_call_operand.hbm [shape: bf16[128,128], index: 4, kind: input, shape index: {}]
  %s5 = inlined_call_operand.vmem [shape: f32[1,128], index: 5, kind: input, shape index: {}]
  %s6 = inlined_call_operand.hbm [shape: f32[4,8,128], index: 6, kind: output, shape index: {}]
  %s7 = sld [smem:[#allocation0]]
  $region54: #{tpu_custom_call.1} parent=0
    _
  %s9 = ssub.s32 1, %s7
  %s10 = scalar_select 0, %s9, %s7
  $region1: #{tpu_custom_call.1} parent=0
    #allocation2 [shape = 'u8[262144]{0}', space=vmem, size = 0x40000, scoped, tag = 'input window, operand 0, single buffered']
    #allocation3 [shape = 's32[1]{0}', space=sflag, size = 0x4, scoped, tag = 'scoped memory for tpu_custom_call.1']
    #allocation4 [shape = 's32[1]{0}', space=sflag, size = 0x4, scoped, tag = 'scoped memory for tpu_custom_call.1']
    #allocation5 [shape = 'u8[2048]{0}', space=vmem, size = 0x800, scoped, tag = 'input window, operand 1, single buffered']
    #allocation6 [shape = 's32[1]{0}', space=sflag, size = 0x4, scoped, tag = 'scoped memory for tpu_custom_call.1']
    #allocation7 [shape = 'u8[32768]{0}', space=vmem, size = 0x8000, scoped, tag = 'input window, operand 2, single buffered']
    #allocation8 [shape = 'u8[32768]{0}', space=vmem, size = 0x8000, scoped, tag = 'input window, operand 3, single buffered']
    #allocation9 [shape = 's32[1]{0}', space=sflag, size = 0x4, scoped, tag = 'scoped memory for tpu_custom_call.1']
    #allocation10 [shape = 'u8[32768]{0}', space=vmem, size = 0x8000, scoped, tag = 'input window, operand 4, single buffered']
    #allocation11 [shape = 'u8[16384]{0}', space=vmem, size = 0x4000, scoped, tag = 'output window, operand 0, single buffered']
    %11 = vsyncpa [#allocation3], 0
    %12 = vsyncpa [#allocation6], 0
    %13 = vsyncpa [#allocation9], 0
    %14 = vsyncpa [#allocation4], 0
    // Predicated region
    $region2: #{tpu_custom_call.1} parent=1 // pred_check
      _
    $region3: #{tpu_custom_call.1} parent=1 // pred_check_branch
      %16 = sbr.rel (0) target = $region5
    $region4: #{tpu_custom_call.1} parent=1 // pred_region
      %s18 = ssub.s32 8192, 8192
      %19 = vsyncadd [#allocation3], %s18
      %s20 = sshll.u32 [#allocation2], 4
      %s21 = int_to_ptr.vmem [resolvable:$true] %s20
      %26 = dma.hbm_to_vmem [thread:$0]  %s0, 8192, %s21, [#allocation3], 128, 128, 8
    $region5: #{tpu_custom_call.1} parent=1 // pred_fallthru
      _
    // Predicated region
    $region6: #{tpu_custom_call.1} parent=1 // pred_check
      _
    $region7: #{tpu_custom_call.1} parent=1 // pred_check_branch
      %28 = sbr.rel (0) target = $region9
    $region8: #{tpu_custom_call.1} parent=1 // pred_region
      %s30 = ssub.s32 64, 64
      %31 = vsyncadd [#allocation6], %s30
      %s33 = sshll.u32 [#allocation5], 4
      %s34 = int_to_ptr.vmem [resolvable:$true] %s33
      %36 = dma.hbm_to_vmem [thread:$0]  %s1, 64, %s34, [#allocation6]
    $region9: #{tpu_custom_call.1} parent=1 // pred_fallthru
      _
    // Predicated region
    $region10: #{tpu_custom_call.1} parent=1 // pred_check
      _
    $region11: #{tpu_custom_call.1} parent=1 // pred_check_branch
      %38 = sbr.rel (0) target = $region13
    $region12: #{tpu_custom_call.1} parent=1 // pred_region
      %s40 = ssub.s32 1024, 1024
      %41 = vsyncadd [#allocation6], %s40
      %s42 = sshll.u32 [#allocation7], 4
      %s43 = int_to_ptr.vmem [resolvable:$true] %s42
      %48 = dma.hbm_to_vmem [thread:$0]  %s2, 1024, %s43, [#allocation6], 64, 64, 4
    $region13: #{tpu_custom_call.1} parent=1 // pred_fallthru
      _
    // Predicated region
    $region14: #{tpu_custom_call.1} parent=1 // pred_check
      _
    $region15: #{tpu_custom_call.1} parent=1 // pred_check_branch
      %50 = sbr.rel (0) target = $region17
    $region16: #{tpu_custom_call.1} parent=1 // pred_region
      %s52 = ssub.s32 1024, 1024
      %53 = vsyncadd [#allocation9], %s52
      %s54 = sshll.u32 [#allocation8], 4
      %s55 = int_to_ptr.vmem [resolvable:$true] %s54
      %60 = dma.hbm_to_vmem [thread:$0]  %s3, 1024, %s55, [#allocation9], 64, 64, 4
    $region17: #{tpu_custom_call.1} parent=1 // pred_fallthru
      _
    // Predicated region
    $region18: #{tpu_custom_call.1} parent=1 // pred_check
      _
    $region19: #{tpu_custom_call.1} parent=1 // pred_check_branch
      %62 = sbr.rel (0) target = $region21
    $region20: #{tpu_custom_call.1} parent=1 // pred_region
      %s64 = ssub.s32 1024, 1024
      %65 = vsyncadd [#allocation9], %s64
      %s66 = sshll.u32 [#allocation10], 4
      %s67 = int_to_ptr.vmem [resolvable:$true] %s66
      %72 = dma.hbm_to_vmem [thread:$0]  %s4, 1024, %s67, [#allocation9], 64, 64, 4
    $region21: #{tpu_custom_call.1} parent=1 // pred_fallthru
      _
    // Predicated region
    $region22: #{tpu_custom_call.1} parent=1 // pred_check
      _
    $region23: #{tpu_custom_call.1} parent=1 // pred_check_branch
      %74 = sbr.rel (0) target = $region25
    $region24: #{tpu_custom_call.1} parent=1 // pred_region
      _
    $region25: #{tpu_custom_call.1} parent=1 // pred_fallthru
      _
    // Predicated region
    $region26: #{tpu_custom_call.1} parent=1 // pred_check
      _
    $region27: #{tpu_custom_call.1} parent=1 // pred_check_branch
      %76 = sbr.rel (0) target = $region29
    $region28: #{tpu_custom_call.1} parent=1 // pred_region
      %77 = dma.done [#allocation3], 8192
    $region29: #{tpu_custom_call.1} parent=1 // pred_fallthru
      _
    // Predicated region
    $region30: #{tpu_custom_call.1} parent=1 // pred_check
      _
    $region31: #{tpu_custom_call.1} parent=1 // pred_check_branch
      %79 = sbr.rel (0) target = $region33
    $region32: #{tpu_custom_call.1} parent=1 // pred_region
      %80 = dma.done [#allocation6], 64
    $region33: #{tpu_custom_call.1} parent=1 // pred_fallthru
      _
    // Predicated region
    $region34: #{tpu_custom_call.1} parent=1 // pred_check
      _
    $region35: #{tpu_custom_call.1} parent=1 // pred_check_branch
      %82 = sbr.rel (0) target = $region37
    $region36: #{tpu_custom_call.1} parent=1 // pred_region
      %83 = dma.done [#allocation6], 1024
    $region37: #{tpu_custom_call.1} parent=1 // pred_fallthru
      _
    // Predicated region
    $region38: #{tpu_custom_call.1} parent=1 // pred_check
      _
    $region39: #{tpu_custom_call.1} parent=1 // pred_check_branch
      %85 = sbr.rel (0) target = $region41
    $region40: #{tpu_custom_call.1} parent=1 // pred_region
      %86 = dma.done [#allocation9], 1024
    $region41: #{tpu_custom_call.1} parent=1 // pred_fallthru
      _
    // Predicated region
    $region42: #{tpu_custom_call.1} parent=1 // pred_check
      _
    $region43: #{tpu_custom_call.1} parent=1 // pred_check_branch
      %88 = sbr.rel (0) target = $region45
    $region44: #{tpu_custom_call.1} parent=1 // pred_region
      %89 = dma.done [#allocation9], 1024
    $region45: #{tpu_custom_call.1} parent=1 // pred_fallthru
      _
    %v91 = vld [vmem:[#allocation2] sm:$0xff]
    %v92 = vld [vmem:[#allocation2 + $0x8] sm:$0xff]
    %v93 = vld [vmem:[#allocation2 + $0x10] sm:$0xff]
    %v94 = vld [vmem:[#allocation2 + $0x18] sm:$0xff]
    %v95 = vld [vmem:[#allocation2 + $0x20] sm:$0xff]
    %v96 = vld [vmem:[#allocation2 + $0x28] sm:$0xff]
    %v97 = vld [vmem:[#allocation2 + $0x30] sm:$0xff]
    %v98 = vld [vmem:[#allocation2 + $0x38] sm:$0xff]
    %v99 = vld [vmem:[#allocation2 + $0x40] sm:$0xff]
    %v100 = vld [vmem:[#allocation2 + $0x48] sm:$0xff]
    %v101 = vld [vmem:[#allocation2 + $0x50] sm:$0xff]
    %v102 = vld [vmem:[#allocation2 + $0x58] sm:$0xff]
    %v103 = vld [vmem:[#allocation2 + $0x60] sm:$0xff]
    %v104 = vld [vmem:[#allocation2 + $0x68] sm:$0xff]
    %v105 = vld [vmem:[#allocation2 + $0x70] sm:$0xff]
    %v106 = vld [vmem:[#allocation2 + $0x78] sm:$0xff]
    %v107 = vld [vmem:[#allocation2 + $0x80] sm:$0xff]
    %v108 = vld [vmem:[#allocation2 + $0x88] sm:$0xff]
    %v109 = vld [vmem:[#allocation2 + $0x90] sm:$0xff]
    %v110 = vld [vmem:[#allocation2 + $0x98] sm:$0xff]
    %v111 = vld [vmem:[#allocation2 + $0xa0] sm:$0xff]
    %v112 = vld [vmem:[#allocation2 + $0xa8] sm:$0xff]
    %v113 = vld [vmem:[#allocation2 + $0xb0] sm:$0xff]
    %v114 = vld [vmem:[#allocation2 + $0xb8] sm:$0xff]
    %v115 = vld [vmem:[#allocation2 + $0xc0] sm:$0xff]
    %v116 = vld [vmem:[#allocation2 + $0xc8] sm:$0xff]
    %v117 = vld [vmem:[#allocation2 + $0xd0] sm:$0xff]
    %v118 = vld [vmem:[#allocation2 + $0xd8] sm:$0xff]
    %v119 = vld [vmem:[#allocation2 + $0xe0] sm:$0xff]
    %v120 = vld [vmem:[#allocation2 + $0xe8] sm:$0xff]
    %v121 = vld [vmem:[#allocation2 + $0xf0] sm:$0xff]
    %v122 = vld [vmem:[#allocation2 + $0xf8] sm:$0xff]
    %v123 = vld [vmem:[#allocation2 + $0x100] sm:$0xff]
    %v124 = vld [vmem:[#allocation2 + $0x108] sm:$0xff]
    %v125 = vld [vmem:[#allocation2 + $0x110] sm:$0xff]
    %v126 = vld [vmem:[#allocation2 + $0x118] sm:$0xff]
    %v127 = vld [vmem:[#allocation2 + $0x120] sm:$0xff]
    %v128 = vld [vmem:[#allocation2 + $0x128] sm:$0xff]
    %v129 = vld [vmem:[#allocation2 + $0x130] sm:$0xff]
    %v130 = vld [vmem:[#allocation2 + $0x138] sm:$0xff]
    %v131 = vld [vmem:[#allocation2 + $0x140] sm:$0xff]
    %v132 = vld [vmem:[#allocation2 + $0x148] sm:$0xff]
    %v133 = vld [vmem:[#allocation2 + $0x150] sm:$0xff]
    %v134 = vld [vmem:[#allocation2 + $0x158] sm:$0xff]
    %v135 = vld [vmem:[#allocation2 + $0x160] sm:$0xff]
    %v136 = vld [vmem:[#allocation2 + $0x168] sm:$0xff]
    %v137 = vld [vmem:[#allocation2 + $0x170] sm:$0xff]
    %v138 = vld [vmem:[#allocation2 + $0x178] sm:$0xff]
    %v139 = vld [vmem:[#allocation2 + $0x180] sm:$0xff]
    %v140 = vld [vmem:[#allocation2 + $0x188] sm:$0xff]
    %v141 = vld [vmem:[#allocation2 + $0x190] sm:$0xff]
    %v142 = vld [vmem:[#allocation2 + $0x198] sm:$0xff]
    %v143 = vld [vmem:[#allocation2 + $0x1a0] sm:$0xff]
    %v144 = vld [vmem:[#allocation2 + $0x1a8] sm:$0xff]
    %v145 = vld [vmem:[#allocation2 + $0x1b0] sm:$0xff]
    %v146 = vld [vmem:[#allocation2 + $0x1b8] sm:$0xff]
    %v147 = vld [vmem:[#allocation2 + $0x1c0] sm:$0xff]
    %v148 = vld [vmem:[#allocation2 + $0x1c8] sm:$0xff]
    %v149 = vld [vmem:[#allocation2 + $0x1d0] sm:$0xff]
    %v150 = vld [vmem:[#allocation2 + $0x1d8] sm:$0xff]
    %v151 = vld [vmem:[#allocation2 + $0x1e0] sm:$0xff]
    %v152 = vld [vmem:[#allocation2 + $0x1e8] sm:$0xff]
    %v153 = vld [vmem:[#allocation2 + $0x1f0] sm:$0xff]
    %v154 = vld [vmem:[#allocation2 + $0x1f8] sm:$0xff]
    %v155 = vpack.c.bf16 %v92, %v91
    %v156 = vpack.c.bf16 %v94, %v93
    %v157 = vpack.c.bf16 %v96, %v95
    %v158 = vpack.c.bf16 %v98, %v97
    %v159 = vpack.c.bf16 %v100, %v99
    %v160 = vpack.c.bf16 %v102, %v101
    %v161 = vpack.c.bf16 %v104, %v103
    %v162 = vpack.c.bf16 %v106, %v105
    %v163 = vpack.c.bf16 %v108, %v107
    %v164 = vpack.c.bf16 %v110, %v109
    %v165 = vpack.c.bf16 %v112, %v111
    %v166 = vpack.c.bf16 %v114, %v113
    %v167 = vpack.c.bf16 %v116, %v115
    %v168 = vpack.c.bf16 %v118, %v117
    %v169 = vpack.c.bf16 %v120, %v119
    %v170 = vpack.c.bf16 %v122, %v121
    %v171 = vpack.c.bf16 %v124, %v123
    %v172 = vpack.c.bf16 %v126, %v125
    %v173 = vpack.c.bf16 %v128, %v127
    %v174 = vpack.c.bf16 %v130, %v129
    %v175 = vpack.c.bf16 %v132, %v131
    %v176 = vpack.c.bf16 %v134, %v133
    %v177 = vpack.c.bf16 %v136, %v135
    %v178 = vpack.c.bf16 %v138, %v137
    %v179 = vpack.c.bf16 %v140, %v139
    %v180 = vpack.c.bf16 %v142, %v141
    %v181 = vpack.c.bf16 %v144, %v143
    %v182 = vpack.c.bf16 %v146, %v145
    %v183 = vpack.c.bf16 %v148, %v147
    %v184 = vpack.c.bf16 %v150, %v149
    %v185 = vpack.c.bf16 %v152, %v151
    %v186 = vpack.c.bf16 %v154, %v153
    %v187 = vld [vmem:[#allocation7] sm:$0xf]
    %v188 = vld [vmem:[#allocation7 + $0x4] sm:$0xf]
    %v189 = vld [vmem:[#allocation7 + $0x8] sm:$0xf]
    %v190 = vld [vmem:[#allocation7 + $0xc] sm:$0xf]
    %v191 = vld [vmem:[#allocation7 + $0x10] sm:$0xf]
    %v192 = vld [vmem:[#allocation7 + $0x14] sm:$0xf]
    %v193 = vld [vmem:[#allocation7 + $0x18] sm:$0xf]
    %v194 = vld [vmem:[#allocation7 + $0x1c] sm:$0xf]
    %v195 = vld [vmem:[#allocation7 + $0x20] sm:$0xf]
    %v196 = vld [vmem:[#allocation7 + $0x24] sm:$0xf]
    %v197 = vld [vmem:[#allocation7 + $0x28] sm:$0xf]
    %v198 = vld [vmem:[#allocation7 + $0x2c] sm:$0xf]
    %v199 = vld [vmem:[#allocation7 + $0x30] sm:$0xf]
    %v200 = vld [vmem:[#allocation7 + $0x34] sm:$0xf]
    %v201 = vld [vmem:[#allocation7 + $0x38] sm:$0xf]
    %v202 = vld [vmem:[#allocation7 + $0x3c] sm:$0xf]
    %v219 = vunpack.c.l.b16 %v187
    %v220 = vunpack.c.l.b16 %v188
    %v221 = vunpack.c.l.b16 %v189
    %v222 = vunpack.c.l.b16 %v190
    %v223 = vunpack.c.l.b16 %v191
    %v224 = vunpack.c.l.b16 %v192
    %v225 = vunpack.c.l.b16 %v193
    %v226 = vunpack.c.l.b16 %v194
    %v227 = vunpack.c.l.b16 %v195
    %v228 = vunpack.c.l.b16 %v196
    %v229 = vunpack.c.l.b16 %v197
    %v230 = vunpack.c.l.b16 %v198
    %v231 = vunpack.c.l.b16 %v199
    %v232 = vunpack.c.l.b16 %v200
    %v233 = vunpack.c.l.b16 %v201
    %v234 = vunpack.c.l.b16 %v202
    %v235 = vpack.c.b16 %v220, %v219
    %v236 = vpack.c.b16 %v222, %v221
    %v237 = vpack.c.b16 %v224, %v223
    %v238 = vpack.c.b16 %v226, %v225
    %v239 = vpack.c.b16 %v228, %v227
    %v240 = vpack.c.b16 %v230, %v229
    %v241 = vpack.c.b16 %v232, %v231
    %v242 = vpack.c.b16 %v234, %v233
    %251 = vmatprep.subr.bf16.mxu0 0
    %252 = vmatpush1.bf16.msra.mxu0 %v235
    %253 = vmatprep.subr.bf16.mxu0 0
    %254 = vmatpush1.bf16.msra.mxu0 %v236
    %255 = vmatprep.subr.bf16.mxu0 0
    %256 = vmatpush1.bf16.msra.mxu0 %v237
    %257 = vmatprep.subr.bf16.mxu0 0
    %258 = vmatpush1.bf16.msra.mxu0 %v238
    %259 = vmatprep.subr.bf16.mxu0 0
    %260 = vmatpush1.bf16.msra.mxu0 %v239
    %261 = vmatprep.subr.bf16.mxu0 0
    %262 = vmatpush1.bf16.msra.mxu0 %v240
    %263 = vmatprep.subr.bf16.mxu0 0
    %264 = vmatpush1.bf16.msra.mxu0 %v241
    %265 = vmatprep.subr.bf16.mxu0 0
    %266 = vmatpush1.bf16.msra.mxu0 %v242
    %267 = vmatprep.subr.bf16.mxu0 0
    %268 = vmatpush1.bf16.msra.mxu0 0
    %269 = vmatprep.subr.bf16.mxu0 0
    %270 = vmatpush1.bf16.msra.mxu0 0
    %271 = vmatprep.subr.bf16.mxu0 0
    %272 = vmatpush1.bf16.msra.mxu0 0
    %273 = vmatprep.subr.bf16.mxu0 0
    %274 = vmatpush1.bf16.msra.mxu0 0
    %275 = vmatprep.subr.bf16.mxu0 0
    %276 = vmatpush1.bf16.msra.mxu0 0
    %277 = vmatprep.subr.bf16.mxu0 0
    %278 = vmatpush1.bf16.msra.mxu0 0
    %279 = vmatprep.subr.bf16.mxu0 0
    %280 = vmatpush1.bf16.msra.mxu0 0
    %281 = vmatprep.subr.bf16.mxu0 0
    %282 = vmatpush1.bf16.msra.mxu0 0
    %283 = vmatprep.mubr.bf16.mxu0 0
    %284 = vmatmul.mubr.bf16.gmra.mrb[0].mxu0 %v155
    %v285 = vpop.f32.mrb[0].mxu0
    %v286 = vadd.f32 0.0, %v285
    %v287 = vpop.f32.mrb[0].mxu0
    %v288 = vpop.f32.mrb[0].mxu0
    %v289 = vadd.f32 0.0, %v288
    %v290 = vpop.f32.mrb[0].mxu0
    %291 = vmatprep.mubr.bf16.mxu0 0
    %292 = vmatmul.mubr.bf16.gmra.mrb[0].mxu0 %v156
    %v293 = vpop.f32.mrb[0].mxu0
    %v294 = vadd.f32 0.0, %v293
    %v295 = vpop.f32.mrb[0].mxu0
    %v296 = vpop.f32.mrb[0].mxu0
    %v297 = vadd.f32 0.0, %v296
    %v298 = vpop.f32.mrb[0].mxu0
    %299 = vmatprep.mubr.bf16.mxu0 0
    %300 = vmatmul.mubr.bf16.gmra.mrb[0].mxu0 %v157
    %v301 = vpop.f32.mrb[0].mxu0
    %v302 = vadd.f32 0.0, %v301
    %v303 = vpop.f32.mrb[0].mxu0
    %v304 = vpop.f32.mrb[0].mxu0
    %v305 = vadd.f32 0.0, %v304
    %v306 = vpop.f32.mrb[0].mxu0
    %307 = vmatprep.mubr.bf16.mxu0 0
    %308 = vmatmul.mubr.bf16.gmra.mrb[0].mxu0 %v158
    %v309 = vpop.f32.mrb[0].mxu0
    %v310 = vadd.f32 0.0, %v309
    %v311 = vpop.f32.mrb[0].mxu0
    %v312 = vpop.f32.mrb[0].mxu0
    %v313 = vadd.f32 0.0, %v312
    %v314 = vpop.f32.mrb[0].mxu0
    %315 = vmatprep.mubr.bf16.mxu0 0
    %316 = vmatmul.mubr.bf16.gmra.mrb[0].mxu0 %v159
    %v317 = vpop.f32.mrb[0].mxu0
    %v318 = vadd.f32 0.0, %v317
    %v319 = vpop.f32.mrb[0].mxu0
    %v320 = vpop.f32.mrb[0].mxu0
    %v321 = vadd.f32 0.0, %v320
    %v322 = vpop.f32.mrb[0].mxu0
    %323 = vmatprep.mubr.bf16.mxu0 0
    %324 = vmatmul.mubr.bf16.gmra.mrb[0].mxu0 %v160
    %v325 = vpop.f32.mrb[0].mxu0
    %v326 = vadd.f32 0.0, %v325
    %v327 = vpop.f32.mrb[0].mxu0
    %v328 = vpop.f32.mrb[0].mxu0
    %v329 = vadd.f32 0.0, %v328
    %v330 = vpop.f32.mrb[0].mxu0
    %331 = vmatprep.mubr.bf16.mxu0 0
    %332 = vmatmul.mubr.bf16.gmra.mrb[0].mxu0 %v161
    %v333 = vpop.f32.mrb[0].mxu0
    %v334 = vadd.f32 0.0, %v333
    %v335 = vpop.f32.mrb[0].mxu0
    %v336 = vpop.f32.mrb[0].mxu0
    %v337 = vadd.f32 0.0, %v336
    %v338 = vpop.f32.mrb[0].mxu0
    %339 = vmatprep.mubr.bf16.mxu0 0
    %340 = vmatmul.mubr.bf16.gmra.mrb[0].mxu0 %v162
    %v341 = vpop.f32.mrb[0].mxu0
    %v342 = vadd.f32 0.0, %v341
    %v343 = vpop.f32.mrb[0].mxu0
    %v344 = vpop.f32.mrb[0].mxu0
    %v345 = vadd.f32 0.0, %v344
    %v346 = vpop.f32.mrb[0].mxu0
    %347 = vmatprep.mubr.bf16.mxu0 0
    %348 = vmatmul.mubr.bf16.gmra.mrb[0].mxu0 %v163
    %v349 = vpop.f32.mrb[0].mxu0
    %v350 = vadd.f32 0.0, %v349
    %v351 = vpop.f32.mrb[0].mxu0
    %v352 = vpop.f32.mrb[0].mxu0
    %v353 = vadd.f32 0.0, %v352
    %v354 = vpop.f32.mrb[0].mxu0
    %355 = vmatprep.mubr.bf16.mxu0 0
    %356 = vmatmul.mubr.bf16.gmra.mrb[0].mxu0 %v164
    %v357 = vpop.f32.mrb[0].mxu0
    %v358 = vadd.f32 0.0, %v357
    %v359 = vpop.f32.mrb[0].mxu0
    %v360 = vpop.f32.mrb[0].mxu0
    %v361 = vadd.f32 0.0, %v360
    %v362 = vpop.f32.mrb[0].mxu0
    %363 = vmatprep.mubr.bf16.mxu0 0
    %364 = vmatmul.mubr.bf16.gmra.mrb[0].mxu0 %v165
    %v365 = vpop.f32.mrb[0].mxu0
    %v366 = vadd.f32 0.0, %v365
    %v367 = vpop.f32.mrb[0].mxu0
    %v368 = vpop.f32.mrb[0].mxu0
    %v369 = vadd.f32 0.0, %v368
    %v370 = vpop.f32.mrb[0].mxu0
    %371 = vmatprep.mubr.bf16.mxu0 0
    %372 = vmatmul.mubr.bf16.gmra.mrb[0].mxu0 %v166
    %v373 = vpop.f32.mrb[0].mxu0
    %v374 = vadd.f32 0.0, %v373
    %v375 = vpop.f32.mrb[0].mxu0
    %v376 = vpop.f32.mrb[0].mxu0
    %v377 = vadd.f32 0.0, %v376
    %v378 = vpop.f32.mrb[0].mxu0
    %379 = vmatprep.mubr.bf16.mxu0 0
    %380 = vmatmul.mubr.bf16.gmra.mrb[0].mxu0 %v167
    %v381 = vpop.f32.mrb[0].mxu0
    %v382 = vadd.f32 0.0, %v381
    %v383 = vpop.f32.mrb[0].mxu0
    %v384 = vpop.f32.mrb[0].mxu0
    %v385 = vadd.f32 0.0, %v384
    %v386 = vpop.f32.mrb[0].mxu0
    %387 = vmatprep.mubr.bf16.mxu0 0
    %388 = vmatmul.mubr.bf16.gmra.mrb[0].mxu0 %v168
    %v389 = vpop.f32.mrb[0].mxu0
    %v390 = vadd.f32 0.0, %v389
    %v391 = vpop.f32.mrb[0].mxu0
    %v392 = vpop.f32.mrb[0].mxu0
    %v393 = vadd.f32 0.0, %v392
    %v394 = vpop.f32.mrb[0].mxu0
    %395 = vmatprep.mubr.bf16.mxu0 0
    %396 = vmatmul.mubr.bf16.gmra.mrb[0].mxu0 %v169
    %v397 = vpop.f32.mrb[0].mxu0
    %v398 = vadd.f32 0.0, %v397
    %v399 = vpop.f32.mrb[0].mxu0
    %v400 = vpop.f32.mrb[0].mxu0
    %v401 = vadd.f32 0.0, %v400
    %v402 = vpop.f32.mrb[0].mxu0
    %403 = vmatprep.mubr.bf16.mxu0 0
    %404 = vmatmul.mubr.bf16.gmra.mrb[0].mxu0 %v170
    %v405 = vpop.f32.mrb[0].mxu0
    %v406 = vadd.f32 0.0, %v405
    %v407 = vpop.f32.mrb[0].mxu0
    %v408 = vpop.f32.mrb[0].mxu0
    %v409 = vadd.f32 0.0, %v408
    %v410 = vpop.f32.mrb[0].mxu0
    %411 = vmatprep.mubr.bf16.mxu0 0
    %412 = vmatmul.mubr.bf16.gmra.mrb[0].mxu0 %v171
    %v413 = vpop.f32.mrb[0].mxu0
    %v414 = vadd.f32 0.0, %v413
    %v415 = vpop.f32.mrb[0].mxu0
    %v416 = vpop.f32.mrb[0].mxu0
    %v417 = vadd.f32 0.0, %v416
    %v418 = vpop.f32.mrb[0].mxu0
    %419 = vmatprep.mubr.bf16.mxu0 0
    %420 = vmatmul.mubr.bf16.gmra.mrb[0].mxu0 %v172
    %v421 = vpop.f32.mrb[0].mxu0
    %v422 = vadd.f32 0.0, %v421
    %v423 = vpop.f32.mrb[0].mxu0
    %v424 = vpop.f32.mrb[0].mxu0
    %v425 = vadd.f32 0.0, %v424
    %v426 = vpop.f32.mrb[0].mxu0
    %427 = vmatprep.mubr.bf16.mxu0 0
    %428 = vmatmul.mubr.bf16.gmra.mrb[0].mxu0 %v173
    %v429 = vpop.f32.mrb[0].mxu0
    %v430 = vadd.f32 0.0, %v429
    %v431 = vpop.f32.mrb[0].mxu0
    %v432 = vpop.f32.mrb[0].mxu0
    %v433 = vadd.f32 0.0, %v432
    %v434 = vpop.f32.mrb[0].mxu0
    %435 = vmatprep.mubr.bf16.mxu0 0
    %436 = vmatmul.mubr.bf16.gmra.mrb[0].mxu0 %v174
    %v437 = vpop.f32.mrb[0].mxu0
    %v438 = vadd.f32 0.0, %v437
    %v439 = vpop.f32.mrb[0].mxu0
    %v440 = vpop.f32.mrb[0].mxu0
    %v441 = vadd.f32 0.0, %v440
    %v442 = vpop.f32.mrb[0].mxu0
    %443 = vmatprep.mubr.bf16.mxu0 0
    %444 = vmatmul.mubr.bf16.gmra.mrb[0].mxu0 %v175
    %v445 = vpop.f32.mrb[0].mxu0
    %v446 = vadd.f32 0.0, %v445
    %v447 = vpop.f32.mrb[0].mxu0
    %v448 = vpop.f32.mrb[0].mxu0
    %v449 = vadd.f32 0.0, %v448
    %v450 = vpop.f32.mrb[0].mxu0
    %451 = vmatprep.mubr.bf16.mxu0 0
    %452 = vmatmul.mubr.bf16.gmra.mrb[0].mxu0 %v176
    %v453 = vpop.f32.mrb[0].mxu0
    %v454 = vadd.f32 0.0, %v453
    %v455 = vpop.f32.mrb[0].mxu0
    %v456 = vpop.f32.mrb[0].mxu0
    %v457 = vadd.f32 0.0, %v456
    %v458 = vpop.f32.mrb[0].mxu0
    %459 = vmatprep.mubr.bf16.mxu0 0
    %460 = vmatmul.mubr.bf16.gmra.mrb[0].mxu0 %v177
    %v461 = vpop.f32.mrb[0].mxu0
    %v462 = vadd.f32 0.0, %v461
    %v463 = vpop.f32.mrb[0].mxu0
    %v464 = vpop.f32.mrb[0].mxu0
    %v465 = vadd.f32 0.0, %v464
    %v466 = vpop.f32.mrb[0].mxu0
    %467 = vmatprep.mubr.bf16.mxu0 0
    %468 = vmatmul.mubr.bf16.gmra.mrb[0].mxu0 %v178
    %v469 = vpop.f32.mrb[0].mxu0
    %v470 = vadd.f32 0.0, %v469
    %v471 = vpop.f32.mrb[0].mxu0
    %v472 = vpop.f32.mrb[0].mxu0
    %v473 = vadd.f32 0.0, %v472
    %v474 = vpop.f32.mrb[0].mxu0
    %475 = vmatprep.mubr.bf16.mxu0 0
    %476 = vmatmul.mubr.bf16.gmra.mrb[0].mxu0 %v179
    %v477 = vpop.f32.mrb[0].mxu0
    %v478 = vadd.f32 0.0, %v477
    %v479 = vpop.f32.mrb[0].mxu0
    %v480 = vpop.f32.mrb[0].mxu0
    %v481 = vadd.f32 0.0, %v480
    %v482 = vpop.f32.mrb[0].mxu0
    %483 = vmatprep.mubr.bf16.mxu0 0
    %484 = vmatmul.mubr.bf16.gmra.mrb[0].mxu0 %v180
    %v485 = vpop.f32.mrb[0].mxu0
    %v486 = vadd.f32 0.0, %v485
    %v487 = vpop.f32.mrb[0].mxu0
    %v488 = vpop.f32.mrb[0].mxu0
    %v489 = vadd.f32 0.0, %v488
    %v490 = vpop.f32.mrb[0].mxu0
    %491 = vmatprep.mubr.bf16.mxu0 0
    %492 = vmatmul.mubr.bf16.gmra.mrb[0].mxu0 %v181
    %v493 = vpop.f32.mrb[0].mxu0
    %v494 = vadd.f32 0.0, %v493
    %v495 = vpop.f32.mrb[0].mxu0
    %v496 = vpop.f32.mrb[0].mxu0
    %v497 = vadd.f32 0.0, %v496
    %v498 = vpop.f32.mrb[0].mxu0
    %499 = vmatprep.mubr.bf16.mxu0 0
    %500 = vmatmul.mubr.bf16.gmra.mrb[0].mxu0 %v182
    %v501 = vpop.f32.mrb[0].mxu0
    %v502 = vadd.f32 0.0, %v501
    %v503 = vpop.f32.mrb[0].mxu0
    %v504 = vpop.f32.mrb[0].mxu0
    %v505 = vadd.f32 0.0, %v504
    %v506 = vpop.f32.mrb[0].mxu0
    %507 = vmatprep.mubr.bf16.mxu0 0
    %508 = vmatmul.mubr.bf16.gmra.mrb[0].mxu0 %v183
    %v509 = vpop.f32.mrb[0].mxu0
    %v510 = vadd.f32 0.0, %v509
    %v511 = vpop.f32.mrb[0].mxu0
    %v512 = vpop.f32.mrb[0].mxu0
    %v513 = vadd.f32 0.0, %v512
    %v514 = vpop.f32.mrb[0].mxu0
    %515 = vmatprep.mubr.bf16.mxu0 0
    %516 = vmatmul.mubr.bf16.gmra.mrb[0].mxu0 %v184
    %v517 = vpop.f32.mrb[0].mxu0
    %v518 = vadd.f32 0.0, %v517
    %v519 = vpop.f32.mrb[0].mxu0
    %v520 = vpop.f32.mrb[0].mxu0
    %v521 = vadd.f32 0.0, %v520
    %v522 = vpop.f32.mrb[0].mxu0
    %523 = vmatprep.mubr.bf16.mxu0 0
    %524 = vmatmul.mubr.bf16.gmra.mrb[0].mxu0 %v185
    %v525 = vpop.f32.mrb[0].mxu0
    %v526 = vadd.f32 0.0, %v525
    %v527 = vpop.f32.mrb[0].mxu0
    %v528 = vpop.f32.mrb[0].mxu0
    %v529 = vadd.f32 0.0, %v528
    %v530 = vpop.f32.mrb[0].mxu0
    %531 = vmatprep.mubr.bf16.mxu0 0
    %532 = vmatmul.mubr.bf16.gmra.mrb[0].mxu0 %v186
    %v533 = vpop.f32.mrb[0].mxu0
    %v534 = vadd.f32 0.0, %v533
    %v535 = vpop.f32.mrb[0].mxu0
    %v536 = vpop.f32.mrb[0].mxu0
    %v537 = vadd.f32 0.0, %v536
    %v538 = vpop.f32.mrb[0].mxu0
    %539 = vdwg.mxu0
    %v540 = vpack.c.bf16 %v289, %v286
    %v541 = vpack.c.bf16 %v297, %v294
    %v542 = vpack.c.bf16 %v305, %v302
    %v543 = vpack.c.bf16 %v313, %v310
    %v544 = vpack.c.bf16 %v321, %v318
    %v545 = vpack.c.bf16 %v329, %v326
    %v546 = vpack.c.bf16 %v337, %v334
    %v547 = vpack.c.bf16 %v345, %v342
    %v548 = vpack.c.bf16 %v353, %v350
    %v549 = vpack.c.bf16 %v361, %v358
    %v550 = vpack.c.bf16 %v369, %v366
    %v551 = vpack.c.bf16 %v377, %v374
    %v552 = vpack.c.bf16 %v385, %v382
    %v553 = vpack.c.bf16 %v393, %v390
    %v554 = vpack.c.bf16 %v401, %v398
    %v555 = vpack.c.bf16 %v409, %v406
    %v556 = vpack.c.bf16 %v417, %v414
    %v557 = vpack.c.bf16 %v425, %v422
    %v558 = vpack.c.bf16 %v433, %v430
    %v559 = vpack.c.bf16 %v441, %v438
    %v560 = vpack.c.bf16 %v449, %v446
    %v561 = vpack.c.bf16 %v457, %v454
    %v562 = vpack.c.bf16 %v465, %v462
    %v563 = vpack.c.bf16 %v473, %v470
    %v564 = vpack.c.bf16 %v481, %v478
    %v565 = vpack.c.bf16 %v489, %v486
    %v566 = vpack.c.bf16 %v497, %v494
    %v567 = vpack.c.bf16 %v505, %v502
    %v568 = vpack.c.bf16 %v513, %v510
    %v569 = vpack.c.bf16 %v521, %v518
    %v570 = vpack.c.bf16 %v529, %v526
    %v571 = vpack.c.bf16 %v537, %v534
    %v572 = vld [vmem:[#allocation8] sm:$0xf]
    %v573 = vld [vmem:[#allocation8 + $0x4] sm:$0xf]
    %v574 = vld [vmem:[#allocation8 + $0x8] sm:$0xf]
    %v575 = vld [vmem:[#allocation8 + $0xc] sm:$0xf]
    %v576 = vld [vmem:[#allocation8 + $0x10] sm:$0xf]
    %v577 = vld [vmem:[#allocation8 + $0x14] sm:$0xf]
    %v578 = vld [vmem:[#allocation8 + $0x18] sm:$0xf]
    %v579 = vld [vmem:[#allocation8 + $0x1c] sm:$0xf]
    %v580 = vld [vmem:[#allocation8 + $0x20] sm:$0xf]
    %v581 = vld [vmem:[#allocation8 + $0x24] sm:$0xf]
    %v582 = vld [vmem:[#allocation8 + $0x28] sm:$0xf]
    %v583 = vld [vmem:[#allocation8 + $0x2c] sm:$0xf]
    %v584 = vld [vmem:[#allocation8 + $0x30] sm:$0xf]
    %v585 = vld [vmem:[#allocation8 + $0x34] sm:$0xf]
    %v586 = vld [vmem:[#allocation8 + $0x38] sm:$0xf]
    %v587 = vld [vmem:[#allocation8 + $0x3c] sm:$0xf]
    %v604 = vunpack.c.l.b16 %v572
    %v605 = vunpack.c.l.b16 %v573
    %v606 = vunpack.c.l.b16 %v574
    %v607 = vunpack.c.l.b16 %v575
    %v608 = vunpack.c.l.b16 %v576
    %v609 = vunpack.c.l.b16 %v577
    %v610 = vunpack.c.l.b16 %v578
    %v611 = vunpack.c.l.b16 %v579
    %v612 = vunpack.c.l.b16 %v580
    %v613 = vunpack.c.l.b16 %v581
    %v614 = vunpack.c.l.b16 %v582
    %v615 = vunpack.c.l.b16 %v583
    %v616 = vunpack.c.l.b16 %v584
    %v617 = vunpack.c.l.b16 %v585
    %v618 = vunpack.c.l.b16 %v586
    %v619 = vunpack.c.l.b16 %v587
    %v620 = vpack.c.b16 %v605, %v604
    %v621 = vpack.c.b16 %v607, %v606
    %v622 = vpack.c.b16 %v609, %v608
    %v623 = vpack.c.b16 %v611, %v610
    %v624 = vpack.c.b16 %v613, %v612
    %v625 = vpack.c.b16 %v615, %v614
    %v626 = vpack.c.b16 %v617, %v616
    %v627 = vpack.c.b16 %v619, %v618
    %636 = vmatprep.subr.bf16.mxu0 0
    %637 = vmatpush1.bf16.msra.mxu0 %v620
    %638 = vmatprep.subr.bf16.mxu0 0
    %639 = vmatpush1.bf16.msra.mxu0 %v621
    %640 = vmatprep.subr.bf16.mxu0 0
    %641 = vmatpush1.bf16.msra.mxu0 %v622
    %642 = vmatprep.subr.bf16.mxu0 0
    %643 = vmatpush1.bf16.msra.mxu0 %v623
    %644 = vmatprep.subr.bf16.mxu0 0
    %645 = vmatpush1.bf16.msra.mxu0 %v624
    %646 = vmatprep.subr.bf16.mxu0 0
    %647 = vmatpush1.bf16.msra.mxu0 %v625
    %648 = vmatprep.subr.bf16.mxu0 0
    %649 = vmatpush1.bf16.msra.mxu0 %v626
    %650 = vmatprep.subr.bf16.mxu0 0
    %651 = vmatpush1.bf16.msra.mxu0 %v627
    %652 = vmatprep.subr.bf16.mxu0 0
    %653 = vmatpush1.bf16.msra.mxu0 0
    %654 = vmatprep.subr.bf16.mxu0 0
    %655 = vmatpush1.bf16.msra.mxu0 0
    %656 = vmatprep.subr.bf16.mxu0 0
    %657 = vmatpush1.bf16.msra.mxu0 0
    %658 = vmatprep.subr.bf16.mxu0 0
    %659 = vmatpush1.bf16.msra.mxu0 0
    %660 = vmatprep.subr.bf16.mxu0 0
    %661 = vmatpush1.bf16.msra.mxu0 0
    %662 = vmatprep.subr.bf16.mxu0 0
    %663 = vmatpush1.bf16.msra.mxu0 0
    %664 = vmatprep.subr.bf16.mxu0 0
    %665 = vmatpush1.bf16.msra.mxu0 0
    %666 = vmatprep.subr.bf16.mxu0 0
    %667 = vmatpush1.bf16.msra.mxu0 0
    %668 = vmatprep.mubr.bf16.mxu0 0
    %669 = vmatmul.mubr.bf16.gmra.mrb[0].mxu0 %v155
    %v670 = vpop.f32.mrb[0].mxu0
    %v671 = vadd.f32 0.0, %v670
    %v672 = vpop.f32.mrb[0].mxu0
    %v673 = vpop.f32.mrb[0].mxu0
    %v674 = vadd.f32 0.0, %v673
    %v675 = vpop.f32.mrb[0].mxu0
    %676 = vmatprep.mubr.bf16.mxu0 0
    %677 = vmatmul.mubr.bf16.gmra.mrb[0].mxu0 %v156
    %v678 = vpop.f32.mrb[0].mxu0
    %v679 = vadd.f32 0.0, %v678
    %v680 = vpop.f32.mrb[0].mxu0
    %v681 = vpop.f32.mrb[0].mxu0
    %v682 = vadd.f32 0.0, %v681
    %v683 = vpop.f32.mrb[0].mxu0
    %684 = vmatprep.mubr.bf16.mxu0 0
    %685 = vmatmul.mubr.bf16.gmra.mrb[0].mxu0 %v157
    %v686 = vpop.f32.mrb[0].mxu0
    %v687 = vadd.f32 0.0, %v686
    %v688 = vpop.f32.mrb[0].mxu0
    %v689 = vpop.f32.mrb[0].mxu0
    %v690 = vadd.f32 0.0, %v689
    %v691 = vpop.f32.mrb[0].mxu0
    %692 = vmatprep.mubr.bf16.mxu0 0
    %693 = vmatmul.mubr.bf16.gmra.mrb[0].mxu0 %v158
    %v694 = vpop.f32.mrb[0].mxu0
    %v695 = vadd.f32 0.0, %v694
    %v696 = vpop.f32.mrb[0].mxu0
    %v697 = vpop.f32.mrb[0].mxu0
    %v698 = vadd.f32 0.0, %v697
    %v699 = vpop.f32.mrb[0].mxu0
    %700 = vmatprep.mubr.bf16.mxu0 0
    %701 = vmatmul.mubr.bf16.gmra.mrb[0].mxu0 %v159
    %v702 = vpop.f32.mrb[0].mxu0
    %v703 = vadd.f32 0.0, %v702
    %v704 = vpop.f32.mrb[0].mxu0
    %v705 = vpop.f32.mrb[0].mxu0
    %v706 = vadd.f32 0.0, %v705
    %v707 = vpop.f32.mrb[0].mxu0
    %708 = vmatprep.mubr.bf16.mxu0 0
    %709 = vmatmul.mubr.bf16.gmra.mrb[0].mxu0 %v160
    %v710 = vpop.f32.mrb[0].mxu0
    %v711 = vadd.f32 0.0, %v710
    %v712 = vpop.f32.mrb[0].mxu0
    %v713 = vpop.f32.mrb[0].mxu0
    %v714 = vadd.f32 0.0, %v713
    %v715 = vpop.f32.mrb[0].mxu0
    %716 = vmatprep.mubr.bf16.mxu0 0
    %717 = vmatmul.mubr.bf16.gmra.mrb[0].mxu0 %v161
    %v718 = vpop.f32.mrb[0].mxu0
    %v719 = vadd.f32 0.0, %v718
    %v720 = vpop.f32.mrb[0].mxu0
    %v721 = vpop.f32.mrb[0].mxu0
    %v722 = vadd.f32 0.0, %v721
    %v723 = vpop.f32.mrb[0].mxu0
    %724 = vmatprep.mubr.bf16.mxu0 0
    %725 = vmatmul.mubr.bf16.gmra.mrb[0].mxu0 %v162
    %v726 = vpop.f32.mrb[0].mxu0
    %v727 = vadd.f32 0.0, %v726
    %v728 = vpop.f32.mrb[0].mxu0
    %v729 = vpop.f32.mrb[0].mxu0
    %v730 = vadd.f32 0.0, %v729
    %v731 = vpop.f32.mrb[0].mxu0
    %732 = vmatprep.mubr.bf16.mxu0 0
    %733 = vmatmul.mubr.bf16.gmra.mrb[0].mxu0 %v163
    %v734 = vpop.f32.mrb[0].mxu0
    %v735 = vadd.f32 0.0, %v734
    %v736 = vpop.f32.mrb[0].mxu0
    %v737 = vpop.f32.mrb[0].mxu0
    %v738 = vadd.f32 0.0, %v737
    %v739 = vpop.f32.mrb[0].mxu0
    %740 = vmatprep.mubr.bf16.mxu0 0
    %741 = vmatmul.mubr.bf16.gmra.mrb[0].mxu0 %v164
    %v742 = vpop.f32.mrb[0].mxu0
    %v743 = vadd.f32 0.0, %v742
    %v744 = vpop.f32.mrb[0].mxu0
    %v745 = vpop.f32.mrb[0].mxu0
    %v746 = vadd.f32 0.0, %v745
    %v747 = vpop.f32.mrb[0].mxu0
    %748 = vmatprep.mubr.bf16.mxu0 0
    %749 = vmatmul.mubr.bf16.gmra.mrb[0].mxu0 %v165
    %v750 = vpop.f32.mrb[0].mxu0
    %v751 = vadd.f32 0.0, %v750
    %v752 = vpop.f32.mrb[0].mxu0
    %v753 = vpop.f32.mrb[0].mxu0
    %v754 = vadd.f32 0.0, %v753
    %v755 = vpop.f32.mrb[0].mxu0
    %756 = vmatprep.mubr.bf16.mxu0 0
    %757 = vmatmul.mubr.bf16.gmra.mrb[0].mxu0 %v166
    %v758 = vpop.f32.mrb[0].mxu0
    %v759 = vadd.f32 0.0, %v758
    %v760 = vpop.f32.mrb[0].mxu0
    %v761 = vpop.f32.mrb[0].mxu0
    %v762 = vadd.f32 0.0, %v761
    %v763 = vpop.f32.mrb[0].mxu0
    %764 = vmatprep.mubr.bf16.mxu0 0
    %765 = vmatmul.mubr.bf16.gmra.mrb[0].mxu0 %v167
    %v766 = vpop.f32.mrb[0].mxu0
    %v767 = vadd.f32 0.0, %v766
    %v768 = vpop.f32.mrb[0].mxu0
    %v769 = vpop.f32.mrb[0].mxu0
    %v770 = vadd.f32 0.0, %v769
    %v771 = vpop.f32.mrb[0].mxu0
    %772 = vmatprep.mubr.bf16.mxu0 0
    %773 = vmatmul.mubr.bf16.gmra.mrb[0].mxu0 %v168
    %v774 = vpop.f32.mrb[0].mxu0
    %v775 = vadd.f32 0.0, %v774
    %v776 = vpop.f32.mrb[0].mxu0
    %v777 = vpop.f32.mrb[0].mxu0
    %v778 = vadd.f32 0.0, %v777
    %v779 = vpop.f32.mrb[0].mxu0
    %780 = vmatprep.mubr.bf16.mxu0 0
    %781 = vmatmul.mubr.bf16.gmra.mrb[0].mxu0 %v169
    %v782 = vpop.f32.mrb[0].mxu0
    %v783 = vadd.f32 0.0, %v782
    %v784 = vpop.f32.mrb[0].mxu0
    %v785 = vpop.f32.mrb[0].mxu0
    %v786 = vadd.f32 0.0, %v785
    %v787 = vpop.f32.mrb[0].mxu0
    %788 = vmatprep.mubr.bf16.mxu0 0
    %789 = vmatmul.mubr.bf16.gmra.mrb[0].mxu0 %v170
    %v790 = vpop.f32.mrb[0].mxu0
    %v791 = vadd.f32 0.0, %v790
    %v792 = vpop.f32.mrb[0].mxu0
    %v793 = vpop.f32.mrb[0].mxu0
    %v794 = vadd.f32 0.0, %v793
    %v795 = vpop.f32.mrb[0].mxu0
    %796 = vmatprep.mubr.bf16.mxu0 0
    %797 = vmatmul.mubr.bf16.gmra.mrb[0].mxu0 %v171
    %v798 = vpop.f32.mrb[0].mxu0
    %v799 = vadd.f32 0.0, %v798
    %v800 = vpop.f32.mrb[0].mxu0
    %v801 = vpop.f32.mrb[0].mxu0
    %v802 = vadd.f32 0.0, %v801
    %v803 = vpop.f32.mrb[0].mxu0
    %804 = vmatprep.mubr.bf16.mxu0 0
    %805 = vmatmul.mubr.bf16.gmra.mrb[0].mxu0 %v172
    %v806 = vpop.f32.mrb[0].mxu0
    %v807 = vadd.f32 0.0, %v806
    %v808 = vpop.f32.mrb[0].mxu0
    %v809 = vpop.f32.mrb[0].mxu0
    %v810 = vadd.f32 0.0, %v809
    %v811 = vpop.f32.mrb[0].mxu0
    %812 = vmatprep.mubr.bf16.mxu0 0
    %813 = vmatmul.mubr.bf16.gmra.mrb[0].mxu0 %v173
    %v814 = vpop.f32.mrb[0].mxu0
    %v815 = vadd.f32 0.0, %v814
    %v816 = vpop.f32.mrb[0].mxu0
    %v817 = vpop.f32.mrb[0].mxu0
    %v818 = vadd.f32 0.0, %v817
    %v819 = vpop.f32.mrb[0].mxu0
    %820 = vmatprep.mubr.bf16.mxu0 0
    %821 = vmatmul.mubr.bf16.gmra.mrb[0].mxu0 %v174
    %v822 = vpop.f32.mrb[0].mxu0
    %v823 = vadd.f32 0.0, %v822
    %v824 = vpop.f32.mrb[0].mxu0
    %v825 = vpop.f32.mrb[0].mxu0
    %v826 = vadd.f32 0.0, %v825
    %v827 = vpop.f32.mrb[0].mxu0
    %828 = vmatprep.mubr.bf16.mxu0 0
    %829 = vmatmul.mubr.bf16.gmra.mrb[0].mxu0 %v175
    %v830 = vpop.f32.mrb[0].mxu0
    %v831 = vadd.f32 0.0, %v830
    %v832 = vpop.f32.mrb[0].mxu0
    %v833 = vpop.f32.mrb[0].mxu0
    %v834 = vadd.f32 0.0, %v833
    %v835 = vpop.f32.mrb[0].mxu0
    %836 = vmatprep.mubr.bf16.mxu0 0
    %837 = vmatmul.mubr.bf16.gmra.mrb[0].mxu0 %v176
    %v838 = vpop.f32.mrb[0].mxu0
    %v839 = vadd.f32 0.0, %v838
    %v840 = vpop.f32.mrb[0].mxu0
    %v841 = vpop.f32.mrb[0].mxu0
    %v842 = vadd.f32 0.0, %v841
    %v843 = vpop.f32.mrb[0].mxu0
    %844 = vmatprep.mubr.bf16.mxu0 0
    %845 = vmatmul.mubr.bf16.gmra.mrb[0].mxu0 %v177
    %v846 = vpop.f32.mrb[0].mxu0
    %v847 = vadd.f32 0.0, %v846
    %v848 = vpop.f32.mrb[0].mxu0
    %v849 = vpop.f32.mrb[0].mxu0
    %v850 = vadd.f32 0.0, %v849
    %v851 = vpop.f32.mrb[0].mxu0
    %852 = vmatprep.mubr.bf16.mxu0 0
    %853 = vmatmul.mubr.bf16.gmra.mrb[0].mxu0 %v178
    %v854 = vpop.f32.mrb[0].mxu0
    %v855 = vadd.f32 0.0, %v854
    %v856 = vpop.f32.mrb[0].mxu0
    %v857 = vpop.f32.mrb[0].mxu0
    %v858 = vadd.f32 0.0, %v857
    %v859 = vpop.f32.mrb[0].mxu0
    %860 = vmatprep.mubr.bf16.mxu0 0
    %861 = vmatmul.mubr.bf16.gmra.mrb[0].mxu0 %v179
    %v862 = vpop.f32.mrb[0].mxu0
    %v863 = vadd.f32 0.0, %v862
    %v864 = vpop.f32.mrb[0].mxu0
    %v865 = vpop.f32.mrb[0].mxu0
    %v866 = vadd.f32 0.0, %v865
    %v867 = vpop.f32.mrb[0].mxu0
    %868 = vmatprep.mubr.bf16.mxu0 0
    %869 = vmatmul.mubr.bf16.gmra.mrb[0].mxu0 %v180
    %v870 = vpop.f32.mrb[0].mxu0
    %v871 = vadd.f32 0.0, %v870
    %v872 = vpop.f32.mrb[0].mxu0
    %v873 = vpop.f32.mrb[0].mxu0
    %v874 = vadd.f32 0.0, %v873
    %v875 = vpop.f32.mrb[0].mxu0
    %876 = vmatprep.mubr.bf16.mxu0 0
    %877 = vmatmul.mubr.bf16.gmra.mrb[0].mxu0 %v181
    %v878 = vpop.f32.mrb[0].mxu0
    %v879 = vadd.f32 0.0, %v878
    %v880 = vpop.f32.mrb[0].mxu0
    %v881 = vpop.f32.mrb[0].mxu0
    %v882 = vadd.f32 0.0, %v881
    %v883 = vpop.f32.mrb[0].mxu0
    %884 = vmatprep.mubr.bf16.mxu0 0
    %885 = vmatmul.mubr.bf16.gmra.mrb[0].mxu0 %v182
    %v886 = vpop.f32.mrb[0].mxu0
    %v887 = vadd.f32 0.0, %v886
    %v888 = vpop.f32.mrb[0].mxu0
    %v889 = vpop.f32.mrb[0].mxu0
    %v890 = vadd.f32 0.0, %v889
    %v891 = vpop.f32.mrb[0].mxu0
    %892 = vmatprep.mubr.bf16.mxu0 0
    %893 = vmatmul.mubr.bf16.gmra.mrb[0].mxu0 %v183
    %v894 = vpop.f32.mrb[0].mxu0
    %v895 = vadd.f32 0.0, %v894
    %v896 = vpop.f32.mrb[0].mxu0
    %v897 = vpop.f32.mrb[0].mxu0
    %v898 = vadd.f32 0.0, %v897
    %v899 = vpop.f32.mrb[0].mxu0
    %900 = vmatprep.mubr.bf16.mxu0 0
    %901 = vmatmul.mubr.bf16.gmra.mrb[0].mxu0 %v184
    %v902 = vpop.f32.mrb[0].mxu0
    %v903 = vadd.f32 0.0, %v902
    %v904 = vpop.f32.mrb[0].mxu0
    %v905 = vpop.f32.mrb[0].mxu0
    %v906 = vadd.f32 0.0, %v905
    %v907 = vpop.f32.mrb[0].mxu0
    %908 = vmatprep.mubr.bf16.mxu0 0
    %909 = vmatmul.mubr.bf16.gmra.mrb[0].mxu0 %v185
    %v910 = vpop.f32.mrb[0].mxu0
    %v911 = vadd.f32 0.0, %v910
    %v912 = vpop.f32.mrb[0].mxu0
    %v913 = vpop.f32.mrb[0].mxu0
    %v914 = vadd.f32 0.0, %v913
    %v915 = vpop.f32.mrb[0].mxu0
    %916 = vmatprep.mubr.bf16.mxu0 0
    %917 = vmatmul.mubr.bf16.gmra.mrb[0].mxu0 %v186
    %v918 = vpop.f32.mrb[0].mxu0
    %v919 = vadd.f32 0.0, %v918
    %v920 = vpop.f32.mrb[0].mxu0
    %v921 = vpop.f32.mrb[0].mxu0
    %v922 = vadd.f32 0.0, %v921
    %v923 = vpop.f32.mrb[0].mxu0
    %924 = vdwg.mxu0
    %v925 = vpack.c.bf16 %v674, %v671
    %v926 = vpack.c.bf16 %v682, %v679
    %v927 = vpack.c.bf16 %v690, %v687
    %v928 = vpack.c.bf16 %v698, %v695
    %v929 = vpack.c.bf16 %v706, %v703
    %v930 = vpack.c.bf16 %v714, %v711
    %v931 = vpack.c.bf16 %v722, %v719
    %v932 = vpack.c.bf16 %v730, %v727
    %v933 = vpack.c.bf16 %v738, %v735
    %v934 = vpack.c.bf16 %v746, %v743
    %v935 = vpack.c.bf16 %v754, %v751
    %v936 = vpack.c.bf16 %v762, %v759
    %v937 = vpack.c.bf16 %v770, %v767
    %v938 = vpack.c.bf16 %v778, %v775
    %v939 = vpack.c.bf16 %v786, %v783
    %v940 = vpack.c.bf16 %v794, %v791
    %v941 = vpack.c.bf16 %v802, %v799
    %v942 = vpack.c.bf16 %v810, %v807
    %v943 = vpack.c.bf16 %v818, %v815
    %v944 = vpack.c.bf16 %v826, %v823
    %v945 = vpack.c.bf16 %v834, %v831
    %v946 = vpack.c.bf16 %v842, %v839
    %v947 = vpack.c.bf16 %v850, %v847
    %v948 = vpack.c.bf16 %v858, %v855
    %v949 = vpack.c.bf16 %v866, %v863
    %v950 = vpack.c.bf16 %v874, %v871
    %v951 = vpack.c.bf16 %v882, %v879
    %v952 = vpack.c.bf16 %v890, %v887
    %v953 = vpack.c.bf16 %v898, %v895
    %v954 = vpack.c.bf16 %v906, %v903
    %v955 = vpack.c.bf16 %v914, %v911
    %v956 = vpack.c.bf16 %v922, %v919
    %v957 = vld [vmem:[#allocation5] sm:$0xf]
    %v958 = vld [vmem:[%s5] sm:$0x1]
    %v960 = vlaneseq
    %v961 = vshrl.u32 %v960, 7
    %v962 = vsub.s32 0, %v961
    %v963 = vrot.slane %v958, %v962
    %vm965 = vcmask 261120
    %v967 = vsel %vm965, %v957, 0
    %v970 = vsel %vm965, %v540, 0
    %v973 = vsel %vm965, %v541, 0
    %v976 = vsel %vm965, %v542, 0
    %v979 = vsel %vm965, %v543, 0
    %v982 = vsel %vm965, %v544, 0
    %v985 = vsel %vm965, %v545, 0
    %v988 = vsel %vm965, %v546, 0
    %v991 = vsel %vm965, %v547, 0
    %993 = vmatprep.subr.bf16.mxu0 0
    %994 = vmatpush1.bf16.xpose.msra.mxu0 %v970
    %995 = vmatprep.subr.bf16.mxu0 0
    %996 = vmatpush1.bf16.xpose.msra.mxu0 %v973
    %997 = vmatprep.subr.bf16.mxu0 0
    %998 = vmatpush1.bf16.xpose.msra.mxu0 %v976
    %999 = vmatprep.subr.bf16.mxu0 0
    %1000 = vmatpush1.bf16.xpose.msra.mxu0 %v979
    %1001 = vmatprep.subr.bf16.mxu0 0
    %1002 = vmatpush1.bf16.xpose.msra.mxu0 %v982
    %1003 = vmatprep.subr.bf16.mxu0 0
    %1004 = vmatpush1.bf16.xpose.msra.mxu0 %v985
    %1005 = vmatprep.subr.bf16.mxu0 0
    %1006 = vmatpush1.bf16.xpose.msra.mxu0 %v988
    %1007 = vmatprep.subr.bf16.mxu0 0
    %1008 = vmatpush1.bf16.xpose.msra.mxu0 %v991
    %1009 = vmatprep.subr.bf16.mxu0 0
    %1010 = vmatpush1.bf16.xpose.msra.mxu0 0
    %1011 = vmatprep.subr.bf16.mxu0 0
    %1012 = vmatpush1.bf16.xpose.msra.mxu0 0
    %1013 = vmatprep.subr.bf16.mxu0 0
    %1014 = vmatpush1.bf16.xpose.msra.mxu0 0
    %1015 = vmatprep.subr.bf16.mxu0 0
    %1016 = vmatpush1.bf16.xpose.msra.mxu0 0
    %1017 = vmatprep.subr.bf16.mxu0 0
    %1018 = vmatpush1.bf16.xpose.msra.mxu0 0
    %1019 = vmatprep.subr.bf16.mxu0 0
    %1020 = vmatpush1.bf16.xpose.msra.mxu0 0
    %1021 = vmatprep.subr.bf16.mxu0 0
    %1022 = vmatpush1.bf16.xpose.msra.mxu0 0
    %1023 = vmatprep.subr.bf16.mxu0 0
    %1024 = vmatpush1.bf16.xpose.msra.mxu0 0
    %1025 = vmatprep.mubr.bf16.mxu0 0
    %1026 = vmatmul.mubr.bf16.gmra.mrb[0].mxu0 %v967
    %v1027 = vpop.f32.mrb[0].mxu0
    %v1028 = vadd.f32 0.0, %v1027
    %v1029 = vpop.f32.mrb[0].mxu0
    %v1030 = vpop.f32.mrb[0].mxu0
    %v1031 = vpop.f32.mrb[0].mxu0
    %1032 = vdwg.mxu0
    %v1034 = vsel %vm965, %v548, 0
    %v1037 = vsel %vm965, %v549, 0
    %v1040 = vsel %vm965, %v550, 0
    %v1043 = vsel %vm965, %v551, 0
    %v1046 = vsel %vm965, %v552, 0
    %v1049 = vsel %vm965, %v553, 0
    %v1052 = vsel %vm965, %v554, 0
    %v1055 = vsel %vm965, %v555, 0
    %1057 = vmatprep.subr.bf16.mxu0 0
    %1058 = vmatpush1.bf16.xpose.msra.mxu0 %v1034
    %1059 = vmatprep.subr.bf16.mxu0 0
    %1060 = vmatpush1.bf16.xpose.msra.mxu0 %v1037
    %1061 = vmatprep.subr.bf16.mxu0 0
    %1062 = vmatpush1.bf16.xpose.msra.mxu0 %v1040
    %1063 = vmatprep.subr.bf16.mxu0 0
    %1064 = vmatpush1.bf16.xpose.msra.mxu0 %v1043
    %1065 = vmatprep.subr.bf16.mxu0 0
    %1066 = vmatpush1.bf16.xpose.msra.mxu0 %v1046
    %1067 = vmatprep.subr.bf16.mxu0 0
    %1068 = vmatpush1.bf16.xpose.msra.mxu0 %v1049
    %1069 = vmatprep.subr.bf16.mxu0 0
    %1070 = vmatpush1.bf16.xpose.msra.mxu0 %v1052
    %1071 = vmatprep.subr.bf16.mxu0 0
    %1072 = vmatpush1.bf16.xpose.msra.mxu0 %v1055
    %1073 = vmatprep.subr.bf16.mxu0 0
    %1074 = vmatpush1.bf16.xpose.msra.mxu0 0
    %1075 = vmatprep.subr.bf16.mxu0 0
    %1076 = vmatpush1.bf16.xpose.msra.mxu0 0
    %1077 = vmatprep.subr.bf16.mxu0 0
    %1078 = vmatpush1.bf16.xpose.msra.mxu0 0
    %1079 = vmatprep.subr.bf16.mxu0 0
    %1080 = vmatpush1.bf16.xpose.msra.mxu0 0
    %1081 = vmatprep.subr.bf16.mxu0 0
    %1082 = vmatpush1.bf16.xpose.msra.mxu0 0
    %1083 = vmatprep.subr.bf16.mxu0 0
    %1084 = vmatpush1.bf16.xpose.msra.mxu0 0
    %1085 = vmatprep.subr.bf16.mxu0 0
    %1086 = vmatpush1.bf16.xpose.msra.mxu0 0
    %1087 = vmatprep.subr.bf16.mxu0 0
    %1088 = vmatpush1.bf16.xpose.msra.mxu0 0
    %1089 = vmatprep.mubr.bf16.mxu0 0
    %1090 = vmatmul.mubr.bf16.gmra.mrb[0].mxu0 %v967
    %v1091 = vpop.f32.mrb[0].mxu0
    %v1092 = vadd.f32 0.0, %v1091
    %v1093 = vpop.f32.mrb[0].mxu0
    %v1094 = vpop.f32.mrb[0].mxu0
    %v1095 = vpop.f32.mrb[0].mxu0
    %1096 = vdwg.mxu0
    %v1098 = vsel %vm965, %v556, 0
    %v1101 = vsel %vm965, %v557, 0
    %v1104 = vsel %vm965, %v558, 0
    %v1107 = vsel %vm965, %v559, 0
    %v1110 = vsel %vm965, %v560, 0
    %v1113 = vsel %vm965, %v561, 0
    %v1116 = vsel %vm965, %v562, 0
    %v1119 = vsel %vm965, %v563, 0
    %1121 = vmatprep.subr.bf16.mxu0 0
    %1122 = vmatpush1.bf16.xpose.msra.mxu0 %v1098
    %1123 = vmatprep.subr.bf16.mxu0 0
    %1124 = vmatpush1.bf16.xpose.msra.mxu0 %v1101
    %1125 = vmatprep.subr.bf16.mxu0 0
    %1126 = vmatpush1.bf16.xpose.msra.mxu0 %v1104
    %1127 = vmatprep.subr.bf16.mxu0 0
    %1128 = vmatpush1.bf16.xpose.msra.mxu0 %v1107
    %1129 = vmatprep.subr.bf16.mxu0 0
    %1130 = vmatpush1.bf16.xpose.msra.mxu0 %v1110
    %1131 = vmatprep.subr.bf16.mxu0 0
    %1132 = vmatpush1.bf16.xpose.msra.mxu0 %v1113
    %1133 = vmatprep.subr.bf16.mxu0 0
    %1134 = vmatpush1.bf16.xpose.msra.mxu0 %v1116
    %1135 = vmatprep.subr.bf16.mxu0 0
    %1136 = vmatpush1.bf16.xpose.msra.mxu0 %v1119
    %1137 = vmatprep.subr.bf16.mxu0 0
    %1138 = vmatpush1.bf16.xpose.msra.mxu0 0
    %1139 = vmatprep.subr.bf16.mxu0 0
    %1140 = vmatpush1.bf16.xpose.msra.mxu0 0
    %1141 = vmatprep.subr.bf16.mxu0 0
    %1142 = vmatpush1.bf16.xpose.msra.mxu0 0
    %1143 = vmatprep.subr.bf16.mxu0 0
    %1144 = vmatpush1.bf16.xpose.msra.mxu0 0
    %1145 = vmatprep.subr.bf16.mxu0 0
    %1146 = vmatpush1.bf16.xpose.msra.mxu0 0
    %1147 = vmatprep.subr.bf16.mxu0 0
    %1148 = vmatpush1.bf16.xpose.msra.mxu0 0
    %1149 = vmatprep.subr.bf16.mxu0 0
    %1150 = vmatpush1.bf16.xpose.msra.mxu0 0
    %1151 = vmatprep.subr.bf16.mxu0 0
    %1152 = vmatpush1.bf16.xpose.msra.mxu0 0
    %1153 = vmatprep.mubr.bf16.mxu0 0
    %1154 = vmatmul.mubr.bf16.gmra.mrb[0].mxu0 %v967
    %v1155 = vpop.f32.mrb[0].mxu0
    %v1156 = vadd.f32 0.0, %v1155
    %v1157 = vpop.f32.mrb[0].mxu0
    %v1158 = vpop.f32.mrb[0].mxu0
    %v1159 = vpop.f32.mrb[0].mxu0
    %1160 = vdwg.mxu0
    %v1162 = vsel %vm965, %v564, 0
    %v1165 = vsel %vm965, %v565, 0
    %v1168 = vsel %vm965, %v566, 0
    %v1171 = vsel %vm965, %v567, 0
    %v1174 = vsel %vm965, %v568, 0
    %v1177 = vsel %vm965, %v569, 0
    %v1180 = vsel %vm965, %v570, 0
    %v1183 = vsel %vm965, %v571, 0
    %1185 = vmatprep.subr.bf16.mxu0 0
    %1186 = vmatpush1.bf16.xpose.msra.mxu0 %v1162
    %1187 = vmatprep.subr.bf16.mxu0 0
    %1188 = vmatpush1.bf16.xpose.msra.mxu0 %v1165
    %1189 = vmatprep.subr.bf16.mxu0 0
    %1190 = vmatpush1.bf16.xpose.msra.mxu0 %v1168
    %1191 = vmatprep.subr.bf16.mxu0 0
    %1192 = vmatpush1.bf16.xpose.msra.mxu0 %v1171
    %1193 = vmatprep.subr.bf16.mxu0 0
    %1194 = vmatpush1.bf16.xpose.msra.mxu0 %v1174
    %1195 = vmatprep.subr.bf16.mxu0 0
    %1196 = vmatpush1.bf16.xpose.msra.mxu0 %v1177
    %1197 = vmatprep.subr.bf16.mxu0 0
    %1198 = vmatpush1.bf16.xpose.msra.mxu0 %v1180
    %1199 = vmatprep.subr.bf16.mxu0 0
    %1200 = vmatpush1.bf16.xpose.msra.mxu0 %v1183
    %1201 = vmatprep.subr.bf16.mxu0 0
    %1202 = vmatpush1.bf16.xpose.msra.mxu0 0
    %1203 = vmatprep.subr.bf16.mxu0 0
    %1204 = vmatpush1.bf16.xpose.msra.mxu0 0
    %1205 = vmatprep.subr.bf16.mxu0 0
    %1206 = vmatpush1.bf16.xpose.msra.mxu0 0
    %1207 = vmatprep.subr.bf16.mxu0 0
    %1208 = vmatpush1.bf16.xpose.msra.mxu0 0
    %1209 = vmatprep.subr.bf16.mxu0 0
    %1210 = vmatpush1.bf16.xpose.msra.mxu0 0
    %1211 = vmatprep.subr.bf16.mxu0 0
    %1212 = vmatpush1.bf16.xpose.msra.mxu0 0
    %1213 = vmatprep.subr.bf16.mxu0 0
    %1214 = vmatpush1.bf16.xpose.msra.mxu0 0
    %1215 = vmatprep.subr.bf16.mxu0 0
    %1216 = vmatpush1.bf16.xpose.msra.mxu0 0
    %1217 = vmatprep.mubr.bf16.mxu0 0
    %1218 = vmatmul.mubr.bf16.gmra.mrb[0].mxu0 %v967
    %v1219 = vpop.f32.mrb[0].mxu0
    %v1220 = vadd.f32 0.0, %v1219
    %v1221 = vpop.f32.mrb[0].mxu0
    %v1222 = vpop.f32.mrb[0].mxu0
    %v1223 = vpop.f32.mrb[0].mxu0
    %1224 = vdwg.mxu0
    %1225 = vmax.xlane.f32.xlu0 %v1028
    %v1226 = vpop.xlane.xlu0 %1225
    %1227 = vmax.xlane.f32.xlu0 %v1092
    %v1228 = vpop.xlane.xlu0 %1227
    %1229 = vmax.xlane.f32.xlu0 %v1156
    %v1230 = vpop.xlane.xlu0 %1229
    %1231 = vmax.xlane.f32.xlu0 %v1220
    %v1232 = vpop.xlane.xlu0 %1231
    %v1233 = vsub.f32 %v1028, %v1226
    %v1234 = vsub.f32 %v1092, %v1228
    %v1235 = vsub.f32 %v1156, %v1230
    %v1236 = vsub.f32 %v1220, %v1232
    %v1237 = vmul.f32 %v1233, 1.442695
    %v1238 = vpow.pop %v1237
    %v1239 = vmul.f32 %v1234, 1.442695
    %v1240 = vpow.pop %v1239
    %v1241 = vmul.f32 %v1235, 1.442695
    %v1242 = vpow.pop %v1241
    %v1243 = vmul.f32 %v1236, 1.442695
    %v1244 = vpow.pop %v1243
    %1245 = vadd.xlane.f32.xlu0 %v1238
    %v1246 = vpop.xlane.xlu0 %1245
    %1247 = vadd.xlane.f32.xlu0 %v1240
    %v1248 = vpop.xlane.xlu0 %1247
    %1249 = vadd.xlane.f32.xlu0 %v1242
    %v1250 = vpop.xlane.xlu0 %1249
    %1251 = vadd.xlane.f32.xlu0 %v1244
    %v1252 = vpop.xlane.xlu0 %1251
    %v1253 = vrcp.pop %v1246
    %v1254 = vrcp.pop %v1248
    %v1255 = vrcp.pop %v1250
    %v1256 = vrcp.pop %v1252
    %v1257 = vpack.c.bf16 %v1238, %v1238
    %v1258 = vpack.c.bf16 %v1240, %v1240
    %v1259 = vpack.c.bf16 %v1242, %v1242
    %v1260 = vpack.c.bf16 %v1244, %v1244
    %1261 = vmatprep.subr.bf16.mxu0 0
    %1262 = vmatpush1.bf16.msra.mxu0 %v925
    %1263 = vmatprep.subr.bf16.mxu0 0
    %1264 = vmatpush1.bf16.msra.mxu0 %v926
    %1265 = vmatprep.subr.bf16.mxu0 0
    %1266 = vmatpush1.bf16.msra.mxu0 %v927
    %1267 = vmatprep.subr.bf16.mxu0 0
    %1268 = vmatpush1.bf16.msra.mxu0 %v928
    %1269 = vmatprep.subr.bf16.mxu0 0
    %1270 = vmatpush1.bf16.msra.mxu0 %v929
    %1271 = vmatprep.subr.bf16.mxu0 0
    %1272 = vmatpush1.bf16.msra.mxu0 %v930
    %1273 = vmatprep.subr.bf16.mxu0 0
    %1274 = vmatpush1.bf16.msra.mxu0 %v931
    %1275 = vmatprep.subr.bf16.mxu0 0
    %1276 = vmatpush1.bf16.msra.mxu0 %v932
    %1277 = vmatprep.subr.bf16.mxu0 0
    %1278 = vmatpush1.bf16.msra.mxu0 0
    %1279 = vmatprep.subr.bf16.mxu0 0
    %1280 = vmatpush1.bf16.msra.mxu0 0
    %1281 = vmatprep.subr.bf16.mxu0 0
    %1282 = vmatpush1.bf16.msra.mxu0 0
    %1283 = vmatprep.subr.bf16.mxu0 0
    %1284 = vmatpush1.bf16.msra.mxu0 0
    %1285 = vmatprep.subr.bf16.mxu0 0
    %1286 = vmatpush1.bf16.msra.mxu0 0
    %1287 = vmatprep.subr.bf16.mxu0 0
    %1288 = vmatpush1.bf16.msra.mxu0 0
    %1289 = vmatprep.subr.bf16.mxu0 0
    %1290 = vmatpush1.bf16.msra.mxu0 0
    %1291 = vmatprep.subr.bf16.mxu0 0
    %1292 = vmatpush1.bf16.msra.mxu0 0
    %1293 = vmatprep.mubr.bf16.mxu0 0
    %1294 = vmatmul.mubr.bf16.gmra.mrb[0].mxu0 %v1257
    %v1295 = vpop.f32.mrb[0].mxu0
    %v1296 = vadd.f32 0.0, %v1295
    %v1297 = vpop.f32.mrb[0].mxu0
    %v1298 = vpop.f32.mrb[0].mxu0
    %v1299 = vpop.f32.mrb[0].mxu0
    %1300 = vdwg.mxu0
    %1301 = vmatprep.subr.bf16.mxu0 0
    %1302 = vmatpush1.bf16.msra.mxu0 %v933
    %1303 = vmatprep.subr.bf16.mxu0 0
    %1304 = vmatpush1.bf16.msra.mxu0 %v934
    %1305 = vmatprep.subr.bf16.mxu0 0
    %1306 = vmatpush1.bf16.msra.mxu0 %v935
    %1307 = vmatprep.subr.bf16.mxu0 0
    %1308 = vmatpush1.bf16.msra.mxu0 %v936
    %1309 = vmatprep.subr.bf16.mxu0 0
    %1310 = vmatpush1.bf16.msra.mxu0 %v937
    %1311 = vmatprep.subr.bf16.mxu0 0
    %1312 = vmatpush1.bf16.msra.mxu0 %v938
    %1313 = vmatprep.subr.bf16.mxu0 0
    %1314 = vmatpush1.bf16.msra.mxu0 %v939
    %1315 = vmatprep.subr.bf16.mxu0 0
    %1316 = vmatpush1.bf16.msra.mxu0 %v940
    %1317 = vmatprep.subr.bf16.mxu0 0
    %1318 = vmatpush1.bf16.msra.mxu0 0
    %1319 = vmatprep.subr.bf16.mxu0 0
    %1320 = vmatpush1.bf16.msra.mxu0 0
    %1321 = vmatprep.subr.bf16.mxu0 0
    %1322 = vmatpush1.bf16.msra.mxu0 0
    %1323 = vmatprep.subr.bf16.mxu0 0
    %1324 = vmatpush1.bf16.msra.mxu0 0
    %1325 = vmatprep.subr.bf16.mxu0 0
    %1326 = vmatpush1.bf16.msra.mxu0 0
    %1327 = vmatprep.subr.bf16.mxu0 0
    %1328 = vmatpush1.bf16.msra.mxu0 0
    %1329 = vmatprep.subr.bf16.mxu0 0
    %1330 = vmatpush1.bf16.msra.mxu0 0
    %1331 = vmatprep.subr.bf16.mxu0 0
    %1332 = vmatpush1.bf16.msra.mxu0 0
    %1333 = vmatprep.mubr.bf16.mxu0 0
    %1334 = vmatmul.mubr.bf16.gmra.mrb[0].mxu0 %v1258
    %v1335 = vpop.f32.mrb[0].mxu0
    %v1336 = vadd.f32 0.0, %v1335
    %v1337 = vpop.f32.mrb[0].mxu0
    %v1338 = vpop.f32.mrb[0].mxu0
    %v1339 = vpop.f32.mrb[0].mxu0
    %1340 = vdwg.mxu0
    %1341 = vmatprep.subr.bf16.mxu0 0
    %1342 = vmatpush1.bf16.msra.mxu0 %v941
    %1343 = vmatprep.subr.bf16.mxu0 0
    %1344 = vmatpush1.bf16.msra.mxu0 %v942
    %1345 = vmatprep.subr.bf16.mxu0 0
    %1346 = vmatpush1.bf16.msra.mxu0 %v943
    %1347 = vmatprep.subr.bf16.mxu0 0
    %1348 = vmatpush1.bf16.msra.mxu0 %v944
    %1349 = vmatprep.subr.bf16.mxu0 0
    %1350 = vmatpush1.bf16.msra.mxu0 %v945
    %1351 = vmatprep.subr.bf16.mxu0 0
    %1352 = vmatpush1.bf16.msra.mxu0 %v946
    %1353 = vmatprep.subr.bf16.mxu0 0
    %1354 = vmatpush1.bf16.msra.mxu0 %v947
    %1355 = vmatprep.subr.bf16.mxu0 0
    %1356 = vmatpush1.bf16.msra.mxu0 %v948
    %1357 = vmatprep.subr.bf16.mxu0 0
    %1358 = vmatpush1.bf16.msra.mxu0 0
    %1359 = vmatprep.subr.bf16.mxu0 0
    %1360 = vmatpush1.bf16.msra.mxu0 0
    %1361 = vmatprep.subr.bf16.mxu0 0
    %1362 = vmatpush1.bf16.msra.mxu0 0
    %1363 = vmatprep.subr.bf16.mxu0 0
    %1364 = vmatpush1.bf16.msra.mxu0 0
    %1365 = vmatprep.subr.bf16.mxu0 0
    %1366 = vmatpush1.bf16.msra.mxu0 0
    %1367 = vmatprep.subr.bf16.mxu0 0
    %1368 = vmatpush1.bf16.msra.mxu0 0
    %1369 = vmatprep.subr.bf16.mxu0 0
    %1370 = vmatpush1.bf16.msra.mxu0 0
    %1371 = vmatprep.subr.bf16.mxu0 0
    %1372 = vmatpush1.bf16.msra.mxu0 0
    %1373 = vmatprep.mubr.bf16.mxu0 0
    %1374 = vmatmul.mubr.bf16.gmra.mrb[0].mxu0 %v1259
    %v1375 = vpop.f32.mrb[0].mxu0
    %v1376 = vadd.f32 0.0, %v1375
    %v1377 = vpop.f32.mrb[0].mxu0
    %v1378 = vpop.f32.mrb[0].mxu0
    %v1379 = vpop.f32.mrb[0].mxu0
    %1380 = vdwg.mxu0
    %1381 = vmatprep.subr.bf16.mxu0 0
    %1382 = vmatpush1.bf16.msra.mxu0 %v949
    %1383 = vmatprep.subr.bf16.mxu0 0
    %1384 = vmatpush1.bf16.msra.mxu0 %v950
    %1385 = vmatprep.subr.bf16.mxu0 0
    %1386 = vmatpush1.bf16.msra.mxu0 %v951
    %1387 = vmatprep.subr.bf16.mxu0 0
    %1388 = vmatpush1.bf16.msra.mxu0 %v952
    %1389 = vmatprep.subr.bf16.mxu0 0
    %1390 = vmatpush1.bf16.msra.mxu0 %v953
    %1391 = vmatprep.subr.bf16.mxu0 0
    %1392 = vmatpush1.bf16.msra.mxu0 %v954
    %1393 = vmatprep.subr.bf16.mxu0 0
    %1394 = vmatpush1.bf16.msra.mxu0 %v955
    %1395 = vmatprep.subr.bf16.mxu0 0
    %1396 = vmatpush1.bf16.msra.mxu0 %v956
    %1397 = vmatprep.subr.bf16.mxu0 0
    %1398 = vmatpush1.bf16.msra.mxu0 0
    %1399 = vmatprep.subr.bf16.mxu0 0
    %1400 = vmatpush1.bf16.msra.mxu0 0
    %1401 = vmatprep.subr.bf16.mxu0 0
    %1402 = vmatpush1.bf16.msra.mxu0 0
    %1403 = vmatprep.subr.bf16.mxu0 0
    %1404 = vmatpush1.bf16.msra.mxu0 0
    %1405 = vmatprep.subr.bf16.mxu0 0
    %1406 = vmatpush1.bf16.msra.mxu0 0
    %1407 = vmatprep.subr.bf16.mxu0 0
    %1408 = vmatpush1.bf16.msra.mxu0 0
    %1409 = vmatprep.subr.bf16.mxu0 0
    %1410 = vmatpush1.bf16.msra.mxu0 0
    %1411 = vmatprep.subr.bf16.mxu0 0
    %1412 = vmatpush1.bf16.msra.mxu0 0
    %1413 = vmatprep.mubr.bf16.mxu0 0
    %1414 = vmatmul.mubr.bf16.gmra.mrb[0].mxu0 %v1260
    %v1415 = vpop.f32.mrb[0].mxu0
    %v1416 = vadd.f32 0.0, %v1415
    %v1417 = vpop.f32.mrb[0].mxu0
    %v1418 = vpop.f32.mrb[0].mxu0
    %v1419 = vpop.f32.mrb[0].mxu0
    %1420 = vdwg.mxu0
    %v1421 = vmul.f32 %v1296, %v1253
    %v1422 = vmul.f32 %v1336, %v1254
    %v1423 = vmul.f32 %v1376, %v1255
    %v1424 = vmul.f32 %v1416, %v1256
    %v1425 = vpack.c.bf16 %v1421, %v1421
    %v1426 = vpack.c.bf16 %v1422, %v1422
    %v1427 = vpack.c.bf16 %v1423, %v1423
    %v1428 = vpack.c.bf16 %v1424, %v1424
    %v1429 = vld [vmem:[#allocation10] sm:$0xf]
    %v1430 = vld [vmem:[#allocation10 + $0x4] sm:$0xf]
    %v1431 = vld [vmem:[#allocation10 + $0x8] sm:$0xf]
    %v1432 = vld [vmem:[#allocation10 + $0xc] sm:$0xf]
    %v1437 = vunpack.c.l.b16 %v1425
    %v1438 = vunpack.c.l.b16 %v1426
    %v1439 = vunpack.c.l.b16 %v1427
    %v1440 = vunpack.c.l.b16 %v1428
    %v1441 = vpack.c.b16 %v1438, %v1437
    %v1442 = vpack.c.b16 %v1440, %v1439
    %v1447 = vunpack.c.l.b16 %v1429
    %v1448 = vunpack.c.l.b16 %v1430
    %v1449 = vunpack.c.l.b16 %v1431
    %v1450 = vunpack.c.l.b16 %v1432
    %v1451 = vpack.c.b16 %v1448, %v1447
    %v1452 = vpack.c.b16 %v1450, %v1449
    %v1456 = vsel %vm965, %v1441, 0
    %v1459 = vsel %vm965, %v1442, 0
    %1461 = vmatprep.subr.bf16.mxu0 0
    %1462 = vmatpush1.bf16.msra.mxu0 %v1451
    %1463 = vmatprep.subr.bf16.mxu0 0
    %1464 = vmatpush1.bf16.msra.mxu0 %v1452
    %1465 = vmatprep.subr.bf16.mxu0 0
    %1466 = vmatpush1.bf16.msra.mxu0 0
    %1467 = vmatprep.subr.bf16.mxu0 0
    %1468 = vmatpush1.bf16.msra.mxu0 0
    %1469 = vmatprep.subr.bf16.mxu0 0
    %1470 = vmatpush1.bf16.msra.mxu0 0
    %1471 = vmatprep.subr.bf16.mxu0 0
    %1472 = vmatpush1.bf16.msra.mxu0 0
    %1473 = vmatprep.subr.bf16.mxu0 0
    %1474 = vmatpush1.bf16.msra.mxu0 0
    %1475 = vmatprep.subr.bf16.mxu0 0
    %1476 = vmatpush1.bf16.msra.mxu0 0
    %1477 = vmatprep.subr.bf16.mxu0 0
    %1478 = vmatpush1.bf16.msra.mxu0 0
    %1479 = vmatprep.subr.bf16.mxu0 0
    %1480 = vmatpush1.bf16.msra.mxu0 0
    %1481 = vmatprep.subr.bf16.mxu0 0
    %1482 = vmatpush1.bf16.msra.mxu0 0
    %1483 = vmatprep.subr.bf16.mxu0 0
    %1484 = vmatpush1.bf16.msra.mxu0 0
    %1485 = vmatprep.subr.bf16.mxu0 0
    %1486 = vmatpush1.bf16.msra.mxu0 0
    %1487 = vmatprep.subr.bf16.mxu0 0
    %1488 = vmatpush1.bf16.msra.mxu0 0
    %1489 = vmatprep.subr.bf16.mxu0 0
    %1490 = vmatpush1.bf16.msra.mxu0 0
    %1491 = vmatprep.subr.bf16.mxu0 0
    %1492 = vmatpush1.bf16.msra.mxu0 0
    %1493 = vmatprep.mubr.bf16.mxu0 0
    %1494 = vmatmul.mubr.bf16.gmra.mrb[0].mxu0 %v1456
    %v1495 = vpop.f32.mrb[0].mxu0
    %v1496 = vadd.f32 0.0, %v1495
    %v1497 = vpop.f32.mrb[0].mxu0
    %v1498 = vpop.f32.mrb[0].mxu0
    %v1499 = vadd.f32 0.0, %v1498
    %v1500 = vpop.f32.mrb[0].mxu0
    %1501 = vmatprep.mubr.bf16.mxu0 0
    %1502 = vmatmul.mubr.bf16.gmra.mrb[0].mxu0 %v1459
    %v1503 = vpop.f32.mrb[0].mxu0
    %v1504 = vadd.f32 0.0, %v1503
    %v1505 = vpop.f32.mrb[0].mxu0
    %v1506 = vpop.f32.mrb[0].mxu0
    %v1507 = vadd.f32 0.0, %v1506
    %v1508 = vpop.f32.mrb[0].mxu0
    %1509 = vdwg.mxu0
    %v1510 = vadd.f32 %v963, %v1496
    %v1511 = vadd.f32 %v963, %v1499
    %v1512 = vadd.f32 %v963, %v1504
    %v1513 = vadd.f32 %v963, %v1507
    %v1515 = vunpack.c.l.b16 %v957
    %v1516 = vpack.c.b16 %v1515, %v1515
    %1517 = vrot.lane.b32.xlu0 %v1516, 96
    %v1518 = vpop.permute.xlu0 %1517
    %1527 = vrot.lane.b32.xlu0 %v540, 96
    %v1528 = vpop.permute.xlu0 %1527
    %1529 = vrot.lane.b32.xlu0 %v541, 96
    %v1530 = vpop.permute.xlu0 %1529
    %1531 = vrot.lane.b32.xlu0 %v542, 96
    %v1532 = vpop.permute.xlu0 %1531
    %1533 = vrot.lane.b32.xlu0 %v543, 96
    %v1534 = vpop.permute.xlu0 %1533
    %1535 = vrot.lane.b32.xlu0 %v544, 96
    %v1536 = vpop.permute.xlu0 %1535
    %1537 = vrot.lane.b32.xlu0 %v545, 96
    %v1538 = vpop.permute.xlu0 %1537
    %1539 = vrot.lane.b32.xlu0 %v546, 96
    %v1540 = vpop.permute.xlu0 %1539
    %1541 = vrot.lane.b32.xlu0 %v547, 96
    %v1542 = vpop.permute.xlu0 %1541
    %v1544 = vsel %vm965, %v1518, 0
    %v1547 = vsel %vm965, %v1528, 0
    %v1550 = vsel %vm965, %v1530, 0
    %v1553 = vsel %vm965, %v1532, 0
    %v1556 = vsel %vm965, %v1534, 0
    %v1559 = vsel %vm965, %v1536, 0
    %v1562 = vsel %vm965, %v1538, 0
    %v1565 = vsel %vm965, %v1540, 0
    %v1568 = vsel %vm965, %v1542, 0
    %1570 = vmatprep.subr.bf16.mxu0 0
    %1571 = vmatpush1.bf16.xpose.msra.mxu0 %v1547
    %1572 = vmatprep.subr.bf16.mxu0 0
    %1573 = vmatpush1.bf16.xpose.msra.mxu0 %v1550
    %1574 = vmatprep.subr.bf16.mxu0 0
    %1575 = vmatpush1.bf16.xpose.msra.mxu0 %v1553
    %1576 = vmatprep.subr.bf16.mxu0 0
    %1577 = vmatpush1.bf16.xpose.msra.mxu0 %v1556
    %1578 = vmatprep.subr.bf16.mxu0 0
    %1579 = vmatpush1.bf16.xpose.msra.mxu0 %v1559
    %1580 = vmatprep.subr.bf16.mxu0 0
    %1581 = vmatpush1.bf16.xpose.msra.mxu0 %v1562
    %1582 = vmatprep.subr.bf16.mxu0 0
    %1583 = vmatpush1.bf16.xpose.msra.mxu0 %v1565
    %1584 = vmatprep.subr.bf16.mxu0 0
    %1585 = vmatpush1.bf16.xpose.msra.mxu0 %v1568
    %1586 = vmatprep.subr.bf16.mxu0 0
    %1587 = vmatpush1.bf16.xpose.msra.mxu0 0
    %1588 = vmatprep.subr.bf16.mxu0 0
    %1589 = vmatpush1.bf16.xpose.msra.mxu0 0
    %1590 = vmatprep.subr.bf16.mxu0 0
    %1591 = vmatpush1.bf16.xpose.msra.mxu0 0
    %1592 = vmatprep.subr.bf16.mxu0 0
    %1593 = vmatpush1.bf16.xpose.msra.mxu0 0
    %1594 = vmatprep.subr.bf16.mxu0 0
    %1595 = vmatpush1.bf16.xpose.msra.mxu0 0
    %1596 = vmatprep.subr.bf16.mxu0 0
    %1597 = vmatpush1.bf16.xpose.msra.mxu0 0
    %1598 = vmatprep.subr.bf16.mxu0 0
    %1599 = vmatpush1.bf16.xpose.msra.mxu0 0
    %1600 = vmatprep.subr.bf16.mxu0 0
    %1601 = vmatpush1.bf16.xpose.msra.mxu0 0
    %1602 = vmatprep.mubr.bf16.mxu0 0
    %1603 = vmatmul.mubr.bf16.gmra.mrb[0].mxu0 %v1544
    %v1604 = vpop.f32.mrb[0].mxu0
    %v1605 = vadd.f32 0.0, %v1604
    %v1606 = vpop.f32.mrb[0].mxu0
    %v1607 = vpop.f32.mrb[0].mxu0
    %v1608 = vpop.f32.mrb[0].mxu0
    %1609 = vdwg.mxu0
    %1618 = vrot.lane.b32.xlu0 %v548, 96
    %v1619 = vpop.permute.xlu0 %1618
    %1620 = vrot.lane.b32.xlu0 %v549, 96
    %v1621 = vpop.permute.xlu0 %1620
    %1622 = vrot.lane.b32.xlu0 %v550, 96
    %v1623 = vpop.permute.xlu0 %1622
    %1624 = vrot.lane.b32.xlu0 %v551, 96
    %v1625 = vpop.permute.xlu0 %1624
    %1626 = vrot.lane.b32.xlu0 %v552, 96
    %v1627 = vpop.permute.xlu0 %1626
    %1628 = vrot.lane.b32.xlu0 %v553, 96
    %v1629 = vpop.permute.xlu0 %1628
    %1630 = vrot.lane.b32.xlu0 %v554, 96
    %v1631 = vpop.permute.xlu0 %1630
    %1632 = vrot.lane.b32.xlu0 %v555, 96
    %v1633 = vpop.permute.xlu0 %1632
    %v1635 = vsel %vm965, %v1619, 0
    %v1638 = vsel %vm965, %v1621, 0
    %v1641 = vsel %vm965, %v1623, 0
    %v1644 = vsel %vm965, %v1625, 0
    %v1647 = vsel %vm965, %v1627, 0
    %v1650 = vsel %vm965, %v1629, 0
    %v1653 = vsel %vm965, %v1631, 0
    %v1656 = vsel %vm965, %v1633, 0
    %1658 = vmatprep.subr.bf16.mxu0 0
    %1659 = vmatpush1.bf16.xpose.msra.mxu0 %v1635
    %1660 = vmatprep.subr.bf16.mxu0 0
    %1661 = vmatpush1.bf16.xpose.msra.mxu0 %v1638
    %1662 = vmatprep.subr.bf16.mxu0 0
    %1663 = vmatpush1.bf16.xpose.msra.mxu0 %v1641
    %1664 = vmatprep.subr.bf16.mxu0 0
    %1665 = vmatpush1.bf16.xpose.msra.mxu0 %v1644
    %1666 = vmatprep.subr.bf16.mxu0 0
    %1667 = vmatpush1.bf16.xpose.msra.mxu0 %v1647
    %1668 = vmatprep.subr.bf16.mxu0 0
    %1669 = vmatpush1.bf16.xpose.msra.mxu0 %v1650
    %1670 = vmatprep.subr.bf16.mxu0 0
    %1671 = vmatpush1.bf16.xpose.msra.mxu0 %v1653
    %1672 = vmatprep.subr.bf16.mxu0 0
    %1673 = vmatpush1.bf16.xpose.msra.mxu0 %v1656
    %1674 = vmatprep.subr.bf16.mxu0 0
    %1675 = vmatpush1.bf16.xpose.msra.mxu0 0
    %1676 = vmatprep.subr.bf16.mxu0 0
    %1677 = vmatpush1.bf16.xpose.msra.mxu0 0
    %1678 = vmatprep.subr.bf16.mxu0 0
    %1679 = vmatpush1.bf16.xpose.msra.mxu0 0
    %1680 = vmatprep.subr.bf16.mxu0 0
    %1681 = vmatpush1.bf16.xpose.msra.mxu0 0
    %1682 = vmatprep.subr.bf16.mxu0 0
    %1683 = vmatpush1.bf16.xpose.msra.mxu0 0
    %1684 = vmatprep.subr.bf16.mxu0 0
    %1685 = vmatpush1.bf16.xpose.msra.mxu0 0
    %1686 = vmatprep.subr.bf16.mxu0 0
    %1687 = vmatpush1.bf16.xpose.msra.mxu0 0
    %1688 = vmatprep.subr.bf16.mxu0 0
    %1689 = vmatpush1.bf16.xpose.msra.mxu0 0
    %1690 = vmatprep.mubr.bf16.mxu0 0
    %1691 = vmatmul.mubr.bf16.gmra.mrb[0].mxu0 %v1544
    %v1692 = vpop.f32.mrb[0].mxu0
    %v1693 = vadd.f32 0.0, %v1692
    %v1694 = vpop.f32.mrb[0].mxu0
    %v1695 = vpop.f32.mrb[0].mxu0
    %v1696 = vpop.f32.mrb[0].mxu0
    %1697 = vdwg.mxu0
    %1706 = vrot.lane.b32.xlu0 %v556, 96
    %v1707 = vpop.permute.xlu0 %1706
    %1708 = vrot.lane.b32.xlu0 %v557, 96
    %v1709 = vpop.permute.xlu0 %1708
    %1710 = vrot.lane.b32.xlu0 %v558, 96
    %v1711 = vpop.permute.xlu0 %1710
    %1712 = vrot.lane.b32.xlu0 %v559, 96
    %v1713 = vpop.permute.xlu0 %1712
    %1714 = vrot.lane.b32.xlu0 %v560, 96
    %v1715 = vpop.permute.xlu0 %1714
    %1716 = vrot.lane.b32.xlu0 %v561, 96
    %v1717 = vpop.permute.xlu0 %1716
    %1718 = vrot.lane.b32.xlu0 %v562, 96
    %v1719 = vpop.permute.xlu0 %1718
    %1720 = vrot.lane.b32.xlu0 %v563, 96
    %v1721 = vpop.permute.xlu0 %1720
    %v1723 = vsel %vm965, %v1707, 0
    %v1726 = vsel %vm965, %v1709, 0
    %v1729 = vsel %vm965, %v1711, 0
    %v1732 = vsel %vm965, %v1713, 0
    %v1735 = vsel %vm965, %v1715, 0
    %v1738 = vsel %vm965, %v1717, 0
    %v1741 = vsel %vm965, %v1719, 0
    %v1744 = vsel %vm965, %v1721, 0
    %1746 = vmatprep.subr.bf16.mxu0 0
    %1747 = vmatpush1.bf16.xpose.msra.mxu0 %v1723
    %1748 = vmatprep.subr.bf16.mxu0 0
    %1749 = vmatpush1.bf16.xpose.msra.mxu0 %v1726
    %1750 = vmatprep.subr.bf16.mxu0 0
    %1751 = vmatpush1.bf16.xpose.msra.mxu0 %v1729
    %1752 = vmatprep.subr.bf16.mxu0 0
    %1753 = vmatpush1.bf16.xpose.msra.mxu0 %v1732
    %1754 = vmatprep.subr.bf16.mxu0 0
    %1755 = vmatpush1.bf16.xpose.msra.mxu0 %v1735
    %1756 = vmatprep.subr.bf16.mxu0 0
    %1757 = vmatpush1.bf16.xpose.msra.mxu0 %v1738
    %1758 = vmatprep.subr.bf16.mxu0 0
    %1759 = vmatpush1.bf16.xpose.msra.mxu0 %v1741
    %1760 = vmatprep.subr.bf16.mxu0 0
    %1761 = vmatpush1.bf16.xpose.msra.mxu0 %v1744
    %1762 = vmatprep.subr.bf16.mxu0 0
    %1763 = vmatpush1.bf16.xpose.msra.mxu0 0
    %1764 = vmatprep.subr.bf16.mxu0 0
    %1765 = vmatpush1.bf16.xpose.msra.mxu0 0
    %1766 = vmatprep.subr.bf16.mxu0 0
    %1767 = vmatpush1.bf16.xpose.msra.mxu0 0
    %1768 = vmatprep.subr.bf16.mxu0 0
    %1769 = vmatpush1.bf16.xpose.msra.mxu0 0
    %1770 = vmatprep.subr.bf16.mxu0 0
    %1771 = vmatpush1.bf16.xpose.msra.mxu0 0
    %1772 = vmatprep.subr.bf16.mxu0 0
    %1773 = vmatpush1.bf16.xpose.msra.mxu0 0
    %1774 = vmatprep.subr.bf16.mxu0 0
    %1775 = vmatpush1.bf16.xpose.msra.mxu0 0
    %1776 = vmatprep.subr.bf16.mxu0 0
    %1777 = vmatpush1.bf16.xpose.msra.mxu0 0
    %1778 = vmatprep.mubr.bf16.mxu0 0
    %1779 = vmatmul.mubr.bf16.gmra.mrb[0].mxu0 %v1544
    %v1780 = vpop.f32.mrb[0].mxu0
    %v1781 = vadd.f32 0.0, %v1780
    %v1782 = vpop.f32.mrb[0].mxu0
    %v1783 = vpop.f32.mrb[0].mxu0
    %v1784 = vpop.f32.mrb[0].mxu0
    %1785 = vdwg.mxu0
    %1794 = vrot.lane.b32.xlu0 %v564, 96
    %v1795 = vpop.permute.xlu0 %1794
    %1796 = vrot.lane.b32.xlu0 %v565, 96
    %v1797 = vpop.permute.xlu0 %1796
    %1798 = vrot.lane.b32.xlu0 %v566, 96
    %v1799 = vpop.permute.xlu0 %1798
    %1800 = vrot.lane.b32.xlu0 %v567, 96
    %v1801 = vpop.permute.xlu0 %1800
    %1802 = vrot.lane.b32.xlu0 %v568, 96
    %v1803 = vpop.permute.xlu0 %1802
    %1804 = vrot.lane.b32.xlu0 %v569, 96
    %v1805 = vpop.permute.xlu0 %1804
    %1806 = vrot.lane.b32.xlu0 %v570, 96
    %v1807 = vpop.permute.xlu0 %1806
    %1808 = vrot.lane.b32.xlu0 %v571, 96
    %v1809 = vpop.permute.xlu0 %1808
    %v1811 = vsel %vm965, %v1795, 0
    %v1814 = vsel %vm965, %v1797, 0
    %v1817 = vsel %vm965, %v1799, 0
    %v1820 = vsel %vm965, %v1801, 0
    %v1823 = vsel %vm965, %v1803, 0
    %v1826 = vsel %vm965, %v1805, 0
    %v1829 = vsel %vm965, %v1807, 0
    %v1832 = vsel %vm965, %v1809, 0
    %1834 = vmatprep.subr.bf16.mxu0 0
    %1835 = vmatpush1.bf16.xpose.msra.mxu0 %v1811
    %1836 = vmatprep.subr.bf16.mxu0 0
    %1837 = vmatpush1.bf16.xpose.msra.mxu0 %v1814
    %1838 = vmatprep.subr.bf16.mxu0 0
    %1839 = vmatpush1.bf16.xpose.msra.mxu0 %v1817
    %1840 = vmatprep.subr.bf16.mxu0 0
    %1841 = vmatpush1.bf16.xpose.msra.mxu0 %v1820
    %1842 = vmatprep.subr.bf16.mxu0 0
    %1843 = vmatpush1.bf16.xpose.msra.mxu0 %v1823
    %1844 = vmatprep.subr.bf16.mxu0 0
    %1845 = vmatpush1.bf16.xpose.msra.mxu0 %v1826
    %1846 = vmatprep.subr.bf16.mxu0 0
    %1847 = vmatpush1.bf16.xpose.msra.mxu0 %v1829
    %1848 = vmatprep.subr.bf16.mxu0 0
    %1849 = vmatpush1.bf16.xpose.msra.mxu0 %v1832
    %1850 = vmatprep.subr.bf16.mxu0 0
    %1851 = vmatpush1.bf16.xpose.msra.mxu0 0
    %1852 = vmatprep.subr.bf16.mxu0 0
    %1853 = vmatpush1.bf16.xpose.msra.mxu0 0
    %1854 = vmatprep.subr.bf16.mxu0 0
    %1855 = vmatpush1.bf16.xpose.msra.mxu0 0
    %1856 = vmatprep.subr.bf16.mxu0 0
    %1857 = vmatpush1.bf16.xpose.msra.mxu0 0
    %1858 = vmatprep.subr.bf16.mxu0 0
    %1859 = vmatpush1.bf16.xpose.msra.mxu0 0
    %1860 = vmatprep.subr.bf16.mxu0 0
    %1861 = vmatpush1.bf16.xpose.msra.mxu0 0
    %1862 = vmatprep.subr.bf16.mxu0 0
    %1863 = vmatpush1.bf16.xpose.msra.mxu0 0
    %1864 = vmatprep.subr.bf16.mxu0 0
    %1865 = vmatpush1.bf16.xpose.msra.mxu0 0
    %1866 = vmatprep.mubr.bf16.mxu0 0
    %1867 = vmatmul.mubr.bf16.gmra.mrb[0].mxu0 %v1544
    %v1868 = vpop.f32.mrb[0].mxu0
    %v1869 = vadd.f32 0.0, %v1868
    %v1870 = vpop.f32.mrb[0].mxu0
    %v1871 = vpop.f32.mrb[0].mxu0
    %v1872 = vpop.f32.mrb[0].mxu0
    %1873 = vdwg.mxu0
    %1874 = vmax.xlane.f32.xlu0 %v1605
    %v1875 = vpop.xlane.xlu0 %1874
    %1876 = vmax.xlane.f32.xlu0 %v1693
    %v1877 = vpop.xlane.xlu0 %1876
    %1878 = vmax.xlane.f32.xlu0 %v1781
    %v1879 = vpop.xlane.xlu0 %1878
    %1880 = vmax.xlane.f32.xlu0 %v1869
    %v1881 = vpop.xlane.xlu0 %1880
    %v1882 = vsub.f32 %v1605, %v1875
    %v1883 = vsub.f32 %v1693, %v1877
    %v1884 = vsub.f32 %v1781, %v1879
    %v1885 = vsub.f32 %v1869, %v1881
    %v1886 = vmul.f32 %v1882, 1.442695
    %v1887 = vpow.pop %v1886
    %v1888 = vmul.f32 %v1883, 1.442695
    %v1889 = vpow.pop %v1888
    %v1890 = vmul.f32 %v1884, 1.442695
    %v1891 = vpow.pop %v1890
    %v1892 = vmul.f32 %v1885, 1.442695
    %v1893 = vpow.pop %v1892
    %1894 = vadd.xlane.f32.xlu0 %v1887
    %v1895 = vpop.xlane.xlu0 %1894
    %1896 = vadd.xlane.f32.xlu0 %v1889
    %v1897 = vpop.xlane.xlu0 %1896
    %1898 = vadd.xlane.f32.xlu0 %v1891
    %v1899 = vpop.xlane.xlu0 %1898
    %1900 = vadd.xlane.f32.xlu0 %v1893
    %v1901 = vpop.xlane.xlu0 %1900
    %v1902 = vrcp.pop %v1895
    %v1903 = vrcp.pop %v1897
    %v1904 = vrcp.pop %v1899
    %v1905 = vrcp.pop %v1901
    %v1906 = vpack.c.bf16 %v1887, %v1887
    %v1907 = vpack.c.bf16 %v1889, %v1889
    %v1908 = vpack.c.bf16 %v1891, %v1891
    %v1909 = vpack.c.bf16 %v1893, %v1893
    %1918 = vrot.lane.b32.xlu0 %v925, 96
    %v1919 = vpop.permute.xlu0 %1918
    %1920 = vrot.lane.b32.xlu0 %v926, 96
    %v1921 = vpop.permute.xlu0 %1920
    %1922 = vrot.lane.b32.xlu0 %v927, 96
    %v1923 = vpop.permute.xlu0 %1922
    %1924 = vrot.lane.b32.xlu0 %v928, 96
    %v1925 = vpop.permute.xlu0 %1924
    %1926 = vrot.lane.b32.xlu0 %v929, 96
    %v1927 = vpop.permute.xlu0 %1926
    %1928 = vrot.lane.b32.xlu0 %v930, 96
    %v1929 = vpop.permute.xlu0 %1928
    %1930 = vrot.lane.b32.xlu0 %v931, 96
    %v1931 = vpop.permute.xlu0 %1930
    %1932 = vrot.lane.b32.xlu0 %v932, 96
    %v1933 = vpop.permute.xlu0 %1932
    %1942 = vmatprep.subr.bf16.mxu0 0
    %1943 = vmatpush1.bf16.msra.mxu0 %v1919
    %1944 = vmatprep.subr.bf16.mxu0 0
    %1945 = vmatpush1.bf16.msra.mxu0 %v1921
    %1946 = vmatprep.subr.bf16.mxu0 0
    %1947 = vmatpush1.bf16.msra.mxu0 %v1923
    %1948 = vmatprep.subr.bf16.mxu0 0
    %1949 = vmatpush1.bf16.msra.mxu0 %v1925
    %1950 = vmatprep.subr.bf16.mxu0 0
    %1951 = vmatpush1.bf16.msra.mxu0 %v1927
    %1952 = vmatprep.subr.bf16.mxu0 0
    %1953 = vmatpush1.bf16.msra.mxu0 %v1929
    %1954 = vmatprep.subr.bf16.mxu0 0
    %1955 = vmatpush1.bf16.msra.mxu0 %v1931
    %1956 = vmatprep.subr.bf16.mxu0 0
    %1957 = vmatpush1.bf16.msra.mxu0 %v1933
    %1958 = vmatprep.subr.bf16.mxu0 0
    %1959 = vmatpush1.bf16.msra.mxu0 0
    %1960 = vmatprep.subr.bf16.mxu0 0
    %1961 = vmatpush1.bf16.msra.mxu0 0
    %1962 = vmatprep.subr.bf16.mxu0 0
    %1963 = vmatpush1.bf16.msra.mxu0 0
    %1964 = vmatprep.subr.bf16.mxu0 0
    %1965 = vmatpush1.bf16.msra.mxu0 0
    %1966 = vmatprep.subr.bf16.mxu0 0
    %1967 = vmatpush1.bf16.msra.mxu0 0
    %1968 = vmatprep.subr.bf16.mxu0 0
    %1969 = vmatpush1.bf16.msra.mxu0 0
    %1970 = vmatprep.subr.bf16.mxu0 0
    %1971 = vmatpush1.bf16.msra.mxu0 0
    %1972 = vmatprep.subr.bf16.mxu0 0
    %1973 = vmatpush1.bf16.msra.mxu0 0
    %1974 = vmatprep.mubr.bf16.mxu0 0
    %1975 = vmatmul.mubr.bf16.gmra.mrb[0].mxu0 %v1906
    %v1976 = vpop.f32.mrb[0].mxu0
    %v1977 = vadd.f32 0.0, %v1976
    %v1978 = vpop.f32.mrb[0].mxu0
    %v1979 = vpop.f32.mrb[0].mxu0
    %v1980 = vpop.f32.mrb[0].mxu0
    %1981 = vdwg.mxu0
    %1990 = vrot.lane.b32.xlu0 %v933, 96
    %v1991 = vpop.permute.xlu0 %1990
    %1992 = vrot.lane.b32.xlu0 %v934, 96
    %v1993 = vpop.permute.xlu0 %1992
    %1994 = vrot.lane.b32.xlu0 %v935, 96
    %v1995 = vpop.permute.xlu0 %1994
    %1996 = vrot.lane.b32.xlu0 %v936, 96
    %v1997 = vpop.permute.xlu0 %1996
    %1998 = vrot.lane.b32.xlu0 %v937, 96
    %v1999 = vpop.permute.xlu0 %1998
    %2000 = vrot.lane.b32.xlu0 %v938, 96
    %v2001 = vpop.permute.xlu0 %2000
    %2002 = vrot.lane.b32.xlu0 %v939, 96
    %v2003 = vpop.permute.xlu0 %2002
    %2004 = vrot.lane.b32.xlu0 %v940, 96
    %v2005 = vpop.permute.xlu0 %2004
    %2014 = vmatprep.subr.bf16.mxu0 0
    %2015 = vmatpush1.bf16.msra.mxu0 %v1991
    %2016 = vmatprep.subr.bf16.mxu0 0
    %2017 = vmatpush1.bf16.msra.mxu0 %v1993
    %2018 = vmatprep.subr.bf16.mxu0 0
    %2019 = vmatpush1.bf16.msra.mxu0 %v1995
    %2020 = vmatprep.subr.bf16.mxu0 0
    %2021 = vmatpush1.bf16.msra.mxu0 %v1997
    %2022 = vmatprep.subr.bf16.mxu0 0
    %2023 = vmatpush1.bf16.msra.mxu0 %v1999
    %2024 = vmatprep.subr.bf16.mxu0 0
    %2025 = vmatpush1.bf16.msra.mxu0 %v2001
    %2026 = vmatprep.subr.bf16.mxu0 0
    %2027 = vmatpush1.bf16.msra.mxu0 %v2003
    %2028 = vmatprep.subr.bf16.mxu0 0
    %2029 = vmatpush1.bf16.msra.mxu0 %v2005
    %2030 = vmatprep.subr.bf16.mxu0 0
    %2031 = vmatpush1.bf16.msra.mxu0 0
    %2032 = vmatprep.subr.bf16.mxu0 0
    %2033 = vmatpush1.bf16.msra.mxu0 0
    %2034 = vmatprep.subr.bf16.mxu0 0
    %2035 = vmatpush1.bf16.msra.mxu0 0
    %2036 = vmatprep.subr.bf16.mxu0 0
    %2037 = vmatpush1.bf16.msra.mxu0 0
    %2038 = vmatprep.subr.bf16.mxu0 0
    %2039 = vmatpush1.bf16.msra.mxu0 0
    %2040 = vmatprep.subr.bf16.mxu0 0
    %2041 = vmatpush1.bf16.msra.mxu0 0
    %2042 = vmatprep.subr.bf16.mxu0 0
    %2043 = vmatpush1.bf16.msra.mxu0 0
    %2044 = vmatprep.subr.bf16.mxu0 0
    %2045 = vmatpush1.bf16.msra.mxu0 0
    %2046 = vmatprep.mubr.bf16.mxu0 0
    %2047 = vmatmul.mubr.bf16.gmra.mrb[0].mxu0 %v1907
    %v2048 = vpop.f32.mrb[0].mxu0
    %v2049 = vadd.f32 0.0, %v2048
    %v2050 = vpop.f32.mrb[0].mxu0
    %v2051 = vpop.f32.mrb[0].mxu0
    %v2052 = vpop.f32.mrb[0].mxu0
    %2053 = vdwg.mxu0
    %2062 = vrot.lane.b32.xlu0 %v941, 96
    %v2063 = vpop.permute.xlu0 %2062
    %2064 = vrot.lane.b32.xlu0 %v942, 96
    %v2065 = vpop.permute.xlu0 %2064
    %2066 = vrot.lane.b32.xlu0 %v943, 96
    %v2067 = vpop.permute.xlu0 %2066
    %2068 = vrot.lane.b32.xlu0 %v944, 96
    %v2069 = vpop.permute.xlu0 %2068
    %2070 = vrot.lane.b32.xlu0 %v945, 96
    %v2071 = vpop.permute.xlu0 %2070
    %2072 = vrot.lane.b32.xlu0 %v946, 96
    %v2073 = vpop.permute.xlu0 %2072
    %2074 = vrot.lane.b32.xlu0 %v947, 96
    %v2075 = vpop.permute.xlu0 %2074
    %2076 = vrot.lane.b32.xlu0 %v948, 96
    %v2077 = vpop.permute.xlu0 %2076
    %2086 = vmatprep.subr.bf16.mxu0 0
    %2087 = vmatpush1.bf16.msra.mxu0 %v2063
    %2088 = vmatprep.subr.bf16.mxu0 0
    %2089 = vmatpush1.bf16.msra.mxu0 %v2065
    %2090 = vmatprep.subr.bf16.mxu0 0
    %2091 = vmatpush1.bf16.msra.mxu0 %v2067
    %2092 = vmatprep.subr.bf16.mxu0 0
    %2093 = vmatpush1.bf16.msra.mxu0 %v2069
    %2094 = vmatprep.subr.bf16.mxu0 0
    %2095 = vmatpush1.bf16.msra.mxu0 %v2071
    %2096 = vmatprep.subr.bf16.mxu0 0
    %2097 = vmatpush1.bf16.msra.mxu0 %v2073
    %2098 = vmatprep.subr.bf16.mxu0 0
    %2099 = vmatpush1.bf16.msra.mxu0 %v2075
    %2100 = vmatprep.subr.bf16.mxu0 0
    %2101 = vmatpush1.bf16.msra.mxu0 %v2077
    %2102 = vmatprep.subr.bf16.mxu0 0
    %2103 = vmatpush1.bf16.msra.mxu0 0
    %2104 = vmatprep.subr.bf16.mxu0 0
    %2105 = vmatpush1.bf16.msra.mxu0 0
    %2106 = vmatprep.subr.bf16.mxu0 0
    %2107 = vmatpush1.bf16.msra.mxu0 0
    %2108 = vmatprep.subr.bf16.mxu0 0
    %2109 = vmatpush1.bf16.msra.mxu0 0
    %2110 = vmatprep.subr.bf16.mxu0 0
    %2111 = vmatpush1.bf16.msra.mxu0 0
    %2112 = vmatprep.subr.bf16.mxu0 0
    %2113 = vmatpush1.bf16.msra.mxu0 0
    %2114 = vmatprep.subr.bf16.mxu0 0
    %2115 = vmatpush1.bf16.msra.mxu0 0
    %2116 = vmatprep.subr.bf16.mxu0 0
    %2117 = vmatpush1.bf16.msra.mxu0 0
    %2118 = vmatprep.mubr.bf16.mxu0 0
    %2119 = vmatmul.mubr.bf16.gmra.mrb[0].mxu0 %v1908
    %v2120 = vpop.f32.mrb[0].mxu0
    %v2121 = vadd.f32 0.0, %v2120
    %v2122 = vpop.f32.mrb[0].mxu0
    %v2123 = vpop.f32.mrb[0].mxu0
    %v2124 = vpop.f32.mrb[0].mxu0
    %2125 = vdwg.mxu0
    %2134 = vrot.lane.b32.xlu0 %v949, 96
    %v2135 = vpop.permute.xlu0 %2134
    %2136 = vrot.lane.b32.xlu0 %v950, 96
    %v2137 = vpop.permute.xlu0 %2136
    %2138 = vrot.lane.b32.xlu0 %v951, 96
    %v2139 = vpop.permute.xlu0 %2138
    %2140 = vrot.lane.b32.xlu0 %v952, 96
    %v2141 = vpop.permute.xlu0 %2140
    %2142 = vrot.lane.b32.xlu0 %v953, 96
    %v2143 = vpop.permute.xlu0 %2142
    %2144 = vrot.lane.b32.xlu0 %v954, 96
    %v2145 = vpop.permute.xlu0 %2144
    %2146 = vrot.lane.b32.xlu0 %v955, 96
    %v2147 = vpop.permute.xlu0 %2146
    %2148 = vrot.lane.b32.xlu0 %v956, 96
    %v2149 = vpop.permute.xlu0 %2148
    %2158 = vmatprep.subr.bf16.mxu0 0
    %2159 = vmatpush1.bf16.msra.mxu0 %v2135
    %2160 = vmatprep.subr.bf16.mxu0 0
    %2161 = vmatpush1.bf16.msra.mxu0 %v2137
    %2162 = vmatprep.subr.bf16.mxu0 0
    %2163 = vmatpush1.bf16.msra.mxu0 %v2139
    %2164 = vmatprep.subr.bf16.mxu0 0
    %2165 = vmatpush1.bf16.msra.mxu0 %v2141
    %2166 = vmatprep.subr.bf16.mxu0 0
    %2167 = vmatpush1.bf16.msra.mxu0 %v2143
    %2168 = vmatprep.subr.bf16.mxu0 0
    %2169 = vmatpush1.bf16.msra.mxu0 %v2145
    %2170 = vmatprep.subr.bf16.mxu0 0
    %2171 = vmatpush1.bf16.msra.mxu0 %v2147
    %2172 = vmatprep.subr.bf16.mxu0 0
    %2173 = vmatpush1.bf16.msra.mxu0 %v2149
    %2174 = vmatprep.subr.bf16.mxu0 0
    %2175 = vmatpush1.bf16.msra.mxu0 0
    %2176 = vmatprep.subr.bf16.mxu0 0
    %2177 = vmatpush1.bf16.msra.mxu0 0
    %2178 = vmatprep.subr.bf16.mxu0 0
    %2179 = vmatpush1.bf16.msra.mxu0 0
    %2180 = vmatprep.subr.bf16.mxu0 0
    %2181 = vmatpush1.bf16.msra.mxu0 0
    %2182 = vmatprep.subr.bf16.mxu0 0
    %2183 = vmatpush1.bf16.msra.mxu0 0
    %2184 = vmatprep.subr.bf16.mxu0 0
    %2185 = vmatpush1.bf16.msra.mxu0 0
    %2186 = vmatprep.subr.bf16.mxu0 0
    %2187 = vmatpush1.bf16.msra.mxu0 0
    %2188 = vmatprep.subr.bf16.mxu0 0
    %2189 = vmatpush1.bf16.msra.mxu0 0
    %2190 = vmatprep.mubr.bf16.mxu0 0
    %2191 = vmatmul.mubr.bf16.gmra.mrb[0].mxu0 %v1909
    %v2192 = vpop.f32.mrb[0].mxu0
    %v2193 = vadd.f32 0.0, %v2192
    %v2194 = vpop.f32.mrb[0].mxu0
    %v2195 = vpop.f32.mrb[0].mxu0
    %v2196 = vpop.f32.mrb[0].mxu0
    %2197 = vdwg.mxu0
    %v2198 = vmul.f32 %v1977, %v1902
    %v2199 = vmul.f32 %v2049, %v1903
    %v2200 = vmul.f32 %v2121, %v1904
    %v2201 = vmul.f32 %v2193, %v1905
    %v2202 = vpack.c.bf16 %v2198, %v2198
    %v2203 = vpack.c.bf16 %v2199, %v2199
    %v2204 = vpack.c.bf16 %v2200, %v2200
    %v2205 = vpack.c.bf16 %v2201, %v2201
    %v2206 = vld [vmem:[#allocation10 + $0x10] sm:$0xf]
    %v2207 = vld [vmem:[#allocation10 + $0x14] sm:$0xf]
    %v2208 = vld [vmem:[#allocation10 + $0x18] sm:$0xf]
    %v2209 = vld [vmem:[#allocation10 + $0x1c] sm:$0xf]
    %v2214 = vunpack.c.l.b16 %v2202
    %v2215 = vunpack.c.l.b16 %v2203
    %v2216 = vunpack.c.l.b16 %v2204
    %v2217 = vunpack.c.l.b16 %v2205
    %v2218 = vpack.c.b16 %v2215, %v2214
    %v2219 = vpack.c.b16 %v2217, %v2216
    %v2224 = vunpack.c.l.b16 %v2206
    %v2225 = vunpack.c.l.b16 %v2207
    %v2226 = vunpack.c.l.b16 %v2208
    %v2227 = vunpack.c.l.b16 %v2209
    %v2228 = vpack.c.b16 %v2225, %v2224
    %v2229 = vpack.c.b16 %v2227, %v2226
    %v2233 = vsel %vm965, %v2218, 0
    %v2236 = vsel %vm965, %v2219, 0
    %2238 = vmatprep.subr.bf16.mxu0 0
    %2239 = vmatpush1.bf16.msra.mxu0 %v2228
    %2240 = vmatprep.subr.bf16.mxu0 0
    %2241 = vmatpush1.bf16.msra.mxu0 %v2229
    %2242 = vmatprep.subr.bf16.mxu0 0
    %2243 = vmatpush1.bf16.msra.mxu0 0
    %2244 = vmatprep.subr.bf16.mxu0 0
    %2245 = vmatpush1.bf16.msra.mxu0 0
    %2246 = vmatprep.subr.bf16.mxu0 0
    %2247 = vmatpush1.bf16.msra.mxu0 0
    %2248 = vmatprep.subr.bf16.mxu0 0
    %2249 = vmatpush1.bf16.msra.mxu0 0
    %2250 = vmatprep.subr.bf16.mxu0 0
    %2251 = vmatpush1.bf16.msra.mxu0 0
    %2252 = vmatprep.subr.bf16.mxu0 0
    %2253 = vmatpush1.bf16.msra.mxu0 0
    %2254 = vmatprep.subr.bf16.mxu0 0
    %2255 = vmatpush1.bf16.msra.mxu0 0
    %2256 = vmatprep.subr.bf16.mxu0 0
    %2257 = vmatpush1.bf16.msra.mxu0 0
    %2258 = vmatprep.subr.bf16.mxu0 0
    %2259 = vmatpush1.bf16.msra.mxu0 0
    %2260 = vmatprep.subr.bf16.mxu0 0
    %2261 = vmatpush1.bf16.msra.mxu0 0
    %2262 = vmatprep.subr.bf16.mxu0 0
    %2263 = vmatpush1.bf16.msra.mxu0 0
    %2264 = vmatprep.subr.bf16.mxu0 0
    %2265 = vmatpush1.bf16.msra.mxu0 0
    %2266 = vmatprep.subr.bf16.mxu0 0
    %2267 = vmatpush1.bf16.msra.mxu0 0
    %2268 = vmatprep.subr.bf16.mxu0 0
    %2269 = vmatpush1.bf16.msra.mxu0 0
    %2270 = vmatprep.mubr.bf16.mxu0 0
    %2271 = vmatmul.mubr.bf16.gmra.mrb[0].mxu0 %v2233
    %v2272 = vpop.f32.mrb[0].mxu0
    %v2273 = vadd.f32 0.0, %v2272
    %v2274 = vpop.f32.mrb[0].mxu0
    %v2275 = vpop.f32.mrb[0].mxu0
    %v2276 = vadd.f32 0.0, %v2275
    %v2277 = vpop.f32.mrb[0].mxu0
    %2278 = vmatprep.mubr.bf16.mxu0 0
    %2279 = vmatmul.mubr.bf16.gmra.mrb[0].mxu0 %v2236
    %v2280 = vpop.f32.mrb[0].mxu0
    %v2281 = vadd.f32 0.0, %v2280
    %v2282 = vpop.f32.mrb[0].mxu0
    %v2283 = vpop.f32.mrb[0].mxu0
    %v2284 = vadd.f32 0.0, %v2283
    %v2285 = vpop.f32.mrb[0].mxu0
    %2286 = vdwg.mxu0
    %v2287 = vadd.f32 %v1510, %v2273
    %v2288 = vadd.f32 %v1511, %v2276
    %v2289 = vadd.f32 %v1512, %v2281
    %v2290 = vadd.f32 %v1513, %v2284
    %2291 = vrot.lane.b32.xlu0 %v1516, 64
    %v2292 = vpop.permute.xlu0 %2291
    %2293 = vrot.lane.b32.xlu0 %v540, 64
    %v2294 = vpop.permute.xlu0 %2293
    %2295 = vrot.lane.b32.xlu0 %v541, 64
    %v2296 = vpop.permute.xlu0 %2295
    %2297 = vrot.lane.b32.xlu0 %v542, 64
    %v2298 = vpop.permute.xlu0 %2297
    %2299 = vrot.lane.b32.xlu0 %v543, 64
    %v2300 = vpop.permute.xlu0 %2299
    %2301 = vrot.lane.b32.xlu0 %v544, 64
    %v2302 = vpop.permute.xlu0 %2301
    %2303 = vrot.lane.b32.xlu0 %v545, 64
    %v2304 = vpop.permute.xlu0 %2303
    %2305 = vrot.lane.b32.xlu0 %v546, 64
    %v2306 = vpop.permute.xlu0 %2305
    %2307 = vrot.lane.b32.xlu0 %v547, 64
    %v2308 = vpop.permute.xlu0 %2307
    %v2310 = vsel %vm965, %v2292, 0
    %v2313 = vsel %vm965, %v2294, 0
    %v2316 = vsel %vm965, %v2296, 0
    %v2319 = vsel %vm965, %v2298, 0
    %v2322 = vsel %vm965, %v2300, 0
    %v2325 = vsel %vm965, %v2302, 0
    %v2328 = vsel %vm965, %v2304, 0
    %v2331 = vsel %vm965, %v2306, 0
    %v2334 = vsel %vm965, %v2308, 0
    %2336 = vmatprep.subr.bf16.mxu0 0
    %2337 = vmatpush1.bf16.xpose.msra.mxu0 %v2313
    %2338 = vmatprep.subr.bf16.mxu0 0
    %2339 = vmatpush1.bf16.xpose.msra.mxu0 %v2316
    %2340 = vmatprep.subr.bf16.mxu0 0
    %2341 = vmatpush1.bf16.xpose.msra.mxu0 %v2319
    %2342 = vmatprep.subr.bf16.mxu0 0
    %2343 = vmatpush1.bf16.xpose.msra.mxu0 %v2322
    %2344 = vmatprep.subr.bf16.mxu0 0
    %2345 = vmatpush1.bf16.xpose.msra.mxu0 %v2325
    %2346 = vmatprep.subr.bf16.mxu0 0
    %2347 = vmatpush1.bf16.xpose.msra.mxu0 %v2328
    %2348 = vmatprep.subr.bf16.mxu0 0
    %2349 = vmatpush1.bf16.xpose.msra.mxu0 %v2331
    %2350 = vmatprep.subr.bf16.mxu0 0
    %2351 = vmatpush1.bf16.xpose.msra.mxu0 %v2334
    %2352 = vmatprep.subr.bf16.mxu0 0
    %2353 = vmatpush1.bf16.xpose.msra.mxu0 0
    %2354 = vmatprep.subr.bf16.mxu0 0
    %2355 = vmatpush1.bf16.xpose.msra.mxu0 0
    %2356 = vmatprep.subr.bf16.mxu0 0
    %2357 = vmatpush1.bf16.xpose.msra.mxu0 0
    %2358 = vmatprep.subr.bf16.mxu0 0
    %2359 = vmatpush1.bf16.xpose.msra.mxu0 0
    %2360 = vmatprep.subr.bf16.mxu0 0
    %2361 = vmatpush1.bf16.xpose.msra.mxu0 0
    %2362 = vmatprep.subr.bf16.mxu0 0
    %2363 = vmatpush1.bf16.xpose.msra.mxu0 0
    %2364 = vmatprep.subr.bf16.mxu0 0
    %2365 = vmatpush1.bf16.xpose.msra.mxu0 0
    %2366 = vmatprep.subr.bf16.mxu0 0
    %2367 = vmatpush1.bf16.xpose.msra.mxu0 0
    %2368 = vmatprep.mubr.bf16.mxu0 0
    %2369 = vmatmul.mubr.bf16.gmra.mrb[0].mxu0 %v2310
    %v2370 = vpop.f32.mrb[0].mxu0
    %v2371 = vadd.f32 0.0, %v2370
    %v2372 = vpop.f32.mrb[0].mxu0
    %v2373 = vpop.f32.mrb[0].mxu0
    %v2374 = vpop.f32.mrb[0].mxu0
    %2375 = vdwg.mxu0
    %2376 = vrot.lane.b32.xlu0 %v548, 64
    %v2377 = vpop.permute.xlu0 %2376
    %2378 = vrot.lane.b32.xlu0 %v549, 64
    %v2379 = vpop.permute.xlu0 %2378
    %2380 = vrot.lane.b32.xlu0 %v550, 64
    %v2381 = vpop.permute.xlu0 %2380
    %2382 = vrot.lane.b32.xlu0 %v551, 64
    %v2383 = vpop.permute.xlu0 %2382
    %2384 = vrot.lane.b32.xlu0 %v552, 64
    %v2385 = vpop.permute.xlu0 %2384
    %2386 = vrot.lane.b32.xlu0 %v553, 64
    %v2387 = vpop.permute.xlu0 %2386
    %2388 = vrot.lane.b32.xlu0 %v554, 64
    %v2389 = vpop.permute.xlu0 %2388
    %2390 = vrot.lane.b32.xlu0 %v555, 64
    %v2391 = vpop.permute.xlu0 %2390
    %v2393 = vsel %vm965, %v2377, 0
    %v2396 = vsel %vm965, %v2379, 0
    %v2399 = vsel %vm965, %v2381, 0
    %v2402 = vsel %vm965, %v2383, 0
    %v2405 = vsel %vm965, %v2385, 0
    %v2408 = vsel %vm965, %v2387, 0
    %v2411 = vsel %vm965, %v2389, 0
    %v2414 = vsel %vm965, %v2391, 0
    %2416 = vmatprep.subr.bf16.mxu0 0
    %2417 = vmatpush1.bf16.xpose.msra.mxu0 %v2393
    %2418 = vmatprep.subr.bf16.mxu0 0
    %2419 = vmatpush1.bf16.xpose.msra.mxu0 %v2396
    %2420 = vmatprep.subr.bf16.mxu0 0
    %2421 = vmatpush1.bf16.xpose.msra.mxu0 %v2399
    %2422 = vmatprep.subr.bf16.mxu0 0
    %2423 = vmatpush1.bf16.xpose.msra.mxu0 %v2402
    %2424 = vmatprep.subr.bf16.mxu0 0
    %2425 = vmatpush1.bf16.xpose.msra.mxu0 %v2405
    %2426 = vmatprep.subr.bf16.mxu0 0
    %2427 = vmatpush1.bf16.xpose.msra.mxu0 %v2408
    %2428 = vmatprep.subr.bf16.mxu0 0
    %2429 = vmatpush1.bf16.xpose.msra.mxu0 %v2411
    %2430 = vmatprep.subr.bf16.mxu0 0
    %2431 = vmatpush1.bf16.xpose.msra.mxu0 %v2414
    %2432 = vmatprep.subr.bf16.mxu0 0
    %2433 = vmatpush1.bf16.xpose.msra.mxu0 0
    %2434 = vmatprep.subr.bf16.mxu0 0
    %2435 = vmatpush1.bf16.xpose.msra.mxu0 0
    %2436 = vmatprep.subr.bf16.mxu0 0
    %2437 = vmatpush1.bf16.xpose.msra.mxu0 0
    %2438 = vmatprep.subr.bf16.mxu0 0
    %2439 = vmatpush1.bf16.xpose.msra.mxu0 0
    %2440 = vmatprep.subr.bf16.mxu0 0
    %2441 = vmatpush1.bf16.xpose.msra.mxu0 0
    %2442 = vmatprep.subr.bf16.mxu0 0
    %2443 = vmatpush1.bf16.xpose.msra.mxu0 0
    %2444 = vmatprep.subr.bf16.mxu0 0
    %2445 = vmatpush1.bf16.xpose.msra.mxu0 0
    %2446 = vmatprep.subr.bf16.mxu0 0
    %2447 = vmatpush1.bf16.xpose.msra.mxu0 0
    %2448 = vmatprep.mubr.bf16.mxu0 0
    %2449 = vmatmul.mubr.bf16.gmra.mrb[0].mxu0 %v2310
    %v2450 = vpop.f32.mrb[0].mxu0
    %v2451 = vadd.f32 0.0, %v2450
    %v2452 = vpop.f32.mrb[0].mxu0
    %v2453 = vpop.f32.mrb[0].mxu0
    %v2454 = vpop.f32.mrb[0].mxu0
    %2455 = vdwg.mxu0
    %2456 = vrot.lane.b32.xlu0 %v556, 64
    %v2457 = vpop.permute.xlu0 %2456
    %2458 = vrot.lane.b32.xlu0 %v557, 64
    %v2459 = vpop.permute.xlu0 %2458
    %2460 = vrot.lane.b32.xlu0 %v558, 64
    %v2461 = vpop.permute.xlu0 %2460
    %2462 = vrot.lane.b32.xlu0 %v559, 64
    %v2463 = vpop.permute.xlu0 %2462
    %2464 = vrot.lane.b32.xlu0 %v560, 64
    %v2465 = vpop.permute.xlu0 %2464
    %2466 = vrot.lane.b32.xlu0 %v561, 64
    %v2467 = vpop.permute.xlu0 %2466
    %2468 = vrot.lane.b32.xlu0 %v562, 64
    %v2469 = vpop.permute.xlu0 %2468
    %2470 = vrot.lane.b32.xlu0 %v563, 64
    %v2471 = vpop.permute.xlu0 %2470
    %v2473 = vsel %vm965, %v2457, 0
    %v2476 = vsel %vm965, %v2459, 0
    %v2479 = vsel %vm965, %v2461, 0
    %v2482 = vsel %vm965, %v2463, 0
    %v2485 = vsel %vm965, %v2465, 0
    %v2488 = vsel %vm965, %v2467, 0
    %v2491 = vsel %vm965, %v2469, 0
    %v2494 = vsel %vm965, %v2471, 0
    %2496 = vmatprep.subr.bf16.mxu0 0
    %2497 = vmatpush1.bf16.xpose.msra.mxu0 %v2473
    %2498 = vmatprep.subr.bf16.mxu0 0
    %2499 = vmatpush1.bf16.xpose.msra.mxu0 %v2476
    %2500 = vmatprep.subr.bf16.mxu0 0
    %2501 = vmatpush1.bf16.xpose.msra.mxu0 %v2479
    %2502 = vmatprep.subr.bf16.mxu0 0
    %2503 = vmatpush1.bf16.xpose.msra.mxu0 %v2482
    %2504 = vmatprep.subr.bf16.mxu0 0
    %2505 = vmatpush1.bf16.xpose.msra.mxu0 %v2485
    %2506 = vmatprep.subr.bf16.mxu0 0
    %2507 = vmatpush1.bf16.xpose.msra.mxu0 %v2488
    %2508 = vmatprep.subr.bf16.mxu0 0
    %2509 = vmatpush1.bf16.xpose.msra.mxu0 %v2491
    %2510 = vmatprep.subr.bf16.mxu0 0
    %2511 = vmatpush1.bf16.xpose.msra.mxu0 %v2494
    %2512 = vmatprep.subr.bf16.mxu0 0
    %2513 = vmatpush1.bf16.xpose.msra.mxu0 0
    %2514 = vmatprep.subr.bf16.mxu0 0
    %2515 = vmatpush1.bf16.xpose.msra.mxu0 0
    %2516 = vmatprep.subr.bf16.mxu0 0
    %2517 = vmatpush1.bf16.xpose.msra.mxu0 0
    %2518 = vmatprep.subr.bf16.mxu0 0
    %2519 = vmatpush1.bf16.xpose.msra.mxu0 0
    %2520 = vmatprep.subr.bf16.mxu0 0
    %2521 = vmatpush1.bf16.xpose.msra.mxu0 0
    %2522 = vmatprep.subr.bf16.mxu0 0
    %2523 = vmatpush1.bf16.xpose.msra.mxu0 0
    %2524 = vmatprep.subr.bf16.mxu0 0
    %2525 = vmatpush1.bf16.xpose.msra.mxu0 0
    %2526 = vmatprep.subr.bf16.mxu0 0
    %2527 = vmatpush1.bf16.xpose.msra.mxu0 0
    %2528 = vmatprep.mubr.bf16.mxu0 0
    %2529 = vmatmul.mubr.bf16.gmra.mrb[0].mxu0 %v2310
    %v2530 = vpop.f32.mrb[0].mxu0
    %v2531 = vadd.f32 0.0, %v2530
    %v2532 = vpop.f32.mrb[0].mxu0
    %v2533 = vpop.f32.mrb[0].mxu0
    %v2534 = vpop.f32.mrb[0].mxu0
    %2535 = vdwg.mxu0
    %2536 = vrot.lane.b32.xlu0 %v564, 64
    %v2537 = vpop.permute.xlu0 %2536
    %2538 = vrot.lane.b32.xlu0 %v565, 64
    %v2539 = vpop.permute.xlu0 %2538
    %2540 = vrot.lane.b32.xlu0 %v566, 64
    %v2541 = vpop.permute.xlu0 %2540
    %2542 = vrot.lane.b32.xlu0 %v567, 64
    %v2543 = vpop.permute.xlu0 %2542
    %2544 = vrot.lane.b32.xlu0 %v568, 64
    %v2545 = vpop.permute.xlu0 %2544
    %2546 = vrot.lane.b32.xlu0 %v569, 64
    %v2547 = vpop.permute.xlu0 %2546
    %2548 = vrot.lane.b32.xlu0 %v570, 64
    %v2549 = vpop.permute.xlu0 %2548
    %2550 = vrot.lane.b32.xlu0 %v571, 64
    %v2551 = vpop.permute.xlu0 %2550
    %v2553 = vsel %vm965, %v2537, 0
    %v2556 = vsel %vm965, %v2539, 0
    %v2559 = vsel %vm965, %v2541, 0
    %v2562 = vsel %vm965, %v2543, 0
    %v2565 = vsel %vm965, %v2545, 0
    %v2568 = vsel %vm965, %v2547, 0
    %v2571 = vsel %vm965, %v2549, 0
    %v2574 = vsel %vm965, %v2551, 0
    %2576 = vmatprep.subr.bf16.mxu0 0
    %2577 = vmatpush1.bf16.xpose.msra.mxu0 %v2553
    %2578 = vmatprep.subr.bf16.mxu0 0
    %2579 = vmatpush1.bf16.xpose.msra.mxu0 %v2556
    %2580 = vmatprep.subr.bf16.mxu0 0
    %2581 = vmatpush1.bf16.xpose.msra.mxu0 %v2559
    %2582 = vmatprep.subr.bf16.mxu0 0
    %2583 = vmatpush1.bf16.xpose.msra.mxu0 %v2562
    %2584 = vmatprep.subr.bf16.mxu0 0
    %2585 = vmatpush1.bf16.xpose.msra.mxu0 %v2565
    %2586 = vmatprep.subr.bf16.mxu0 0
    %2587 = vmatpush1.bf16.xpose.msra.mxu0 %v2568
    %2588 = vmatprep.subr.bf16.mxu0 0
    %2589 = vmatpush1.bf16.xpose.msra.mxu0 %v2571
    %2590 = vmatprep.subr.bf16.mxu0 0
    %2591 = vmatpush1.bf16.xpose.msra.mxu0 %v2574
    %2592 = vmatprep.subr.bf16.mxu0 0
    %2593 = vmatpush1.bf16.xpose.msra.mxu0 0
    %2594 = vmatprep.subr.bf16.mxu0 0
    %2595 = vmatpush1.bf16.xpose.msra.mxu0 0
    %2596 = vmatprep.subr.bf16.mxu0 0
    %2597 = vmatpush1.bf16.xpose.msra.mxu0 0
    %2598 = vmatprep.subr.bf16.mxu0 0
    %2599 = vmatpush1.bf16.xpose.msra.mxu0 0
    %2600 = vmatprep.subr.bf16.mxu0 0
    %2601 = vmatpush1.bf16.xpose.msra.mxu0 0
    %2602 = vmatprep.subr.bf16.mxu0 0
    %2603 = vmatpush1.bf16.xpose.msra.mxu0 0
    %2604 = vmatprep.subr.bf16.mxu0 0
    %2605 = vmatpush1.bf16.xpose.msra.mxu0 0
    %2606 = vmatprep.subr.bf16.mxu0 0
    %2607 = vmatpush1.bf16.xpose.msra.mxu0 0
    %2608 = vmatprep.mubr.bf16.mxu0 0
    %2609 = vmatmul.mubr.bf16.gmra.mrb[0].mxu0 %v2310
    %v2610 = vpop.f32.mrb[0].mxu0
    %v2611 = vadd.f32 0.0, %v2610
    %v2612 = vpop.f32.mrb[0].mxu0
    %v2613 = vpop.f32.mrb[0].mxu0
    %v2614 = vpop.f32.mrb[0].mxu0
    %2615 = vdwg.mxu0
    %2616 = vmax.xlane.f32.xlu0 %v2371
    %v2617 = vpop.xlane.xlu0 %2616
    %2618 = vmax.xlane.f32.xlu0 %v2451
    %v2619 = vpop.xlane.xlu0 %2618
    %2620 = vmax.xlane.f32.xlu0 %v2531
    %v2621 = vpop.xlane.xlu0 %2620
    %2622 = vmax.xlane.f32.xlu0 %v2611
    %v2623 = vpop.xlane.xlu0 %2622
    %v2624 = vsub.f32 %v2371, %v2617
    %v2625 = vsub.f32 %v2451, %v2619
    %v2626 = vsub.f32 %v2531, %v2621
    %v2627 = vsub.f32 %v2611, %v2623
    %v2628 = vmul.f32 %v2624, 1.442695
    %v2629 = vpow.pop %v2628
    %v2630 = vmul.f32 %v2625, 1.442695
    %v2631 = vpow.pop %v2630
    %v2632 = vmul.f32 %v2626, 1.442695
    %v2633 = vpow.pop %v2632
    %v2634 = vmul.f32 %v2627, 1.442695
    %v2635 = vpow.pop %v2634
    %2636 = vadd.xlane.f32.xlu0 %v2629
    %v2637 = vpop.xlane.xlu0 %2636
    %2638 = vadd.xlane.f32.xlu0 %v2631
    %v2639 = vpop.xlane.xlu0 %2638
    %2640 = vadd.xlane.f32.xlu0 %v2633
    %v2641 = vpop.xlane.xlu0 %2640
    %2642 = vadd.xlane.f32.xlu0 %v2635
    %v2643 = vpop.xlane.xlu0 %2642
    %v2644 = vrcp.pop %v2637
    %v2645 = vrcp.pop %v2639
    %v2646 = vrcp.pop %v2641
    %v2647 = vrcp.pop %v2643
    %v2648 = vpack.c.bf16 %v2629, %v2629
    %v2649 = vpack.c.bf16 %v2631, %v2631
    %v2650 = vpack.c.bf16 %v2633, %v2633
    %v2651 = vpack.c.bf16 %v2635, %v2635
    %2652 = vrot.lane.b32.xlu0 %v925, 64
    %v2653 = vpop.permute.xlu0 %2652
    %2654 = vrot.lane.b32.xlu0 %v926, 64
    %v2655 = vpop.permute.xlu0 %2654
    %2656 = vrot.lane.b32.xlu0 %v927, 64
    %v2657 = vpop.permute.xlu0 %2656
    %2658 = vrot.lane.b32.xlu0 %v928, 64
    %v2659 = vpop.permute.xlu0 %2658
    %2660 = vrot.lane.b32.xlu0 %v929, 64
    %v2661 = vpop.permute.xlu0 %2660
    %2662 = vrot.lane.b32.xlu0 %v930, 64
    %v2663 = vpop.permute.xlu0 %2662
    %2664 = vrot.lane.b32.xlu0 %v931, 64
    %v2665 = vpop.permute.xlu0 %2664
    %2666 = vrot.lane.b32.xlu0 %v932, 64
    %v2667 = vpop.permute.xlu0 %2666
    %2676 = vmatprep.subr.bf16.mxu0 0
    %2677 = vmatpush1.bf16.msra.mxu0 %v2653
    %2678 = vmatprep.subr.bf16.mxu0 0
    %2679 = vmatpush1.bf16.msra.mxu0 %v2655
    %2680 = vmatprep.subr.bf16.mxu0 0
    %2681 = vmatpush1.bf16.msra.mxu0 %v2657
    %2682 = vmatprep.subr.bf16.mxu0 0
    %2683 = vmatpush1.bf16.msra.mxu0 %v2659
    %2684 = vmatprep.subr.bf16.mxu0 0
    %2685 = vmatpush1.bf16.msra.mxu0 %v2661
    %2686 = vmatprep.subr.bf16.mxu0 0
    %2687 = vmatpush1.bf16.msra.mxu0 %v2663
    %2688 = vmatprep.subr.bf16.mxu0 0
    %2689 = vmatpush1.bf16.msra.mxu0 %v2665
    %2690 = vmatprep.subr.bf16.mxu0 0
    %2691 = vmatpush1.bf16.msra.mxu0 %v2667
    %2692 = vmatprep.subr.bf16.mxu0 0
    %2693 = vmatpush1.bf16.msra.mxu0 0
    %2694 = vmatprep.subr.bf16.mxu0 0
    %2695 = vmatpush1.bf16.msra.mxu0 0
    %2696 = vmatprep.subr.bf16.mxu0 0
    %2697 = vmatpush1.bf16.msra.mxu0 0
    %2698 = vmatprep.subr.bf16.mxu0 0
    %2699 = vmatpush1.bf16.msra.mxu0 0
    %2700 = vmatprep.subr.bf16.mxu0 0
    %2701 = vmatpush1.bf16.msra.mxu0 0
    %2702 = vmatprep.subr.bf16.mxu0 0
    %2703 = vmatpush1.bf16.msra.mxu0 0
    %2704 = vmatprep.subr.bf16.mxu0 0
    %2705 = vmatpush1.bf16.msra.mxu0 0
    %2706 = vmatprep.subr.bf16.mxu0 0
    %2707 = vmatpush1.bf16.msra.mxu0 0
    %2708 = vmatprep.mubr.bf16.mxu0 0
    %2709 = vmatmul.mubr.bf16.gmra.mrb[0].mxu0 %v2648
    %v2710 = vpop.f32.mrb[0].mxu0
    %v2711 = vadd.f32 0.0, %v2710
    %v2712 = vpop.f32.mrb[0].mxu0
    %v2713 = vpop.f32.mrb[0].mxu0
    %v2714 = vpop.f32.mrb[0].mxu0
    %2715 = vdwg.mxu0
    %2716 = vrot.lane.b32.xlu0 %v933, 64
    %v2717 = vpop.permute.xlu0 %2716
    %2718 = vrot.lane.b32.xlu0 %v934, 64
    %v2719 = vpop.permute.xlu0 %2718
    %2720 = vrot.lane.b32.xlu0 %v935, 64
    %v2721 = vpop.permute.xlu0 %2720
    %2722 = vrot.lane.b32.xlu0 %v936, 64
    %v2723 = vpop.permute.xlu0 %2722
    %2724 = vrot.lane.b32.xlu0 %v937, 64
    %v2725 = vpop.permute.xlu0 %2724
    %2726 = vrot.lane.b32.xlu0 %v938, 64
    %v2727 = vpop.permute.xlu0 %2726
    %2728 = vrot.lane.b32.xlu0 %v939, 64
    %v2729 = vpop.permute.xlu0 %2728
    %2730 = vrot.lane.b32.xlu0 %v940, 64
    %v2731 = vpop.permute.xlu0 %2730
    %2740 = vmatprep.subr.bf16.mxu0 0
    %2741 = vmatpush1.bf16.msra.mxu0 %v2717
    %2742 = vmatprep.subr.bf16.mxu0 0
    %2743 = vmatpush1.bf16.msra.mxu0 %v2719
    %2744 = vmatprep.subr.bf16.mxu0 0
    %2745 = vmatpush1.bf16.msra.mxu0 %v2721
    %2746 = vmatprep.subr.bf16.mxu0 0
    %2747 = vmatpush1.bf16.msra.mxu0 %v2723
    %2748 = vmatprep.subr.bf16.mxu0 0
    %2749 = vmatpush1.bf16.msra.mxu0 %v2725
    %2750 = vmatprep.subr.bf16.mxu0 0
    %2751 = vmatpush1.bf16.msra.mxu0 %v2727
    %2752 = vmatprep.subr.bf16.mxu0 0
    %2753 = vmatpush1.bf16.msra.mxu0 %v2729
    %2754 = vmatprep.subr.bf16.mxu0 0
    %2755 = vmatpush1.bf16.msra.mxu0 %v2731
    %2756 = vmatprep.subr.bf16.mxu0 0
    %2757 = vmatpush1.bf16.msra.mxu0 0
    %2758 = vmatprep.subr.bf16.mxu0 0
    %2759 = vmatpush1.bf16.msra.mxu0 0
    %2760 = vmatprep.subr.bf16.mxu0 0
    %2761 = vmatpush1.bf16.msra.mxu0 0
    %2762 = vmatprep.subr.bf16.mxu0 0
    %2763 = vmatpush1.bf16.msra.mxu0 0
    %2764 = vmatprep.subr.bf16.mxu0 0
    %2765 = vmatpush1.bf16.msra.mxu0 0
    %2766 = vmatprep.subr.bf16.mxu0 0
    %2767 = vmatpush1.bf16.msra.mxu0 0
    %2768 = vmatprep.subr.bf16.mxu0 0
    %2769 = vmatpush1.bf16.msra.mxu0 0
    %2770 = vmatprep.subr.bf16.mxu0 0
    %2771 = vmatpush1.bf16.msra.mxu0 0
    %2772 = vmatprep.mubr.bf16.mxu0 0
    %2773 = vmatmul.mubr.bf16.gmra.mrb[0].mxu0 %v2649
    %v2774 = vpop.f32.mrb[0].mxu0
    %v2775 = vadd.f32 0.0, %v2774
    %v2776 = vpop.f32.mrb[0].mxu0
    %v2777 = vpop.f32.mrb[0].mxu0
    %v2778 = vpop.f32.mrb[0].mxu0
    %2779 = vdwg.mxu0
    %2780 = vrot.lane.b32.xlu0 %v941, 64
    %v2781 = vpop.permute.xlu0 %2780
    %2782 = vrot.lane.b32.xlu0 %v942, 64
    %v2783 = vpop.permute.xlu0 %2782
    %2784 = vrot.lane.b32.xlu0 %v943, 64
    %v2785 = vpop.permute.xlu0 %2784
    %2786 = vrot.lane.b32.xlu0 %v944, 64
    %v2787 = vpop.permute.xlu0 %2786
    %2788 = vrot.lane.b32.xlu0 %v945, 64
    %v2789 = vpop.permute.xlu0 %2788
    %2790 = vrot.lane.b32.xlu0 %v946, 64
    %v2791 = vpop.permute.xlu0 %2790
    %2792 = vrot.lane.b32.xlu0 %v947, 64
    %v2793 = vpop.permute.xlu0 %2792
    %2794 = vrot.lane.b32.xlu0 %v948, 64
    %v2795 = vpop.permute.xlu0 %2794
    %2804 = vmatprep.subr.bf16.mxu0 0
    %2805 = vmatpush1.bf16.msra.mxu0 %v2781
    %2806 = vmatprep.subr.bf16.mxu0 0
    %2807 = vmatpush1.bf16.msra.mxu0 %v2783
    %2808 = vmatprep.subr.bf16.mxu0 0
    %2809 = vmatpush1.bf16.msra.mxu0 %v2785
    %2810 = vmatprep.subr.bf16.mxu0 0
    %2811 = vmatpush1.bf16.msra.mxu0 %v2787
    %2812 = vmatprep.subr.bf16.mxu0 0
    %2813 = vmatpush1.bf16.msra.mxu0 %v2789
    %2814 = vmatprep.subr.bf16.mxu0 0
    %2815 = vmatpush1.bf16.msra.mxu0 %v2791
    %2816 = vmatprep.subr.bf16.mxu0 0
    %2817 = vmatpush1.bf16.msra.mxu0 %v2793
    %2818 = vmatprep.subr.bf16.mxu0 0
    %2819 = vmatpush1.bf16.msra.mxu0 %v2795
    %2820 = vmatprep.subr.bf16.mxu0 0
    %2821 = vmatpush1.bf16.msra.mxu0 0
    %2822 = vmatprep.subr.bf16.mxu0 0
    %2823 = vmatpush1.bf16.msra.mxu0 0
    %2824 = vmatprep.subr.bf16.mxu0 0
    %2825 = vmatpush1.bf16.msra.mxu0 0
    %2826 = vmatprep.subr.bf16.mxu0 0
    %2827 = vmatpush1.bf16.msra.mxu0 0
    %2828 = vmatprep.subr.bf16.mxu0 0
    %2829 = vmatpush1.bf16.msra.mxu0 0
    %2830 = vmatprep.subr.bf16.mxu0 0
    %2831 = vmatpush1.bf16.msra.mxu0 0
    %2832 = vmatprep.subr.bf16.mxu0 0
    %2833 = vmatpush1.bf16.msra.mxu0 0
    %2834 = vmatprep.subr.bf16.mxu0 0
    %2835 = vmatpush1.bf16.msra.mxu0 0
    %2836 = vmatprep.mubr.bf16.mxu0 0
    %2837 = vmatmul.mubr.bf16.gmra.mrb[0].mxu0 %v2650
    %v2838 = vpop.f32.mrb[0].mxu0
    %v2839 = vadd.f32 0.0, %v2838
    %v2840 = vpop.f32.mrb[0].mxu0
    %v2841 = vpop.f32.mrb[0].mxu0
    %v2842 = vpop.f32.mrb[0].mxu0
    %2843 = vdwg.mxu0
    %2844 = vrot.lane.b32.xlu0 %v949, 64
    %v2845 = vpop.permute.xlu0 %2844
    %2846 = vrot.lane.b32.xlu0 %v950, 64
    %v2847 = vpop.permute.xlu0 %2846
    %2848 = vrot.lane.b32.xlu0 %v951, 64
    %v2849 = vpop.permute.xlu0 %2848
    %2850 = vrot.lane.b32.xlu0 %v952, 64
    %v2851 = vpop.permute.xlu0 %2850
    %2852 = vrot.lane.b32.xlu0 %v953, 64
    %v2853 = vpop.permute.xlu0 %2852
    %2854 = vrot.lane.b32.xlu0 %v954, 64
    %v2855 = vpop.permute.xlu0 %2854
    %2856 = vrot.lane.b32.xlu0 %v955, 64
    %v2857 = vpop.permute.xlu0 %2856
    %2858 = vrot.lane.b32.xlu0 %v956, 64
    %v2859 = vpop.permute.xlu0 %2858
    %2868 = vmatprep.subr.bf16.mxu0 0
    %2869 = vmatpush1.bf16.msra.mxu0 %v2845
    %2870 = vmatprep.subr.bf16.mxu0 0
    %2871 = vmatpush1.bf16.msra.mxu0 %v2847
    %2872 = vmatprep.subr.bf16.mxu0 0
    %2873 = vmatpush1.bf16.msra.mxu0 %v2849
    %2874 = vmatprep.subr.bf16.mxu0 0
    %2875 = vmatpush1.bf16.msra.mxu0 %v2851
    %2876 = vmatprep.subr.bf16.mxu0 0
    %2877 = vmatpush1.bf16.msra.mxu0 %v2853
    %2878 = vmatprep.subr.bf16.mxu0 0
    %2879 = vmatpush1.bf16.msra.mxu0 %v2855
    %2880 = vmatprep.subr.bf16.mxu0 0
    %2881 = vmatpush1.bf16.msra.mxu0 %v2857
    %2882 = vmatprep.subr.bf16.mxu0 0
    %2883 = vmatpush1.bf16.msra.mxu0 %v2859
    %2884 = vmatprep.subr.bf16.mxu0 0
    %2885 = vmatpush1.bf16.msra.mxu0 0
    %2886 = vmatprep.subr.bf16.mxu0 0
    %2887 = vmatpush1.bf16.msra.mxu0 0
    %2888 = vmatprep.subr.bf16.mxu0 0
    %2889 = vmatpush1.bf16.msra.mxu0 0
    %2890 = vmatprep.subr.bf16.mxu0 0
    %2891 = vmatpush1.bf16.msra.mxu0 0
    %2892 = vmatprep.subr.bf16.mxu0 0
    %2893 = vmatpush1.bf16.msra.mxu0 0
    %2894 = vmatprep.subr.bf16.mxu0 0
    %2895 = vmatpush1.bf16.msra.mxu0 0
    %2896 = vmatprep.subr.bf16.mxu0 0
    %2897 = vmatpush1.bf16.msra.mxu0 0
    %2898 = vmatprep.subr.bf16.mxu0 0
    %2899 = vmatpush1.bf16.msra.mxu0 0
    %2900 = vmatprep.mubr.bf16.mxu0 0
    %2901 = vmatmul.mubr.bf16.gmra.mrb[0].mxu0 %v2651
    %v2902 = vpop.f32.mrb[0].mxu0
    %v2903 = vadd.f32 0.0, %v2902
    %v2904 = vpop.f32.mrb[0].mxu0
    %v2905 = vpop.f32.mrb[0].mxu0
    %v2906 = vpop.f32.mrb[0].mxu0
    %2907 = vdwg.mxu0
    %v2908 = vmul.f32 %v2711, %v2644
    %v2909 = vmul.f32 %v2775, %v2645
    %v2910 = vmul.f32 %v2839, %v2646
    %v2911 = vmul.f32 %v2903, %v2647
    %v2912 = vpack.c.bf16 %v2908, %v2908
    %v2913 = vpack.c.bf16 %v2909, %v2909
    %v2914 = vpack.c.bf16 %v2910, %v2910
    %v2915 = vpack.c.bf16 %v2911, %v2911
    %v2916 = vld [vmem:[#allocation10 + $0x20] sm:$0xf]
    %v2917 = vld [vmem:[#allocation10 + $0x24] sm:$0xf]
    %v2918 = vld [vmem:[#allocation10 + $0x28] sm:$0xf]
    %v2919 = vld [vmem:[#allocation10 + $0x2c] sm:$0xf]
    %v2924 = vunpack.c.l.b16 %v2912
    %v2925 = vunpack.c.l.b16 %v2913
    %v2926 = vunpack.c.l.b16 %v2914
    %v2927 = vunpack.c.l.b16 %v2915
    %v2928 = vpack.c.b16 %v2925, %v2924
    %v2929 = vpack.c.b16 %v2927, %v2926
    %v2934 = vunpack.c.l.b16 %v2916
    %v2935 = vunpack.c.l.b16 %v2917
    %v2936 = vunpack.c.l.b16 %v2918
    %v2937 = vunpack.c.l.b16 %v2919
    %v2938 = vpack.c.b16 %v2935, %v2934
    %v2939 = vpack.c.b16 %v2937, %v2936
    %v2943 = vsel %vm965, %v2928, 0
    %v2946 = vsel %vm965, %v2929, 0
    %2948 = vmatprep.subr.bf16.mxu0 0
    %2949 = vmatpush1.bf16.msra.mxu0 %v2938
    %2950 = vmatprep.subr.bf16.mxu0 0
    %2951 = vmatpush1.bf16.msra.mxu0 %v2939
    %2952 = vmatprep.subr.bf16.mxu0 0
    %2953 = vmatpush1.bf16.msra.mxu0 0
    %2954 = vmatprep.subr.bf16.mxu0 0
    %2955 = vmatpush1.bf16.msra.mxu0 0
    %2956 = vmatprep.subr.bf16.mxu0 0
    %2957 = vmatpush1.bf16.msra.mxu0 0
    %2958 = vmatprep.subr.bf16.mxu0 0
    %2959 = vmatpush1.bf16.msra.mxu0 0
    %2960 = vmatprep.subr.bf16.mxu0 0
    %2961 = vmatpush1.bf16.msra.mxu0 0
    %2962 = vmatprep.subr.bf16.mxu0 0
    %2963 = vmatpush1.bf16.msra.mxu0 0
    %2964 = vmatprep.subr.bf16.mxu0 0
    %2965 = vmatpush1.bf16.msra.mxu0 0
    %2966 = vmatprep.subr.bf16.mxu0 0
    %2967 = vmatpush1.bf16.msra.mxu0 0
    %2968 = vmatprep.subr.bf16.mxu0 0
    %2969 = vmatpush1.bf16.msra.mxu0 0
    %2970 = vmatprep.subr.bf16.mxu0 0
    %2971 = vmatpush1.bf16.msra.mxu0 0
    %2972 = vmatprep.subr.bf16.mxu0 0
    %2973 = vmatpush1.bf16.msra.mxu0 0
    %2974 = vmatprep.subr.bf16.mxu0 0
    %2975 = vmatpush1.bf16.msra.mxu0 0
    %2976 = vmatprep.subr.bf16.mxu0 0
    %2977 = vmatpush1.bf16.msra.mxu0 0
    %2978 = vmatprep.subr.bf16.mxu0 0
    %2979 = vmatpush1.bf16.msra.mxu0 0
    %2980 = vmatprep.mubr.bf16.mxu0 0
    %2981 = vmatmul.mubr.bf16.gmra.mrb[0].mxu0 %v2943
    %v2982 = vpop.f32.mrb[0].mxu0
    %v2983 = vadd.f32 0.0, %v2982
    %v2984 = vpop.f32.mrb[0].mxu0
    %v2985 = vpop.f32.mrb[0].mxu0
    %v2986 = vadd.f32 0.0, %v2985
    %v2987 = vpop.f32.mrb[0].mxu0
    %2988 = vmatprep.mubr.bf16.mxu0 0
    %2989 = vmatmul.mubr.bf16.gmra.mrb[0].mxu0 %v2946
    %v2990 = vpop.f32.mrb[0].mxu0
    %v2991 = vadd.f32 0.0, %v2990
    %v2992 = vpop.f32.mrb[0].mxu0
    %v2993 = vpop.f32.mrb[0].mxu0
    %v2994 = vadd.f32 0.0, %v2993
    %v2995 = vpop.f32.mrb[0].mxu0
    %2996 = vdwg.mxu0
    %v2997 = vadd.f32 %v2287, %v2983
    %v2998 = vadd.f32 %v2288, %v2986
    %v2999 = vadd.f32 %v2289, %v2991
    %v3000 = vadd.f32 %v2290, %v2994
    %3001 = vrot.lane.b32.xlu0 %v1516, 32
    %v3002 = vpop.permute.xlu0 %3001
    %3003 = vrot.lane.b32.xlu0 %v540, 32
    %v3004 = vpop.permute.xlu0 %3003
    %3005 = vrot.lane.b32.xlu0 %v541, 32
    %v3006 = vpop.permute.xlu0 %3005
    %3007 = vrot.lane.b32.xlu0 %v542, 32
    %v3008 = vpop.permute.xlu0 %3007
    %3009 = vrot.lane.b32.xlu0 %v543, 32
    %v3010 = vpop.permute.xlu0 %3009
    %3011 = vrot.lane.b32.xlu0 %v544, 32
    %v3012 = vpop.permute.xlu0 %3011
    %3013 = vrot.lane.b32.xlu0 %v545, 32
    %v3014 = vpop.permute.xlu0 %3013
    %3015 = vrot.lane.b32.xlu0 %v546, 32
    %v3016 = vpop.permute.xlu0 %3015
    %3017 = vrot.lane.b32.xlu0 %v547, 32
    %v3018 = vpop.permute.xlu0 %3017
    %v3020 = vsel %vm965, %v3002, 0
    %v3023 = vsel %vm965, %v3004, 0
    %v3026 = vsel %vm965, %v3006, 0
    %v3029 = vsel %vm965, %v3008, 0
    %v3032 = vsel %vm965, %v3010, 0
    %v3035 = vsel %vm965, %v3012, 0
    %v3038 = vsel %vm965, %v3014, 0
    %v3041 = vsel %vm965, %v3016, 0
    %v3044 = vsel %vm965, %v3018, 0
    %3046 = vmatprep.subr.bf16.mxu0 0
    %3047 = vmatpush1.bf16.xpose.msra.mxu0 %v3023
    %3048 = vmatprep.subr.bf16.mxu0 0
    %3049 = vmatpush1.bf16.xpose.msra.mxu0 %v3026
    %3050 = vmatprep.subr.bf16.mxu0 0
    %3051 = vmatpush1.bf16.xpose.msra.mxu0 %v3029
    %3052 = vmatprep.subr.bf16.mxu0 0
    %3053 = vmatpush1.bf16.xpose.msra.mxu0 %v3032
    %3054 = vmatprep.subr.bf16.mxu0 0
    %3055 = vmatpush1.bf16.xpose.msra.mxu0 %v3035
    %3056 = vmatprep.subr.bf16.mxu0 0
    %3057 = vmatpush1.bf16.xpose.msra.mxu0 %v3038
    %3058 = vmatprep.subr.bf16.mxu0 0
    %3059 = vmatpush1.bf16.xpose.msra.mxu0 %v3041
    %3060 = vmatprep.subr.bf16.mxu0 0
    %3061 = vmatpush1.bf16.xpose.msra.mxu0 %v3044
    %3062 = vmatprep.subr.bf16.mxu0 0
    %3063 = vmatpush1.bf16.xpose.msra.mxu0 0
    %3064 = vmatprep.subr.bf16.mxu0 0
    %3065 = vmatpush1.bf16.xpose.msra.mxu0 0
    %3066 = vmatprep.subr.bf16.mxu0 0
    %3067 = vmatpush1.bf16.xpose.msra.mxu0 0
    %3068 = vmatprep.subr.bf16.mxu0 0
    %3069 = vmatpush1.bf16.xpose.msra.mxu0 0
    %3070 = vmatprep.subr.bf16.mxu0 0
    %3071 = vmatpush1.bf16.xpose.msra.mxu0 0
    %3072 = vmatprep.subr.bf16.mxu0 0
    %3073 = vmatpush1.bf16.xpose.msra.mxu0 0
    %3074 = vmatprep.subr.bf16.mxu0 0
    %3075 = vmatpush1.bf16.xpose.msra.mxu0 0
    %3076 = vmatprep.subr.bf16.mxu0 0
    %3077 = vmatpush1.bf16.xpose.msra.mxu0 0
    %3078 = vmatprep.mubr.bf16.mxu0 0
    %3079 = vmatmul.mubr.bf16.gmra.mrb[0].mxu0 %v3020
    %v3080 = vpop.f32.mrb[0].mxu0
    %v3081 = vadd.f32 0.0, %v3080
    %v3082 = vpop.f32.mrb[0].mxu0
    %v3083 = vpop.f32.mrb[0].mxu0
    %v3084 = vpop.f32.mrb[0].mxu0
    %3085 = vdwg.mxu0
    %3086 = vrot.lane.b32.xlu0 %v548, 32
    %v3087 = vpop.permute.xlu0 %3086
    %3088 = vrot.lane.b32.xlu0 %v549, 32
    %v3089 = vpop.permute.xlu0 %3088
    %3090 = vrot.lane.b32.xlu0 %v550, 32
    %v3091 = vpop.permute.xlu0 %3090
    %3092 = vrot.lane.b32.xlu0 %v551, 32
    %v3093 = vpop.permute.xlu0 %3092
    %3094 = vrot.lane.b32.xlu0 %v552, 32
    %v3095 = vpop.permute.xlu0 %3094
    %3096 = vrot.lane.b32.xlu0 %v553, 32
    %v3097 = vpop.permute.xlu0 %3096
    %3098 = vrot.lane.b32.xlu0 %v554, 32
    %v3099 = vpop.permute.xlu0 %3098
    %3100 = vrot.lane.b32.xlu0 %v555, 32
    %v3101 = vpop.permute.xlu0 %3100
    %v3103 = vsel %vm965, %v3087, 0
    %v3106 = vsel %vm965, %v3089, 0
    %v3109 = vsel %vm965, %v3091, 0
    %v3112 = vsel %vm965, %v3093, 0
    %v3115 = vsel %vm965, %v3095, 0
    %v3118 = vsel %vm965, %v3097, 0
    %v3121 = vsel %vm965, %v3099, 0
    %v3124 = vsel %vm965, %v3101, 0
    %3126 = vmatprep.subr.bf16.mxu0 0
    %3127 = vmatpush1.bf16.xpose.msra.mxu0 %v3103
    %3128 = vmatprep.subr.bf16.mxu0 0
    %3129 = vmatpush1.bf16.xpose.msra.mxu0 %v3106
    %3130 = vmatprep.subr.bf16.mxu0 0
    %3131 = vmatpush1.bf16.xpose.msra.mxu0 %v3109
    %3132 = vmatprep.subr.bf16.mxu0 0
    %3133 = vmatpush1.bf16.xpose.msra.mxu0 %v3112
    %3134 = vmatprep.subr.bf16.mxu0 0
    %3135 = vmatpush1.bf16.xpose.msra.mxu0 %v3115
    %3136 = vmatprep.subr.bf16.mxu0 0
    %3137 = vmatpush1.bf16.xpose.msra.mxu0 %v3118
    %3138 = vmatprep.subr.bf16.mxu0 0
    %3139 = vmatpush1.bf16.xpose.msra.mxu0 %v3121
    %3140 = vmatprep.subr.bf16.mxu0 0
    %3141 = vmatpush1.bf16.xpose.msra.mxu0 %v3124
    %3142 = vmatprep.subr.bf16.mxu0 0
    %3143 = vmatpush1.bf16.xpose.msra.mxu0 0
    %3144 = vmatprep.subr.bf16.mxu0 0
    %3145 = vmatpush1.bf16.xpose.msra.mxu0 0
    %3146 = vmatprep.subr.bf16.mxu0 0
    %3147 = vmatpush1.bf16.xpose.msra.mxu0 0
    %3148 = vmatprep.subr.bf16.mxu0 0
    %3149 = vmatpush1.bf16.xpose.msra.mxu0 0
    %3150 = vmatprep.subr.bf16.mxu0 0
    %3151 = vmatpush1.bf16.xpose.msra.mxu0 0
    %3152 = vmatprep.subr.bf16.mxu0 0
    %3153 = vmatpush1.bf16.xpose.msra.mxu0 0
    %3154 = vmatprep.subr.bf16.mxu0 0
    %3155 = vmatpush1.bf16.xpose.msra.mxu0 0
    %3156 = vmatprep.subr.bf16.mxu0 0
    %3157 = vmatpush1.bf16.xpose.msra.mxu0 0
    %3158 = vmatprep.mubr.bf16.mxu0 0
    %3159 = vmatmul.mubr.bf16.gmra.mrb[0].mxu0 %v3020
    %v3160 = vpop.f32.mrb[0].mxu0
    %v3161 = vadd.f32 0.0, %v3160
    %v3162 = vpop.f32.mrb[0].mxu0
    %v3163 = vpop.f32.mrb[0].mxu0
    %v3164 = vpop.f32.mrb[0].mxu0
    %3165 = vdwg.mxu0
    %3166 = vrot.lane.b32.xlu0 %v556, 32
    %v3167 = vpop.permute.xlu0 %3166
    %3168 = vrot.lane.b32.xlu0 %v557, 32
    %v3169 = vpop.permute.xlu0 %3168
    %3170 = vrot.lane.b32.xlu0 %v558, 32
    %v3171 = vpop.permute.xlu0 %3170
    %3172 = vrot.lane.b32.xlu0 %v559, 32
    %v3173 = vpop.permute.xlu0 %3172
    %3174 = vrot.lane.b32.xlu0 %v560, 32
    %v3175 = vpop.permute.xlu0 %3174
    %3176 = vrot.lane.b32.xlu0 %v561, 32
    %v3177 = vpop.permute.xlu0 %3176
    %3178 = vrot.lane.b32.xlu0 %v562, 32
    %v3179 = vpop.permute.xlu0 %3178
    %3180 = vrot.lane.b32.xlu0 %v563, 32
    %v3181 = vpop.permute.xlu0 %3180
    %v3183 = vsel %vm965, %v3167, 0
    %v3186 = vsel %vm965, %v3169, 0
    %v3189 = vsel %vm965, %v3171, 0
    %v3192 = vsel %vm965, %v3173, 0
    %v3195 = vsel %vm965, %v3175, 0
    %v3198 = vsel %vm965, %v3177, 0
    %v3201 = vsel %vm965, %v3179, 0
    %v3204 = vsel %vm965, %v3181, 0
    %3206 = vmatprep.subr.bf16.mxu0 0
    %3207 = vmatpush1.bf16.xpose.msra.mxu0 %v3183
    %3208 = vmatprep.subr.bf16.mxu0 0
    %3209 = vmatpush1.bf16.xpose.msra.mxu0 %v3186
    %3210 = vmatprep.subr.bf16.mxu0 0
    %3211 = vmatpush1.bf16.xpose.msra.mxu0 %v3189
    %3212 = vmatprep.subr.bf16.mxu0 0
    %3213 = vmatpush1.bf16.xpose.msra.mxu0 %v3192
    %3214 = vmatprep.subr.bf16.mxu0 0
    %3215 = vmatpush1.bf16.xpose.msra.mxu0 %v3195
    %3216 = vmatprep.subr.bf16.mxu0 0
    %3217 = vmatpush1.bf16.xpose.msra.mxu0 %v3198
    %3218 = vmatprep.subr.bf16.mxu0 0
    %3219 = vmatpush1.bf16.xpose.msra.mxu0 %v3201
    %3220 = vmatprep.subr.bf16.mxu0 0
    %3221 = vmatpush1.bf16.xpose.msra.mxu0 %v3204
    %3222 = vmatprep.subr.bf16.mxu0 0
    %3223 = vmatpush1.bf16.xpose.msra.mxu0 0
    %3224 = vmatprep.subr.bf16.mxu0 0
    %3225 = vmatpush1.bf16.xpose.msra.mxu0 0
    %3226 = vmatprep.subr.bf16.mxu0 0
    %3227 = vmatpush1.bf16.xpose.msra.mxu0 0
    %3228 = vmatprep.subr.bf16.mxu0 0
    %3229 = vmatpush1.bf16.xpose.msra.mxu0 0
    %3230 = vmatprep.subr.bf16.mxu0 0
    %3231 = vmatpush1.bf16.xpose.msra.mxu0 0
    %3232 = vmatprep.subr.bf16.mxu0 0
    %3233 = vmatpush1.bf16.xpose.msra.mxu0 0
    %3234 = vmatprep.subr.bf16.mxu0 0
    %3235 = vmatpush1.bf16.xpose.msra.mxu0 0
    %3236 = vmatprep.subr.bf16.mxu0 0
    %3237 = vmatpush1.bf16.xpose.msra.mxu0 0
    %3238 = vmatprep.mubr.bf16.mxu0 0
    %3239 = vmatmul.mubr.bf16.gmra.mrb[0].mxu0 %v3020
    %v3240 = vpop.f32.mrb[0].mxu0
    %v3241 = vadd.f32 0.0, %v3240
    %v3242 = vpop.f32.mrb[0].mxu0
    %v3243 = vpop.f32.mrb[0].mxu0
    %v3244 = vpop.f32.mrb[0].mxu0
    %3245 = vdwg.mxu0
    %3246 = vrot.lane.b32.xlu0 %v564, 32
    %v3247 = vpop.permute.xlu0 %3246
    %3248 = vrot.lane.b32.xlu0 %v565, 32
    %v3249 = vpop.permute.xlu0 %3248
    %3250 = vrot.lane.b32.xlu0 %v566, 32
    %v3251 = vpop.permute.xlu0 %3250
    %3252 = vrot.lane.b32.xlu0 %v567, 32
    %v3253 = vpop.permute.xlu0 %3252
    %3254 = vrot.lane.b32.xlu0 %v568, 32
    %v3255 = vpop.permute.xlu0 %3254
    %3256 = vrot.lane.b32.xlu0 %v569, 32
    %v3257 = vpop.permute.xlu0 %3256
    %3258 = vrot.lane.b32.xlu0 %v570, 32
    %v3259 = vpop.permute.xlu0 %3258
    %3260 = vrot.lane.b32.xlu0 %v571, 32
    %v3261 = vpop.permute.xlu0 %3260
    %v3263 = vsel %vm965, %v3247, 0
    %v3266 = vsel %vm965, %v3249, 0
    %v3269 = vsel %vm965, %v3251, 0
    %v3272 = vsel %vm965, %v3253, 0
    %v3275 = vsel %vm965, %v3255, 0
    %v3278 = vsel %vm965, %v3257, 0
    %v3281 = vsel %vm965, %v3259, 0
    %v3284 = vsel %vm965, %v3261, 0
    %3286 = vmatprep.subr.bf16.mxu0 0
    %3287 = vmatpush1.bf16.xpose.msra.mxu0 %v3263
    %3288 = vmatprep.subr.bf16.mxu0 0
    %3289 = vmatpush1.bf16.xpose.msra.mxu0 %v3266
    %3290 = vmatprep.subr.bf16.mxu0 0
    %3291 = vmatpush1.bf16.xpose.msra.mxu0 %v3269
    %3292 = vmatprep.subr.bf16.mxu0 0
    %3293 = vmatpush1.bf16.xpose.msra.mxu0 %v3272
    %3294 = vmatprep.subr.bf16.mxu0 0
    %3295 = vmatpush1.bf16.xpose.msra.mxu0 %v3275
    %3296 = vmatprep.subr.bf16.mxu0 0
    %3297 = vmatpush1.bf16.xpose.msra.mxu0 %v3278
    %3298 = vmatprep.subr.bf16.mxu0 0
    %3299 = vmatpush1.bf16.xpose.msra.mxu0 %v3281
    %3300 = vmatprep.subr.bf16.mxu0 0
    %3301 = vmatpush1.bf16.xpose.msra.mxu0 %v3284
    %3302 = vmatprep.subr.bf16.mxu0 0
    %3303 = vmatpush1.bf16.xpose.msra.mxu0 0
    %3304 = vmatprep.subr.bf16.mxu0 0
    %3305 = vmatpush1.bf16.xpose.msra.mxu0 0
    %3306 = vmatprep.subr.bf16.mxu0 0
    %3307 = vmatpush1.bf16.xpose.msra.mxu0 0
    %3308 = vmatprep.subr.bf16.mxu0 0
    %3309 = vmatpush1.bf16.xpose.msra.mxu0 0
    %3310 = vmatprep.subr.bf16.mxu0 0
    %3311 = vmatpush1.bf16.xpose.msra.mxu0 0
    %3312 = vmatprep.subr.bf16.mxu0 0
    %3313 = vmatpush1.bf16.xpose.msra.mxu0 0
    %3314 = vmatprep.subr.bf16.mxu0 0
    %3315 = vmatpush1.bf16.xpose.msra.mxu0 0
    %3316 = vmatprep.subr.bf16.mxu0 0
    %3317 = vmatpush1.bf16.xpose.msra.mxu0 0
    %3318 = vmatprep.mubr.bf16.mxu0 0
    %3319 = vmatmul.mubr.bf16.gmra.mrb[0].mxu0 %v3020
    %v3320 = vpop.f32.mrb[0].mxu0
    %v3321 = vadd.f32 0.0, %v3320
    %v3322 = vpop.f32.mrb[0].mxu0
    %v3323 = vpop.f32.mrb[0].mxu0
    %v3324 = vpop.f32.mrb[0].mxu0
    %3325 = vdwg.mxu0
    %3326 = vmax.xlane.f32.xlu0 %v3081
    %v3327 = vpop.xlane.xlu0 %3326
    %3328 = vmax.xlane.f32.xlu0 %v3161
    %v3329 = vpop.xlane.xlu0 %3328
    %3330 = vmax.xlane.f32.xlu0 %v3241
    %v3331 = vpop.xlane.xlu0 %3330
    %3332 = vmax.xlane.f32.xlu0 %v3321
    %v3333 = vpop.xlane.xlu0 %3332
    %v3334 = vsub.f32 %v3081, %v3327
    %v3335 = vsub.f32 %v3161, %v3329
    %v3336 = vsub.f32 %v3241, %v3331
    %v3337 = vsub.f32 %v3321, %v3333
    %v3338 = vmul.f32 %v3334, 1.442695
    %v3339 = vpow.pop %v3338
    %v3340 = vmul.f32 %v3335, 1.442695
    %v3341 = vpow.pop %v3340
    %v3342 = vmul.f32 %v3336, 1.442695
    %v3343 = vpow.pop %v3342
    %v3344 = vmul.f32 %v3337, 1.442695
    %v3345 = vpow.pop %v3344
    %3346 = vadd.xlane.f32.xlu0 %v3339
    %v3347 = vpop.xlane.xlu0 %3346
    %3348 = vadd.xlane.f32.xlu0 %v3341
    %v3349 = vpop.xlane.xlu0 %3348
    %3350 = vadd.xlane.f32.xlu0 %v3343
    %v3351 = vpop.xlane.xlu0 %3350
    %3352 = vadd.xlane.f32.xlu0 %v3345
    %v3353 = vpop.xlane.xlu0 %3352
    %v3354 = vrcp.pop %v3347
    %v3355 = vrcp.pop %v3349
    %v3356 = vrcp.pop %v3351
    %v3357 = vrcp.pop %v3353
    %v3358 = vpack.c.bf16 %v3339, %v3339
    %v3359 = vpack.c.bf16 %v3341, %v3341
    %v3360 = vpack.c.bf16 %v3343, %v3343
    %v3361 = vpack.c.bf16 %v3345, %v3345
    %3362 = vrot.lane.b32.xlu0 %v925, 32
    %v3363 = vpop.permute.xlu0 %3362
    %3364 = vrot.lane.b32.xlu0 %v926, 32
    %v3365 = vpop.permute.xlu0 %3364
    %3366 = vrot.lane.b32.xlu0 %v927, 32
    %v3367 = vpop.permute.xlu0 %3366
    %3368 = vrot.lane.b32.xlu0 %v928, 32
    %v3369 = vpop.permute.xlu0 %3368
    %3370 = vrot.lane.b32.xlu0 %v929, 32
    %v3371 = vpop.permute.xlu0 %3370
    %3372 = vrot.lane.b32.xlu0 %v930, 32
    %v3373 = vpop.permute.xlu0 %3372
    %3374 = vrot.lane.b32.xlu0 %v931, 32
    %v3375 = vpop.permute.xlu0 %3374
    %3376 = vrot.lane.b32.xlu0 %v932, 32
    %v3377 = vpop.permute.xlu0 %3376
    %3386 = vmatprep.subr.bf16.mxu0 0
    %3387 = vmatpush1.bf16.msra.mxu0 %v3363
    %3388 = vmatprep.subr.bf16.mxu0 0
    %3389 = vmatpush1.bf16.msra.mxu0 %v3365
    %3390 = vmatprep.subr.bf16.mxu0 0
    %3391 = vmatpush1.bf16.msra.mxu0 %v3367
    %3392 = vmatprep.subr.bf16.mxu0 0
    %3393 = vmatpush1.bf16.msra.mxu0 %v3369
    %3394 = vmatprep.subr.bf16.mxu0 0
    %3395 = vmatpush1.bf16.msra.mxu0 %v3371
    %3396 = vmatprep.subr.bf16.mxu0 0
    %3397 = vmatpush1.bf16.msra.mxu0 %v3373
    %3398 = vmatprep.subr.bf16.mxu0 0
    %3399 = vmatpush1.bf16.msra.mxu0 %v3375
    %3400 = vmatprep.subr.bf16.mxu0 0
    %3401 = vmatpush1.bf16.msra.mxu0 %v3377
    %3402 = vmatprep.subr.bf16.mxu0 0
    %3403 = vmatpush1.bf16.msra.mxu0 0
    %3404 = vmatprep.subr.bf16.mxu0 0
    %3405 = vmatpush1.bf16.msra.mxu0 0
    %3406 = vmatprep.subr.bf16.mxu0 0
    %3407 = vmatpush1.bf16.msra.mxu0 0
    %3408 = vmatprep.subr.bf16.mxu0 0
    %3409 = vmatpush1.bf16.msra.mxu0 0
    %3410 = vmatprep.subr.bf16.mxu0 0
    %3411 = vmatpush1.bf16.msra.mxu0 0
    %3412 = vmatprep.subr.bf16.mxu0 0
    %3413 = vmatpush1.bf16.msra.mxu0 0
    %3414 = vmatprep.subr.bf16.mxu0 0
    %3415 = vmatpush1.bf16.msra.mxu0 0
    %3416 = vmatprep.subr.bf16.mxu0 0
    %3417 = vmatpush1.bf16.msra.mxu0 0
    %3418 = vmatprep.mubr.bf16.mxu0 0
    %3419 = vmatmul.mubr.bf16.gmra.mrb[0].mxu0 %v3358
    %v3420 = vpop.f32.mrb[0].mxu0
    %v3421 = vadd.f32 0.0, %v3420
    %v3422 = vpop.f32.mrb[0].mxu0
    %v3423 = vpop.f32.mrb[0].mxu0
    %v3424 = vpop.f32.mrb[0].mxu0
    %3425 = vdwg.mxu0
    %3426 = vrot.lane.b32.xlu0 %v933, 32
    %v3427 = vpop.permute.xlu0 %3426
    %3428 = vrot.lane.b32.xlu0 %v934, 32
    %v3429 = vpop.permute.xlu0 %3428
    %3430 = vrot.lane.b32.xlu0 %v935, 32
    %v3431 = vpop.permute.xlu0 %3430
    %3432 = vrot.lane.b32.xlu0 %v936, 32
    %v3433 = vpop.permute.xlu0 %3432
    %3434 = vrot.lane.b32.xlu0 %v937, 32
    %v3435 = vpop.permute.xlu0 %3434
    %3436 = vrot.lane.b32.xlu0 %v938, 32
    %v3437 = vpop.permute.xlu0 %3436
    %3438 = vrot.lane.b32.xlu0 %v939, 32
    %v3439 = vpop.permute.xlu0 %3438
    %3440 = vrot.lane.b32.xlu0 %v940, 32
    %v3441 = vpop.permute.xlu0 %3440
    %3450 = vmatprep.subr.bf16.mxu0 0
    %3451 = vmatpush1.bf16.msra.mxu0 %v3427
    %3452 = vmatprep.subr.bf16.mxu0 0
    %3453 = vmatpush1.bf16.msra.mxu0 %v3429
    %3454 = vmatprep.subr.bf16.mxu0 0
    %3455 = vmatpush1.bf16.msra.mxu0 %v3431
    %3456 = vmatprep.subr.bf16.mxu0 0
    %3457 = vmatpush1.bf16.msra.mxu0 %v3433
    %3458 = vmatprep.subr.bf16.mxu0 0
    %3459 = vmatpush1.bf16.msra.mxu0 %v3435
    %3460 = vmatprep.subr.bf16.mxu0 0
    %3461 = vmatpush1.bf16.msra.mxu0 %v3437
    %3462 = vmatprep.subr.bf16.mxu0 0
    %3463 = vmatpush1.bf16.msra.mxu0 %v3439
    %3464 = vmatprep.subr.bf16.mxu0 0
    %3465 = vmatpush1.bf16.msra.mxu0 %v3441
    %3466 = vmatprep.subr.bf16.mxu0 0
    %3467 = vmatpush1.bf16.msra.mxu0 0
    %3468 = vmatprep.subr.bf16.mxu0 0
    %3469 = vmatpush1.bf16.msra.mxu0 0
    %3470 = vmatprep.subr.bf16.mxu0 0
    %3471 = vmatpush1.bf16.msra.mxu0 0
    %3472 = vmatprep.subr.bf16.mxu0 0
    %3473 = vmatpush1.bf16.msra.mxu0 0
    %3474 = vmatprep.subr.bf16.mxu0 0
    %3475 = vmatpush1.bf16.msra.mxu0 0
    %3476 = vmatprep.subr.bf16.mxu0 0
    %3477 = vmatpush1.bf16.msra.mxu0 0
    %3478 = vmatprep.subr.bf16.mxu0 0
    %3479 = vmatpush1.bf16.msra.mxu0 0
    %3480 = vmatprep.subr.bf16.mxu0 0
    %3481 = vmatpush1.bf16.msra.mxu0 0
    %3482 = vmatprep.mubr.bf16.mxu0 0
    %3483 = vmatmul.mubr.bf16.gmra.mrb[0].mxu0 %v3359
    %v3484 = vpop.f32.mrb[0].mxu0
    %v3485 = vadd.f32 0.0, %v3484
    %v3486 = vpop.f32.mrb[0].mxu0
    %v3487 = vpop.f32.mrb[0].mxu0
    %v3488 = vpop.f32.mrb[0].mxu0
    %3489 = vdwg.mxu0
    %3490 = vrot.lane.b32.xlu0 %v941, 32
    %v3491 = vpop.permute.xlu0 %3490
    %3492 = vrot.lane.b32.xlu0 %v942, 32
    %v3493 = vpop.permute.xlu0 %3492
    %3494 = vrot.lane.b32.xlu0 %v943, 32
    %v3495 = vpop.permute.xlu0 %3494
    %3496 = vrot.lane.b32.xlu0 %v944, 32
    %v3497 = vpop.permute.xlu0 %3496
    %3498 = vrot.lane.b32.xlu0 %v945, 32
    %v3499 = vpop.permute.xlu0 %3498
    %3500 = vrot.lane.b32.xlu0 %v946, 32
    %v3501 = vpop.permute.xlu0 %3500
    %3502 = vrot.lane.b32.xlu0 %v947, 32
    %v3503 = vpop.permute.xlu0 %3502
    %3504 = vrot.lane.b32.xlu0 %v948, 32
    %v3505 = vpop.permute.xlu0 %3504
    %3514 = vmatprep.subr.bf16.mxu0 0
    %3515 = vmatpush1.bf16.msra.mxu0 %v3491
    %3516 = vmatprep.subr.bf16.mxu0 0
    %3517 = vmatpush1.bf16.msra.mxu0 %v3493
    %3518 = vmatprep.subr.bf16.mxu0 0
    %3519 = vmatpush1.bf16.msra.mxu0 %v3495
    %3520 = vmatprep.subr.bf16.mxu0 0
    %3521 = vmatpush1.bf16.msra.mxu0 %v3497
    %3522 = vmatprep.subr.bf16.mxu0 0
    %3523 = vmatpush1.bf16.msra.mxu0 %v3499
    %3524 = vmatprep.subr.bf16.mxu0 0
    %3525 = vmatpush1.bf16.msra.mxu0 %v3501
    %3526 = vmatprep.subr.bf16.mxu0 0
    %3527 = vmatpush1.bf16.msra.mxu0 %v3503
    %3528 = vmatprep.subr.bf16.mxu0 0
    %3529 = vmatpush1.bf16.msra.mxu0 %v3505
    %3530 = vmatprep.subr.bf16.mxu0 0
    %3531 = vmatpush1.bf16.msra.mxu0 0
    %3532 = vmatprep.subr.bf16.mxu0 0
    %3533 = vmatpush1.bf16.msra.mxu0 0
    %3534 = vmatprep.subr.bf16.mxu0 0
    %3535 = vmatpush1.bf16.msra.mxu0 0
    %3536 = vmatprep.subr.bf16.mxu0 0
    %3537 = vmatpush1.bf16.msra.mxu0 0
    %3538 = vmatprep.subr.bf16.mxu0 0
    %3539 = vmatpush1.bf16.msra.mxu0 0
    %3540 = vmatprep.subr.bf16.mxu0 0
    %3541 = vmatpush1.bf16.msra.mxu0 0
    %3542 = vmatprep.subr.bf16.mxu0 0
    %3543 = vmatpush1.bf16.msra.mxu0 0
    %3544 = vmatprep.subr.bf16.mxu0 0
    %3545 = vmatpush1.bf16.msra.mxu0 0
    %3546 = vmatprep.mubr.bf16.mxu0 0
    %3547 = vmatmul.mubr.bf16.gmra.mrb[0].mxu0 %v3360
    %v3548 = vpop.f32.mrb[0].mxu0
    %v3549 = vadd.f32 0.0, %v3548
    %v3550 = vpop.f32.mrb[0].mxu0
    %v3551 = vpop.f32.mrb[0].mxu0
    %v3552 = vpop.f32.mrb[0].mxu0
    %3553 = vdwg.mxu0
    %3554 = vrot.lane.b32.xlu0 %v949, 32
    %v3555 = vpop.permute.xlu0 %3554
    %3556 = vrot.lane.b32.xlu0 %v950, 32
    %v3557 = vpop.permute.xlu0 %3556
    %3558 = vrot.lane.b32.xlu0 %v951, 32
    %v3559 = vpop.permute.xlu0 %3558
    %3560 = vrot.lane.b32.xlu0 %v952, 32
    %v3561 = vpop.permute.xlu0 %3560
    %3562 = vrot.lane.b32.xlu0 %v953, 32
    %v3563 = vpop.permute.xlu0 %3562
    %3564 = vrot.lane.b32.xlu0 %v954, 32
    %v3565 = vpop.permute.xlu0 %3564
    %3566 = vrot.lane.b32.xlu0 %v955, 32
    %v3567 = vpop.permute.xlu0 %3566
    %3568 = vrot.lane.b32.xlu0 %v956, 32
    %v3569 = vpop.permute.xlu0 %3568
    %3578 = vmatprep.subr.bf16.mxu0 0
    %3579 = vmatpush1.bf16.msra.mxu0 %v3555
    %3580 = vmatprep.subr.bf16.mxu0 0
    %3581 = vmatpush1.bf16.msra.mxu0 %v3557
    %3582 = vmatprep.subr.bf16.mxu0 0
    %3583 = vmatpush1.bf16.msra.mxu0 %v3559
    %3584 = vmatprep.subr.bf16.mxu0 0
    %3585 = vmatpush1.bf16.msra.mxu0 %v3561
    %3586 = vmatprep.subr.bf16.mxu0 0
    %3587 = vmatpush1.bf16.msra.mxu0 %v3563
    %3588 = vmatprep.subr.bf16.mxu0 0
    %3589 = vmatpush1.bf16.msra.mxu0 %v3565
    %3590 = vmatprep.subr.bf16.mxu0 0
    %3591 = vmatpush1.bf16.msra.mxu0 %v3567
    %3592 = vmatprep.subr.bf16.mxu0 0
    %3593 = vmatpush1.bf16.msra.mxu0 %v3569
    %3594 = vmatprep.subr.bf16.mxu0 0
    %3595 = vmatpush1.bf16.msra.mxu0 0
    %3596 = vmatprep.subr.bf16.mxu0 0
    %3597 = vmatpush1.bf16.msra.mxu0 0
    %3598 = vmatprep.subr.bf16.mxu0 0
    %3599 = vmatpush1.bf16.msra.mxu0 0
    %3600 = vmatprep.subr.bf16.mxu0 0
    %3601 = vmatpush1.bf16.msra.mxu0 0
    %3602 = vmatprep.subr.bf16.mxu0 0
    %3603 = vmatpush1.bf16.msra.mxu0 0
    %3604 = vmatprep.subr.bf16.mxu0 0
    %3605 = vmatpush1.bf16.msra.mxu0 0
    %3606 = vmatprep.subr.bf16.mxu0 0
    %3607 = vmatpush1.bf16.msra.mxu0 0
    %3608 = vmatprep.subr.bf16.mxu0 0
    %3609 = vmatpush1.bf16.msra.mxu0 0
    %3610 = vmatprep.mubr.bf16.mxu0 0
    %3611 = vmatmul.mubr.bf16.gmra.mrb[0].mxu0 %v3361
    %v3612 = vpop.f32.mrb[0].mxu0
    %v3613 = vadd.f32 0.0, %v3612
    %v3614 = vpop.f32.mrb[0].mxu0
    %v3615 = vpop.f32.mrb[0].mxu0
    %v3616 = vpop.f32.mrb[0].mxu0
    %3617 = vdwg.mxu0
    %v3618 = vmul.f32 %v3421, %v3354
    %v3619 = vmul.f32 %v3485, %v3355
    %v3620 = vmul.f32 %v3549, %v3356
    %v3621 = vmul.f32 %v3613, %v3357
    %v3622 = vpack.c.bf16 %v3618, %v3618
    %v3623 = vpack.c.bf16 %v3619, %v3619
    %v3624 = vpack.c.bf16 %v3620, %v3620
    %v3625 = vpack.c.bf16 %v3621, %v3621
    %v3626 = vld [vmem:[#allocation10 + $0x30] sm:$0xf]
    %v3627 = vld [vmem:[#allocation10 + $0x34] sm:$0xf]
    %v3628 = vld [vmem:[#allocation10 + $0x38] sm:$0xf]
    %v3629 = vld [vmem:[#allocation10 + $0x3c] sm:$0xf]
    %v3634 = vunpack.c.l.b16 %v3622
    %v3635 = vunpack.c.l.b16 %v3623
    %v3636 = vunpack.c.l.b16 %v3624
    %v3637 = vunpack.c.l.b16 %v3625
    %v3638 = vpack.c.b16 %v3635, %v3634
    %v3639 = vpack.c.b16 %v3637, %v3636
    %v3644 = vunpack.c.l.b16 %v3626
    %v3645 = vunpack.c.l.b16 %v3627
    %v3646 = vunpack.c.l.b16 %v3628
    %v3647 = vunpack.c.l.b16 %v3629
    %v3648 = vpack.c.b16 %v3645, %v3644
    %v3649 = vpack.c.b16 %v3647, %v3646
    %v3653 = vsel %vm965, %v3638, 0
    %v3656 = vsel %vm965, %v3639, 0
    %3658 = vmatprep.subr.bf16.mxu0 0
    %3659 = vmatpush1.bf16.msra.mxu0 %v3648
    %3660 = vmatprep.subr.bf16.mxu0 0
    %3661 = vmatpush1.bf16.msra.mxu0 %v3649
    %3662 = vmatprep.subr.bf16.mxu0 0
    %3663 = vmatpush1.bf16.msra.mxu0 0
    %3664 = vmatprep.subr.bf16.mxu0 0
    %3665 = vmatpush1.bf16.msra.mxu0 0
    %3666 = vmatprep.subr.bf16.mxu0 0
    %3667 = vmatpush1.bf16.msra.mxu0 0
    %3668 = vmatprep.subr.bf16.mxu0 0
    %3669 = vmatpush1.bf16.msra.mxu0 0
    %3670 = vmatprep.subr.bf16.mxu0 0
    %3671 = vmatpush1.bf16.msra.mxu0 0
    %3672 = vmatprep.subr.bf16.mxu0 0
    %3673 = vmatpush1.bf16.msra.mxu0 0
    %3674 = vmatprep.subr.bf16.mxu0 0
    %3675 = vmatpush1.bf16.msra.mxu0 0
    %3676 = vmatprep.subr.bf16.mxu0 0
    %3677 = vmatpush1.bf16.msra.mxu0 0
    %3678 = vmatprep.subr.bf16.mxu0 0
    %3679 = vmatpush1.bf16.msra.mxu0 0
    %3680 = vmatprep.subr.bf16.mxu0 0
    %3681 = vmatpush1.bf16.msra.mxu0 0
    %3682 = vmatprep.subr.bf16.mxu0 0
    %3683 = vmatpush1.bf16.msra.mxu0 0
    %3684 = vmatprep.subr.bf16.mxu0 0
    %3685 = vmatpush1.bf16.msra.mxu0 0
    %3686 = vmatprep.subr.bf16.mxu0 0
    %3687 = vmatpush1.bf16.msra.mxu0 0
    %3688 = vmatprep.subr.bf16.mxu0 0
    %3689 = vmatpush1.bf16.msra.mxu0 0
    %3690 = vmatprep.mubr.bf16.mxu0 0
    %3691 = vmatmul.mubr.bf16.gmra.mrb[0].mxu0 %v3653
    %v3692 = vpop.f32.mrb[0].mxu0
    %v3693 = vadd.f32 0.0, %v3692
    %v3694 = vpop.f32.mrb[0].mxu0
    %v3695 = vpop.f32.mrb[0].mxu0
    %v3696 = vadd.f32 0.0, %v3695
    %v3697 = vpop.f32.mrb[0].mxu0
    %3698 = vmatprep.mubr.bf16.mxu0 0
    %3699 = vmatmul.mubr.bf16.gmra.mrb[0].mxu0 %v3656
    %v3700 = vpop.f32.mrb[0].mxu0
    %v3701 = vadd.f32 0.0, %v3700
    %v3702 = vpop.f32.mrb[0].mxu0
    %v3703 = vpop.f32.mrb[0].mxu0
    %v3704 = vadd.f32 0.0, %v3703
    %v3705 = vpop.f32.mrb[0].mxu0
    %3706 = vdwg.mxu0
    %v3707 = vadd.f32 %v2997, %v3693
    %v3708 = vadd.f32 %v2998, %v3696
    %v3709 = vadd.f32 %v2999, %v3701
    %v3710 = vadd.f32 %v3000, %v3704
    %3711 = vst [vmem:[#allocation11] sm:$0xff] %v3707
    %3712 = vst [vmem:[#allocation11 + $0x8] sm:$0xff] %v3708
    %3713 = vst [vmem:[#allocation11 + $0x10] sm:$0xff] %v3709
    %3714 = vst [vmem:[#allocation11 + $0x18] sm:$0xff] %v3710
    // Predicated region
    $region46: #{tpu_custom_call.1} parent=1 // pred_check
      _
    $region47: #{tpu_custom_call.1} parent=1 // pred_check_branch
      %3716 = sbr.rel (0) target = $region49
    $region48: #{tpu_custom_call.1} parent=1 // pred_region
      %s3718 = ssub.s32 512, 512
      %3719 = vsyncadd [#allocation4], %s3718
      %s3720 = sshll.u32 [#allocation11], 4
      %s3721 = int_to_ptr.vmem [resolvable:$true] %s3720
      %3726 = dma.vmem_to_hbm [thread:$0]  %s3721, 512, %s6, [#allocation4], 128, 128, 8
    $region49: #{tpu_custom_call.1} parent=1 // pred_fallthru
      _
    // Predicated region
    $region50: #{tpu_custom_call.1} parent=1 // pred_check
      _
    $region51: #{tpu_custom_call.1} parent=1 // pred_check_branch
      %3728 = sbr.rel (0) target = $region53
    $region52: #{tpu_custom_call.1} parent=1 // pred_region
      %3729 = dma.done [#allocation4], 512
    $region53: #{tpu_custom_call.1} parent=1 // pred_fallthru
      _
    %3730 = vsyncpa [#allocation3], 1
    %3731 = vsyncpa [#allocation6], 1
    %3732 = vsyncpa [#allocation9], 1
    %3733 = vsyncpa [#allocation4], 1

</llo_original>
